<compile_context>
chip_gen: v6e
topology: v6e:2x2x1
jax: 0.10.0
libtpu: 0.0.40
codegen_flags: <defaults>
</compile_context>

<pallas_src>
import jax
import jax.numpy as jnp
from jax.experimental import pallas as pl
from jax.experimental.pallas import tpu as pltpu

# ----------------------------- small config ---------------------------------
IMG = 16            # img_size
PATCH = 4           # patch_size
CIN = 3             # in_chans
DIM = 32            # embed_dim
DEPTH = 2           # depth
HEADS = 4           # num_heads
HD = DIM // HEADS   # head_dim = 8
HIDDEN = DIM * 4    # mlp_ratio = 4
NUM_CLASSES = 10
NCPAD = 128         # lane-dense classifier output width (sliced in wrapper)
GRID_X = IMG // PATCH
GRID_Y = IMG // PATCH
NPATCH = GRID_X * GRID_Y        # 16
NTOK = NPATCH + 1               # 17 (cls + patches)
K_PATCH = CIN * PATCH * PATCH   # 48
K_PATCH_PAD = 64                # zero-padded patch-feature width (lane/MXU friendly)
EPS = 1e-6                      # LayerNorm eps
INIT_SCALE = 1e-4               # LayerScale init_values
ROPE_THETA = 100.0
ATTN_SCALE = float(HD) ** -0.5

# The roll-based RoPE relies on even/odd lane masking of the sin tables to
# neutralize the wraparound at lanes 0 / DIM-1; this requires an even head dim.
assert HD % 2 == 0, "roll-based interleaved RoPE requires an even head_dim"


def _full_spec(shape):
    nd = len(shape)
    return pl.BlockSpec(shape, lambda i, _nd=nd: (0,) * _nd)


# ----------------------------- kernel helpers --------------------------------
def _unit_ln(x):
    # LayerNorm without affine (gamma/beta are folded into the next matmul).
    mu = jnp.mean(x, axis=-1, keepdims=True)
    xc = x - mu
    var = jnp.mean(xc * xc, axis=-1, keepdims=True)
    return xc * jax.lax.rsqrt(var + EPS)


def _gelu(x):
    # TODO(synk): torch nn.GELU() default is the exact erf GELU; tanh
    # approximation is used because erf lowering in Mosaic is not guaranteed
    # (difference is ~1e-3 relative).
    c = 0.7978845608028654  # sqrt(2/pi)
    return 0.5 * x * (1.0 + jnp.tanh(c * (x + 0.044715 * x * x * x)))


def _rope(x, cos_t, sin_e, sin_o):
    # Interleaved-pair complex rotation with XLU lane rolls (no MXU):
    #   out[2i]   = x[2i]  *cos_i - x[2i+1]*sin_i
    #   out[2i+1] = x[2i+1]*cos_i + x[2i]  *sin_i
    # roll follows jnp.roll semantics: roll(x, s)[j] = x[(j - s) % n].
    # Wraparound at lanes 0 / DIM-1 is harmless ONLY because sin_e is zero on
    # odd lanes and sin_o is zero on even lanes (guarded by HD % 2 == 0).
    up = pltpu.roll(x, shift=DIM - 1, axis=1)   # up[j] = x[(j+1) % DIM]
    dn = pltpu.roll(x, shift=1, axis=1)         # dn[j] = x[(j-1) % DIM]
    return x * cos_t + up * sin_e + dn * sin_o


# ----------------------------- fused forward kernel --------------------------
def _fused_kernel(xp_ref, w_patch, embed_bias, cos_t_ref, sin_e_ref, sin_o_ref,
                  wqkv, bqkv, wproj, bproj,
                  wfc1, bfc1, wfc2, bfc2,
                  w_head, b_head, o_ref):
    B_BLK = xp_ref.shape[0]
    rows = B_BLK * NTOK

    # ---- patch embed + cls token as one slab matmul ----
    # (xp row 0 of each image is zeros; embed_bias row 0 is the cls token,
    #  rows 1.. are the Conv2d bias — so one matmul emits the full token slab)
    xp = xp_ref[...].reshape(rows, K_PATCH_PAD)
    x = jnp.dot(xp, w_patch[...],
                preferred_element_type=jnp.float32) + embed_bias[...]   # (rows, DIM)

    cos_t = cos_t_ref[...]
    sin_e = sin_e_ref[...]
    sin_o = sin_o_ref[...]

    for d in range(DEPTH):   # Layer_scale_init_Block x DEPTH, statically unrolled
        # ---- attention with axial RoPE ----
        # LN affine + attention scale are pre-folded into wqkv/bqkv.
        xu = _unit_ln(x)
        qkv = jnp.dot(xu, wqkv[d], preferred_element_type=jnp.float32) + bqkv[d]
        q = _rope(qkv[:, 0:DIM], cos_t, sin_e, sin_o)
        k = _rope(qkv[:, DIM:2 * DIM], cos_t, sin_e, sin_o)
        v = qkv[:, 2 * DIM:3 * DIM]

        q3 = q.reshape(B_BLK, NTOK, DIM)
        k3 = k.reshape(B_BLK, NTOK, DIM)
        v3 = v.reshape(B_BLK, NTOK, DIM)
        # regroup heads into the batch dim: (HEADS*B_BLK, NTOK, HD), head-major
        qh = jnp.concatenate([q3[:, :, h * HD:(h + 1) * HD] for h in range(HEADS)], axis=0)
        kh = jnp.concatenate([k3[:, :, h * HD:(h + 1) * HD] for h in range(HEADS)], axis=0)
        vh = jnp.concatenate([v3[:, :, h * HD:(h + 1) * HD] for h in range(HEADS)], axis=0)

        # one batched score matmul + ONE softmax over all heads/images
        s = jnp.einsum('bqd,bkd->bqk', qh, kh,
                       preferred_element_type=jnp.float32)        # (H*B_BLK, NTOK, NTOK)
        s = s - jnp.max(s, axis=-1, keepdims=True)
        p = jnp.exp(s)
        att = p * pl.reciprocal(jnp.sum(p, axis=-1, keepdims=True), approx=True)
        ctx = jnp.einsum('bqk,bkd->bqd', att, vh,
                         preferred_element_type=jnp.float32)      # (H*B_BLK, NTOK, HD)

        # concat heads back along lanes -> one K=32 output projection
        ctx_b = jnp.concatenate([ctx[h * B_BLK:(h + 1) * B_BLK] for h in range(HEADS)],
                                axis=-1)                          # (B_BLK, NTOK, DIM)
        ctx_slab = ctx_b.reshape(rows, DIM)
        # gamma1 (LayerScale) is pre-folded into wproj/bproj
        x = x + jnp.dot(ctx_slab, wproj[d], preferred_element_type=jnp.float32) + bproj[d]

        # ---- MLP (LN affine folded into wfc1/bfc1, gamma2 into wfc2/bfc2) ----
        xu2 = _unit_ln(x)
        h1 = _gelu(jnp.dot(xu2, wfc1[d], preferred_element_type=jnp.float32) + bfc1[d])
        x = x + jnp.dot(h1, wfc2[d], preferred_element_type=jnp.float32) + bfc2[d]

    # ---- cls tokens -> unit LN (final-norm affine folded into head) -> classifier ----
    cls = jnp.concatenate([x[b * NTOK:b * NTOK + 1, :] for b in range(B_BLK)], axis=0)
    cls_u = _unit_ln(cls)                                          # (B_BLK, DIM)
    logits = jnp.dot(cls_u, w_head[...],
                     preferred_element_type=jnp.float32) + b_head[...]   # (B_BLK, NCPAD)
    for b in range(B_BLK):
        o_ref[b] = logits[b:b + 1, :]


# ----------------------------- RoPE tables (axial cis) ------------------------
def rope_tables():
    # compute_axial_cis(dim=HD, end_x=GRID_X, end_y=GRID_Y, theta=100.0)
    idx = jnp.arange(0, HD, 4)[: HD // 4].astype(jnp.float32)
    mag = 1.0 / (ROPE_THETA ** (idx / HD))
    t = jnp.arange(NPATCH, dtype=jnp.float32)
    t_x = t % GRID_X
    t_y = jnp.floor(t / GRID_X)
    ang = jnp.concatenate([jnp.outer(t_x, mag), jnp.outer(t_y, mag)], axis=-1)  # (NPATCH, HD//2)
    cos_hd = jnp.repeat(jnp.cos(ang), 2, axis=-1)   # duplicate per interleaved pair
    sin_hd = jnp.repeat(jnp.sin(ang), 2, axis=-1)
    # identity row for the cls token (RoPE applied only to q/k[:, :, 1:])
    cos_hd = jnp.concatenate([jnp.ones((1, HD), jnp.float32), cos_hd], axis=0)   # (NTOK, HD)
    sin_hd = jnp.concatenate([jnp.zeros((1, HD), jnp.float32), sin_hd], axis=0)
    # tile across heads (axial freqs are shared by all heads); HD is even so the
    # pairwise structure is preserved under tiling.
    cos_t = jnp.tile(cos_hd, (1, HEADS))            # (NTOK, DIM)
    sin_t = jnp.tile(sin_hd, (1, HEADS))
    even = (jnp.arange(DIM) % 2 == 0)[None, :]
    sin_e = jnp.where(even, -sin_t, 0.0).astype(jnp.float32)  # even lanes: -sin
    sin_o = jnp.where(even, 0.0, sin_t).astype(jnp.float32)   # odd  lanes: +sin
    return cos_t.astype(jnp.float32), sin_e, sin_o


# ----------------------------- parameters -------------------------------------
def init_params(key):
    ks = iter(jax.random.split(key, 4 + 4 * DEPTH))

    def tn(k, shape):  # trunc_normal_(std=0.02) stand-in (deterministic)
        return jax.random.normal(k, shape, jnp.float32) * 0.02

    p = {
        "w_patch": tn(next(ks), (K_PATCH, DIM)),          # Conv2d as matmul
        "b_patch": jnp.zeros((1, DIM), jnp.float32),
        "cls_token": tn(next(ks), (1, DIM)),
        "norm_g": jnp.ones((1, DIM), jnp.float32),
        "norm_b": jnp.zeros((1, DIM), jnp.float32),
        "w_head": tn(next(ks), (DIM, NUM_CLASSES)),
        "b_head": jnp.zeros((1, NUM_CLASSES), jnp.float32),
    }
    # per-depth params stacked on a leading axis (indexed statically in-kernel)
    p.update({
        "ln1_g": jnp.ones((DEPTH, 1, DIM), jnp.float32),
        "ln1_b": jnp.zeros((DEPTH, 1, DIM), jnp.float32),
        # fused QKV: columns [0:DIM]=Q, [DIM:2DIM]=K, [2DIM:3DIM]=V (qkv_bias=False)
        "wqkv": jnp.stack([tn(next(ks), (DIM, 3 * DIM)) for _ in range(DEPTH)]),
        "w_proj": jnp.stack([tn(next(ks), (DIM, DIM)) for _ in range(DEPTH)]),
        "b_proj": jnp.zeros((DEPTH, 1, DIM), jnp.float32),
        "gamma1": jnp.full((DEPTH, 1, DIM), INIT_SCALE, jnp.float32),
        "ln2_g": jnp.ones((DEPTH, 1, DIM), jnp.float32),
        "ln2_b": jnp.zeros((DEPTH, 1, DIM), jnp.float32),
        "w_fc1": jnp.stack([tn(next(ks), (DIM, HIDDEN)) for _ in range(DEPTH)]),
        "b_fc1": jnp.zeros((DEPTH, 1, HIDDEN), jnp.float32),
        "w_fc2": jnp.stack([tn(next(ks), (HIDDEN, DIM)) for _ in range(DEPTH)]),
        "b_fc2": jnp.zeros((DEPTH, 1, DIM), jnp.float32),
        "gamma2": jnp.full((DEPTH, 1, DIM), INIT_SCALE, jnp.float32),
    })
    return p


# ----------------------------- wrapper helpers ---------------------------------
def _choose_b_blk(B):
    # Largest divisor of B that is <= 8, keeping the grid length >= 2 when
    # B >= 2 so both v7x TensorCores get work (costs at most one extra ~0.35 us
    # grid step on v5e/v6e, which have a single TC).
    best = 1
    for cand in range(1, min(B, 8) + 1):
        if B % cand == 0 and (B // cand >= 2 or B < 2):
            best = cand
    return best


def extract_patches(x):
    # x: (B, C, H, W) NCHW — same layout the PyTorch Conv2d patch-embed consumes.
    # TODO(synk): loading pretrained PyTorch Conv2d weights requires reshaping the
    # conv kernel as (DIM, C*P*P) and transposing with exactly this flatten order.
    B, C, H, W = x.shape
    x = x.reshape(B, C, H // PATCH, PATCH, W // PATCH, PATCH)
    x = x.transpose(0, 2, 4, 1, 3, 5)           # (B, Hp, Wp, C, P, P)
    p = x.reshape(B, NPATCH, K_PATCH)           # patch features in (c, ph, pw) order
    p = jnp.pad(p, ((0, 0), (0, 0), (0, K_PATCH_PAD - K_PATCH)))   # lane-align K to 64
    # prepend a zero row for the cls-token slot (its embedding comes from embed_bias)
    return jnp.concatenate([jnp.zeros((B, 1, K_PATCH_PAD), p.dtype), p], axis=1)


def _fold_params(params):
    # Fold LayerNorm affines, LayerScale gammas and the attention scale into the
    # (tiny) weight matrices so the kernel only does unit-LN + matmuls.
    f32 = jnp.float32
    qcol_scale = jnp.concatenate(
        [jnp.full((DIM,), ATTN_SCALE, f32), jnp.ones((2 * DIM,), f32)])[None, None, :]

    wqkv_eff = params["ln1_g"].transpose(0, 2, 1) * params["wqkv"] * qcol_scale
    bqkv_eff = jnp.einsum('dop,dpq->doq', params["ln1_b"], params["wqkv"]) * qcol_scale
    wproj_eff = params["w_proj"] * params["gamma1"]          # column scale by gamma1
    bproj_eff = params["gamma1"] * params["b_proj"]
    wfc1_eff = params["ln2_g"].transpose(0, 2, 1) * params["w_fc1"]
    bfc1_eff = params["b_fc1"] + jnp.einsum('dop,dpq->doq', params["ln2_b"], params["w_fc1"])
    wfc2_eff = params["w_fc2"] * params["gamma2"]            # column scale by gamma2
    bfc2_eff = params["gamma2"] * params["b_fc2"]

    # lane-dense (128-wide) classifier weights + folded final-norm affine
    w_head_p = jnp.zeros((DIM, NCPAD), f32).at[:, :NUM_CLASSES].set(params["w_head"])
    b_head_p = jnp.zeros((1, NCPAD), f32).at[:, :NUM_CLASSES].set(params["b_head"])
    w_head_eff = params["norm_g"].reshape(DIM, 1) * w_head_p
    b_head_eff = b_head_p + params["norm_b"] @ w_head_p

    # patch-embed weight padded to K_PATCH_PAD rows (matches zero-padded patches)
    w_patch_p = jnp.zeros((K_PATCH_PAD, DIM), f32).at[:K_PATCH, :].set(params["w_patch"])
    # row 0 = cls token, rows 1.. = Conv2d patch-embed bias
    embed_bias = jnp.concatenate(
        [params["cls_token"],
         jnp.broadcast_to(params["b_patch"], (NPATCH, DIM))], axis=0)   # (NTOK, DIM)

    return (w_patch_p, embed_bias, wqkv_eff, bqkv_eff, wproj_eff, bproj_eff,
            wfc1_eff, bfc1_eff, wfc2_eff, bfc2_eff, w_head_eff, b_head_eff)


# ----------------------------- forward -----------------------------------------
@jax.jit
def rope_vit_forward(x, params, cos_t, sin_e, sin_o):
    B = x.shape[0]
    B_BLK = _choose_b_blk(B)

    xp = extract_patches(x)                                           # (B, NTOK, K_PATCH_PAD)
    (w_patch_p, embed_bias, wqkv_eff, bqkv_eff, wproj_eff, bproj_eff,
     wfc1_eff, bfc1_eff, wfc2_eff, bfc2_eff, w_head_eff, b_head_eff) = _fold_params(params)

    # per-token tables tiled to the (B_BLK*NTOK, DIM) slab layout
    embed_bias_t = jnp.tile(embed_bias, (B_BLK, 1))
    cos_t_t = jnp.tile(cos_t, (B_BLK, 1))
    sin_e_t = jnp.tile(sin_e, (B_BLK, 1))
    sin_o_t = jnp.tile(sin_o, (B_BLK, 1))

    args = (xp, w_patch_p, embed_bias_t, cos_t_t, sin_e_t, sin_o_t,
            wqkv_eff, bqkv_eff, wproj_eff, bproj_eff,
            wfc1_eff, bfc1_eff, wfc2_eff, bfc2_eff,
            w_head_eff, b_head_eff)
    in_specs = ([pl.BlockSpec((B_BLK, NTOK, K_PATCH_PAD), lambda i: (i, 0, 0))]
                + [_full_spec(a.shape) for a in args[1:]])

    out = pl.pallas_call(
        _fused_kernel,
        out_shape=jax.ShapeDtypeStruct((B, 1, NCPAD), jnp.float32),
        grid=(B // B_BLK,),
        in_specs=in_specs,
        out_specs=pl.BlockSpec((B_BLK, 1, NCPAD), lambda i: (i, 0, 0)),
        compiler_params=pltpu.CompilerParams(dimension_semantics=("parallel",)),
    )(*args)
    return out[:, 0, :NUM_CLASSES]


if __name__ == "__main__":
    key = jax.random.PRNGKey(0)
    kx, kp = jax.random.split(key)
    x = jax.random.normal(kx, (2, CIN, IMG, IMG), jnp.float32)
    params = init_params(kp)
    cos_t, sin_e, sin_o = rope_tables()

    out = rope_vit_forward(x, params, cos_t, sin_e, sin_o)
    jax.block_until_ready(out)
    assert out.shape == (2, NUM_CLASSES), out.shape
    assert bool(jnp.all(jnp.isfinite(out)))
    print("KERNEL_OK")
</pallas_src>

<mosaic_0001>
module attributes {stable_mosaic.version = 11 : i64} {
  func.func @_fused_kernel(%arg0: i32, %arg1: memref<1x17x64xf32, #tpu.memory_space<vmem>>, %arg2: memref<64x32xf32, #tpu.memory_space<vmem>>, %arg3: memref<17x32xf32, #tpu.memory_space<vmem>>, %arg4: memref<17x32xf32, #tpu.memory_space<vmem>>, %arg5: memref<17x32xf32, #tpu.memory_space<vmem>>, %arg6: memref<17x32xf32, #tpu.memory_space<vmem>>, %arg7: memref<2x32x96xf32, #tpu.memory_space<vmem>>, %arg8: memref<2x1x96xf32, #tpu.memory_space<vmem>>, %arg9: memref<2x32x32xf32, #tpu.memory_space<vmem>>, %arg10: memref<2x1x32xf32, #tpu.memory_space<vmem>>, %arg11: memref<2x32x128xf32, #tpu.memory_space<vmem>>, %arg12: memref<2x1x128xf32, #tpu.memory_space<vmem>>, %arg13: memref<2x128x32xf32, #tpu.memory_space<vmem>>, %arg14: memref<2x1x32xf32, #tpu.memory_space<vmem>>, %arg15: memref<32x128xf32, #tpu.memory_space<vmem>>, %arg16: memref<1x128xf32, #tpu.memory_space<vmem>>, %arg17: memref<1x1x128xf32, #tpu.memory_space<vmem>>) attributes {dimension_semantics = [#tpu.dimension_semantics<parallel>], iteration_bounds = array<i64: 2>, scalar_prefetch = 0 : i64, scratch_operands = 0 : i64, tpu.core_type = #tpu.core_type<tc>, window_params = [{transform_indices = @transform_0, window_bounds = array<i64: 1, 17, 64>}, {pipeline_mode = #tpu.pipeline_mode<synchronous>, transform_indices = @transform_1, window_bounds = array<i64: 64, 32>}, {pipeline_mode = #tpu.pipeline_mode<synchronous>, transform_indices = @transform_2, window_bounds = array<i64: 17, 32>}, {pipeline_mode = #tpu.pipeline_mode<synchronous>, transform_indices = @transform_3, window_bounds = array<i64: 17, 32>}, {pipeline_mode = #tpu.pipeline_mode<synchronous>, transform_indices = @transform_4, window_bounds = array<i64: 17, 32>}, {pipeline_mode = #tpu.pipeline_mode<synchronous>, transform_indices = @transform_5, window_bounds = array<i64: 17, 32>}, {pipeline_mode = #tpu.pipeline_mode<synchronous>, transform_indices = @transform_6, window_bounds = array<i64: 2, 32, 96>}, {pipeline_mode = #tpu.pipeline_mode<synchronous>, transform_indices = @transform_7, window_bounds = array<i64: 2, 1, 96>}, {pipeline_mode = #tpu.pipeline_mode<synchronous>, transform_indices = @transform_8, window_bounds = array<i64: 2, 32, 32>}, {pipeline_mode = #tpu.pipeline_mode<synchronous>, transform_indices = @transform_9, window_bounds = array<i64: 2, 1, 32>}, {pipeline_mode = #tpu.pipeline_mode<synchronous>, transform_indices = @transform_10, window_bounds = array<i64: 2, 32, 128>}, {pipeline_mode = #tpu.pipeline_mode<synchronous>, transform_indices = @transform_11, window_bounds = array<i64: 2, 1, 128>}, {pipeline_mode = #tpu.pipeline_mode<synchronous>, transform_indices = @transform_12, window_bounds = array<i64: 2, 128, 32>}, {pipeline_mode = #tpu.pipeline_mode<synchronous>, transform_indices = @transform_13, window_bounds = array<i64: 2, 1, 32>}, {pipeline_mode = #tpu.pipeline_mode<synchronous>, transform_indices = @transform_14, window_bounds = array<i64: 32, 128>}, {pipeline_mode = #tpu.pipeline_mode<synchronous>, transform_indices = @transform_15, window_bounds = array<i64: 1, 128>}, {transform_indices = @transform_16, window_bounds = array<i64: 1, 1, 128>}]} {
    %c0 = arith.constant 0 : index
    %c0_0 = arith.constant 0 : index
    %c0_1 = arith.constant 0 : index
    %0 = vector.load %arg1[%c0, %c0_0, %c0_1] : memref<1x17x64xf32, #tpu.memory_space<vmem>>, vector<1x17x64xf32>
    %1 = vector.shape_cast %0 : vector<1x17x64xf32> to vector<17x64xf32>
    %c0_2 = arith.constant 0 : index
    %c0_3 = arith.constant 0 : index
    %2 = vector.load %arg2[%c0_2, %c0_3] : memref<64x32xf32, #tpu.memory_space<vmem>>, vector<64x32xf32>
    %cst = arith.constant dense<0.000000e+00> : vector<17x32xf32>
    %3 = tpu.matmul %1, %2, %cst {dimension_numbers = #tpu.dot_dimension_numbers<[1], [0], [0], [1], [0, 0, 1, 1], [], []>} : vector<17x64xf32>, vector<64x32xf32>, vector<17x32xf32> -> vector<17x32xf32>
    %c0_4 = arith.constant 0 : index
    %c0_5 = arith.constant 0 : index
    %4 = vector.load %arg3[%c0_4, %c0_5] : memref<17x32xf32, #tpu.memory_space<vmem>>, vector<17x32xf32>
    %5 = arith.addf %3, %4 : vector<17x32xf32>
    %c0_6 = arith.constant 0 : index
    %c0_7 = arith.constant 0 : index
    %6 = vector.load %arg4[%c0_6, %c0_7] : memref<17x32xf32, #tpu.memory_space<vmem>>, vector<17x32xf32>
    %c0_8 = arith.constant 0 : index
    %c0_9 = arith.constant 0 : index
    %7 = vector.load %arg5[%c0_8, %c0_9] : memref<17x32xf32, #tpu.memory_space<vmem>>, vector<17x32xf32>
    %c0_10 = arith.constant 0 : index
    %c0_11 = arith.constant 0 : index
    %8 = vector.load %arg6[%c0_10, %c0_11] : memref<17x32xf32, #tpu.memory_space<vmem>>, vector<17x32xf32>
    %cst_12 = arith.constant dense<0.000000e+00> : vector<17xf32>
    %9 = vector.multi_reduction <add>, %5, %cst_12 [1] : vector<17x32xf32> to vector<17xf32>
    %10 = vector.shape_cast %9 : vector<17xf32> to vector<17x1xf32>
    %cst_13 = arith.constant 3.200000e+01 : f32
    %11 = vector.broadcast %cst_13 : f32 to vector<17x1xf32>
    %12 = arith.divf %10, %11 : vector<17x1xf32>
    %13 = vector.broadcast %12 : vector<17x1xf32> to vector<17x32xf32>
    %14 = arith.subf %5, %13 : vector<17x32xf32>
    %15 = arith.mulf %14, %14 : vector<17x32xf32>
    %cst_14 = arith.constant dense<0.000000e+00> : vector<17xf32>
    %16 = vector.multi_reduction <add>, %15, %cst_14 [1] : vector<17x32xf32> to vector<17xf32>
    %17 = vector.shape_cast %16 : vector<17xf32> to vector<17x1xf32>
    %cst_15 = arith.constant 3.200000e+01 : f32
    %18 = vector.broadcast %cst_15 : f32 to vector<17x1xf32>
    %19 = arith.divf %17, %18 : vector<17x1xf32>
    %cst_16 = arith.constant 9.99999997E-7 : f32
    %20 = vector.broadcast %cst_16 : f32 to vector<17x1xf32>
    %21 = arith.addf %19, %20 : vector<17x1xf32>
    %22 = math.rsqrt %21 : vector<17x1xf32>
    %23 = vector.broadcast %22 : vector<17x1xf32> to vector<17x32xf32>
    %24 = arith.mulf %14, %23 : vector<17x32xf32>
    %c0_17 = arith.constant 0 : index
    %c0_18 = arith.constant 0 : index
    %c0_19 = arith.constant 0 : index
    %25 = vector.load %arg7[%c0_17, %c0_18, %c0_19] : memref<2x32x96xf32, #tpu.memory_space<vmem>>, vector<1x32x96xf32>
    %26 = vector.shape_cast %25 : vector<1x32x96xf32> to vector<32x96xf32>
    %cst_20 = arith.constant dense<0.000000e+00> : vector<17x96xf32>
    %27 = tpu.matmul %24, %26, %cst_20 {dimension_numbers = #tpu.dot_dimension_numbers<[1], [0], [0], [1], [0, 0, 1, 1], [], []>} : vector<17x32xf32>, vector<32x96xf32>, vector<17x96xf32> -> vector<17x96xf32>
    %c0_21 = arith.constant 0 : index
    %c0_22 = arith.constant 0 : index
    %c0_23 = arith.constant 0 : index
    %28 = vector.load %arg8[%c0_21, %c0_22, %c0_23] : memref<2x1x96xf32, #tpu.memory_space<vmem>>, vector<1x1x96xf32>
    %29 = vector.shape_cast %28 : vector<1x1x96xf32> to vector<1x96xf32>
    %30 = vector.broadcast %29 : vector<1x96xf32> to vector<17x96xf32>
    %31 = arith.addf %27, %30 : vector<17x96xf32>
    %32 = vector.extract_strided_slice %31 {offsets = [0, 0], sizes = [17, 32], strides = [1, 1]} : vector<17x96xf32> to vector<17x32xf32>
    %c31_i32 = arith.constant 31 : i32
    %33 = tpu.dynamic_rotate %32 by %c31_i32 dim 1 : vector<17x32xf32>, i32 -> vector<17x32xf32>
    %c1_i32 = arith.constant 1 : i32
    %34 = tpu.dynamic_rotate %32 by %c1_i32 dim 1 : vector<17x32xf32>, i32 -> vector<17x32xf32>
    %35 = arith.mulf %32, %6 : vector<17x32xf32>
    %36 = arith.mulf %33, %7 : vector<17x32xf32>
    %37 = arith.addf %35, %36 : vector<17x32xf32>
    %38 = arith.mulf %34, %8 : vector<17x32xf32>
    %39 = arith.addf %37, %38 : vector<17x32xf32>
    %40 = vector.extract_strided_slice %31 {offsets = [0, 32], sizes = [17, 32], strides = [1, 1]} : vector<17x96xf32> to vector<17x32xf32>
    %c31_i32_24 = arith.constant 31 : i32
    %41 = tpu.dynamic_rotate %40 by %c31_i32_24 dim 1 : vector<17x32xf32>, i32 -> vector<17x32xf32>
    %c1_i32_25 = arith.constant 1 : i32
    %42 = tpu.dynamic_rotate %40 by %c1_i32_25 dim 1 : vector<17x32xf32>, i32 -> vector<17x32xf32>
    %43 = arith.mulf %40, %6 : vector<17x32xf32>
    %44 = arith.mulf %41, %7 : vector<17x32xf32>
    %45 = arith.addf %43, %44 : vector<17x32xf32>
    %46 = arith.mulf %42, %8 : vector<17x32xf32>
    %47 = arith.addf %45, %46 : vector<17x32xf32>
    %48 = vector.extract_strided_slice %31 {offsets = [0, 64], sizes = [17, 32], strides = [1, 1]} : vector<17x96xf32> to vector<17x32xf32>
    %49 = vector.shape_cast %39 : vector<17x32xf32> to vector<1x17x32xf32>
    %50 = vector.shape_cast %47 : vector<17x32xf32> to vector<1x17x32xf32>
    %51 = vector.shape_cast %48 : vector<17x32xf32> to vector<1x17x32xf32>
    %52 = vector.extract_strided_slice %49 {offsets = [0, 0, 0], sizes = [1, 17, 8], strides = [1, 1, 1]} : vector<1x17x32xf32> to vector<1x17x8xf32>
    %53 = vector.extract_strided_slice %49 {offsets = [0, 0, 8], sizes = [1, 17, 8], strides = [1, 1, 1]} : vector<1x17x32xf32> to vector<1x17x8xf32>
    %54 = vector.extract_strided_slice %49 {offsets = [0, 0, 16], sizes = [1, 17, 8], strides = [1, 1, 1]} : vector<1x17x32xf32> to vector<1x17x8xf32>
    %55 = vector.extract_strided_slice %49 {offsets = [0, 0, 24], sizes = [1, 17, 8], strides = [1, 1, 1]} : vector<1x17x32xf32> to vector<1x17x8xf32>
    %56 = tpu.concatenate %52, %53, %54, %55 in 0 : vector<1x17x8xf32>, vector<1x17x8xf32>, vector<1x17x8xf32>, vector<1x17x8xf32> -> vector<4x17x8xf32>
    %57 = vector.extract_strided_slice %50 {offsets = [0, 0, 0], sizes = [1, 17, 8], strides = [1, 1, 1]} : vector<1x17x32xf32> to vector<1x17x8xf32>
    %58 = vector.extract_strided_slice %50 {offsets = [0, 0, 8], sizes = [1, 17, 8], strides = [1, 1, 1]} : vector<1x17x32xf32> to vector<1x17x8xf32>
    %59 = vector.extract_strided_slice %50 {offsets = [0, 0, 16], sizes = [1, 17, 8], strides = [1, 1, 1]} : vector<1x17x32xf32> to vector<1x17x8xf32>
    %60 = vector.extract_strided_slice %50 {offsets = [0, 0, 24], sizes = [1, 17, 8], strides = [1, 1, 1]} : vector<1x17x32xf32> to vector<1x17x8xf32>
    %61 = tpu.concatenate %57, %58, %59, %60 in 0 : vector<1x17x8xf32>, vector<1x17x8xf32>, vector<1x17x8xf32>, vector<1x17x8xf32> -> vector<4x17x8xf32>
    %62 = vector.extract_strided_slice %51 {offsets = [0, 0, 0], sizes = [1, 17, 8], strides = [1, 1, 1]} : vector<1x17x32xf32> to vector<1x17x8xf32>
    %63 = vector.extract_strided_slice %51 {offsets = [0, 0, 8], sizes = [1, 17, 8], strides = [1, 1, 1]} : vector<1x17x32xf32> to vector<1x17x8xf32>
    %64 = vector.extract_strided_slice %51 {offsets = [0, 0, 16], sizes = [1, 17, 8], strides = [1, 1, 1]} : vector<1x17x32xf32> to vector<1x17x8xf32>
    %65 = vector.extract_strided_slice %51 {offsets = [0, 0, 24], sizes = [1, 17, 8], strides = [1, 1, 1]} : vector<1x17x32xf32> to vector<1x17x8xf32>
    %66 = tpu.concatenate %62, %63, %64, %65 in 0 : vector<1x17x8xf32>, vector<1x17x8xf32>, vector<1x17x8xf32>, vector<1x17x8xf32> -> vector<4x17x8xf32>
    "tpu.trace_start"() <{level = 10 : i32, message = "bqd,bkd->bqk"}> : () -> ()
    %cst_26 = arith.constant dense<0.000000e+00> : vector<4x17x17xf32>
    %67 = tpu.matmul %56, %61, %cst_26 {dimension_numbers = #tpu.dot_dimension_numbers<[2], [2], [1], [1], [0, 0, 0, 1, 1, 1], [0], [0]>} : vector<4x17x8xf32>, vector<4x17x8xf32>, vector<4x17x17xf32> -> vector<4x17x17xf32>
    "tpu.trace_stop"() : () -> ()
    %cst_27 = arith.constant dense<0xFF800000> : vector<4x17xf32>
    %68 = vector.multi_reduction <maximumf>, %67, %cst_27 [2] : vector<4x17x17xf32> to vector<4x17xf32>
    %69 = vector.shape_cast %68 : vector<4x17xf32> to vector<4x17x1xf32>
    %70 = vector.broadcast %69 : vector<4x17x1xf32> to vector<4x17x17xf32>
    %71 = arith.subf %67, %70 : vector<4x17x17xf32>
    %72 = math.exp %71 : vector<4x17x17xf32>
    %cst_28 = arith.constant dense<0.000000e+00> : vector<4x17xf32>
    %73 = vector.multi_reduction <add>, %72, %cst_28 [2] : vector<4x17x17xf32> to vector<4x17xf32>
    %74 = vector.shape_cast %73 : vector<4x17xf32> to vector<4x17x1xf32>
    %75 = tpu.reciprocal %74 {approx = true} : vector<4x17x1xf32> -> vector<4x17x1xf32>
    %76 = vector.broadcast %75 : vector<4x17x1xf32> to vector<4x17x17xf32>
    %77 = arith.mulf %72, %76 : vector<4x17x17xf32>
    "tpu.trace_start"() <{level = 10 : i32, message = "bqk,bkd->bqd"}> : () -> ()
    %cst_29 = arith.constant dense<0.000000e+00> : vector<4x17x8xf32>
    %78 = tpu.matmul %77, %66, %cst_29 {dimension_numbers = #tpu.dot_dimension_numbers<[2], [1], [1], [2], [0, 0, 0, 1, 1, 2], [0], [0]>} : vector<4x17x17xf32>, vector<4x17x8xf32>, vector<4x17x8xf32> -> vector<4x17x8xf32>
    "tpu.trace_stop"() : () -> ()
    %79 = vector.extract_strided_slice %78 {offsets = [0, 0, 0], sizes = [1, 17, 8], strides = [1, 1, 1]} : vector<4x17x8xf32> to vector<1x17x8xf32>
    %80 = vector.extract_strided_slice %78 {offsets = [1, 0, 0], sizes = [1, 17, 8], strides = [1, 1, 1]} : vector<4x17x8xf32> to vector<1x17x8xf32>
    %81 = vector.extract_strided_slice %78 {offsets = [2, 0, 0], sizes = [1, 17, 8], strides = [1, 1, 1]} : vector<4x17x8xf32> to vector<1x17x8xf32>
    %82 = vector.extract_strided_slice %78 {offsets = [3, 0, 0], sizes = [1, 17, 8], strides = [1, 1, 1]} : vector<4x17x8xf32> to vector<1x17x8xf32>
    %83 = tpu.concatenate %79, %80, %81, %82 in 2 : vector<1x17x8xf32>, vector<1x17x8xf32>, vector<1x17x8xf32>, vector<1x17x8xf32> -> vector<1x17x32xf32>
    %84 = vector.shape_cast %83 : vector<1x17x32xf32> to vector<17x32xf32>
    %c0_30 = arith.constant 0 : index
    %c0_31 = arith.constant 0 : index
    %c0_32 = arith.constant 0 : index
    %85 = vector.load %arg9[%c0_30, %c0_31, %c0_32] : memref<2x32x32xf32, #tpu.memory_space<vmem>>, vector<1x32x32xf32>
    %86 = vector.shape_cast %85 : vector<1x32x32xf32> to vector<32x32xf32>
    %cst_33 = arith.constant dense<0.000000e+00> : vector<17x32xf32>
    %87 = tpu.matmul %84, %86, %cst_33 {dimension_numbers = #tpu.dot_dimension_numbers<[1], [0], [0], [1], [0, 0, 1, 1], [], []>} : vector<17x32xf32>, vector<32x32xf32>, vector<17x32xf32> -> vector<17x32xf32>
    %88 = arith.addf %5, %87 : vector<17x32xf32>
    %c0_34 = arith.constant 0 : index
    %c0_35 = arith.constant 0 : index
    %c0_36 = arith.constant 0 : index
    %89 = vector.load %arg10[%c0_34, %c0_35, %c0_36] : memref<2x1x32xf32, #tpu.memory_space<vmem>>, vector<1x1x32xf32>
    %90 = vector.shape_cast %89 : vector<1x1x32xf32> to vector<1x32xf32>
    %91 = vector.broadcast %90 : vector<1x32xf32> to vector<17x32xf32>
    %92 = arith.addf %88, %91 : vector<17x32xf32>
    %cst_37 = arith.constant dense<0.000000e+00> : vector<17xf32>
    %93 = vector.multi_reduction <add>, %92, %cst_37 [1] : vector<17x32xf32> to vector<17xf32>
    %94 = vector.shape_cast %93 : vector<17xf32> to vector<17x1xf32>
    %cst_38 = arith.constant 3.200000e+01 : f32
    %95 = vector.broadcast %cst_38 : f32 to vector<17x1xf32>
    %96 = arith.divf %94, %95 : vector<17x1xf32>
    %97 = vector.broadcast %96 : vector<17x1xf32> to vector<17x32xf32>
    %98 = arith.subf %92, %97 : vector<17x32xf32>
    %99 = arith.mulf %98, %98 : vector<17x32xf32>
    %cst_39 = arith.constant dense<0.000000e+00> : vector<17xf32>
    %100 = vector.multi_reduction <add>, %99, %cst_39 [1] : vector<17x32xf32> to vector<17xf32>
    %101 = vector.shape_cast %100 : vector<17xf32> to vector<17x1xf32>
    %cst_40 = arith.constant 3.200000e+01 : f32
    %102 = vector.broadcast %cst_40 : f32 to vector<17x1xf32>
    %103 = arith.divf %101, %102 : vector<17x1xf32>
    %cst_41 = arith.constant 9.99999997E-7 : f32
    %104 = vector.broadcast %cst_41 : f32 to vector<17x1xf32>
    %105 = arith.addf %103, %104 : vector<17x1xf32>
    %106 = math.rsqrt %105 : vector<17x1xf32>
    %107 = vector.broadcast %106 : vector<17x1xf32> to vector<17x32xf32>
    %108 = arith.mulf %98, %107 : vector<17x32xf32>
    %c0_42 = arith.constant 0 : index
    %c0_43 = arith.constant 0 : index
    %c0_44 = arith.constant 0 : index
    %109 = vector.load %arg11[%c0_42, %c0_43, %c0_44] : memref<2x32x128xf32, #tpu.memory_space<vmem>>, vector<1x32x128xf32>
    %110 = vector.shape_cast %109 : vector<1x32x128xf32> to vector<32x128xf32>
    %cst_45 = arith.constant dense<0.000000e+00> : vector<17x128xf32>
    %111 = tpu.matmul %108, %110, %cst_45 {dimension_numbers = #tpu.dot_dimension_numbers<[1], [0], [0], [1], [0, 0, 1, 1], [], []>} : vector<17x32xf32>, vector<32x128xf32>, vector<17x128xf32> -> vector<17x128xf32>
    %c0_46 = arith.constant 0 : index
    %c0_47 = arith.constant 0 : index
    %c0_48 = arith.constant 0 : index
    %112 = vector.load %arg12[%c0_46, %c0_47, %c0_48] : memref<2x1x128xf32, #tpu.memory_space<vmem>>, vector<1x1x128xf32>
    %113 = vector.shape_cast %112 : vector<1x1x128xf32> to vector<1x128xf32>
    %114 = vector.broadcast %113 : vector<1x128xf32> to vector<17x128xf32>
    %115 = arith.addf %111, %114 : vector<17x128xf32>
    %cst_49 = arith.constant 5.000000e-01 : f32
    %116 = vector.broadcast %cst_49 : f32 to vector<17x128xf32>
    %117 = arith.mulf %116, %115 : vector<17x128xf32>
    %cst_50 = arith.constant 4.471500e-02 : f32
    %118 = vector.broadcast %cst_50 : f32 to vector<17x128xf32>
    %119 = arith.mulf %118, %115 : vector<17x128xf32>
    %120 = arith.mulf %119, %115 : vector<17x128xf32>
    %121 = arith.mulf %120, %115 : vector<17x128xf32>
    %122 = arith.addf %115, %121 : vector<17x128xf32>
    %cst_51 = arith.constant 0.797884583 : f32
    %123 = vector.broadcast %cst_51 : f32 to vector<17x128xf32>
    %124 = arith.mulf %123, %122 : vector<17x128xf32>
    %125 = math.tanh %124 : vector<17x128xf32>
    %cst_52 = arith.constant 1.000000e+00 : f32
    %126 = vector.broadcast %cst_52 : f32 to vector<17x128xf32>
    %127 = arith.addf %126, %125 : vector<17x128xf32>
    %128 = arith.mulf %117, %127 : vector<17x128xf32>
    %c0_53 = arith.constant 0 : index
    %c0_54 = arith.constant 0 : index
    %c0_55 = arith.constant 0 : index
    %129 = vector.load %arg13[%c0_53, %c0_54, %c0_55] : memref<2x128x32xf32, #tpu.memory_space<vmem>>, vector<1x128x32xf32>
    %130 = vector.shape_cast %129 : vector<1x128x32xf32> to vector<128x32xf32>
    %cst_56 = arith.constant dense<0.000000e+00> : vector<17x32xf32>
    %131 = tpu.matmul %128, %130, %cst_56 {dimension_numbers = #tpu.dot_dimension_numbers<[1], [0], [0], [1], [0, 0, 1, 1], [], []>} : vector<17x128xf32>, vector<128x32xf32>, vector<17x32xf32> -> vector<17x32xf32>
    %132 = arith.addf %92, %131 : vector<17x32xf32>
    %c0_57 = arith.constant 0 : index
    %c0_58 = arith.constant 0 : index
    %c0_59 = arith.constant 0 : index
    %133 = vector.load %arg14[%c0_57, %c0_58, %c0_59] : memref<2x1x32xf32, #tpu.memory_space<vmem>>, vector<1x1x32xf32>
    %134 = vector.shape_cast %133 : vector<1x1x32xf32> to vector<1x32xf32>
    %135 = vector.broadcast %134 : vector<1x32xf32> to vector<17x32xf32>
    %136 = arith.addf %132, %135 : vector<17x32xf32>
    %cst_60 = arith.constant dense<0.000000e+00> : vector<17xf32>
    %137 = vector.multi_reduction <add>, %136, %cst_60 [1] : vector<17x32xf32> to vector<17xf32>
    %138 = vector.shape_cast %137 : vector<17xf32> to vector<17x1xf32>
    %cst_61 = arith.constant 3.200000e+01 : f32
    %139 = vector.broadcast %cst_61 : f32 to vector<17x1xf32>
    %140 = arith.divf %138, %139 : vector<17x1xf32>
    %141 = vector.broadcast %140 : vector<17x1xf32> to vector<17x32xf32>
    %142 = arith.subf %136, %141 : vector<17x32xf32>
    %143 = arith.mulf %142, %142 : vector<17x32xf32>
    %cst_62 = arith.constant dense<0.000000e+00> : vector<17xf32>
    %144 = vector.multi_reduction <add>, %143, %cst_62 [1] : vector<17x32xf32> to vector<17xf32>
    %145 = vector.shape_cast %144 : vector<17xf32> to vector<17x1xf32>
    %cst_63 = arith.constant 3.200000e+01 : f32
    %146 = vector.broadcast %cst_63 : f32 to vector<17x1xf32>
    %147 = arith.divf %145, %146 : vector<17x1xf32>
    %cst_64 = arith.constant 9.99999997E-7 : f32
    %148 = vector.broadcast %cst_64 : f32 to vector<17x1xf32>
    %149 = arith.addf %147, %148 : vector<17x1xf32>
    %150 = math.rsqrt %149 : vector<17x1xf32>
    %151 = vector.broadcast %150 : vector<17x1xf32> to vector<17x32xf32>
    %152 = arith.mulf %142, %151 : vector<17x32xf32>
    %c1 = arith.constant 1 : index
    %c0_65 = arith.constant 0 : index
    %c0_66 = arith.constant 0 : index
    %153 = vector.load %arg7[%c1, %c0_65, %c0_66] : memref<2x32x96xf32, #tpu.memory_space<vmem>>, vector<1x32x96xf32>
    %154 = vector.shape_cast %153 : vector<1x32x96xf32> to vector<32x96xf32>
    %cst_67 = arith.constant dense<0.000000e+00> : vector<17x96xf32>
    %155 = tpu.matmul %152, %154, %cst_67 {dimension_numbers = #tpu.dot_dimension_numbers<[1], [0], [0], [1], [0, 0, 1, 1], [], []>} : vector<17x32xf32>, vector<32x96xf32>, vector<17x96xf32> -> vector<17x96xf32>
    %c1_68 = arith.constant 1 : index
    %c0_69 = arith.constant 0 : index
    %c0_70 = arith.constant 0 : index
    %156 = vector.load %arg8[%c1_68, %c0_69, %c0_70] : memref<2x1x96xf32, #tpu.memory_space<vmem>>, vector<1x1x96xf32>
    %157 = vector.shape_cast %156 : vector<1x1x96xf32> to vector<1x96xf32>
    %158 = vector.broadcast %157 : vector<1x96xf32> to vector<17x96xf32>
    %159 = arith.addf %155, %158 : vector<17x96xf32>
    %160 = vector.extract_strided_slice %159 {offsets = [0, 0], sizes = [17, 32], strides = [1, 1]} : vector<17x96xf32> to vector<17x32xf32>
    %c31_i32_71 = arith.constant 31 : i32
    %161 = tpu.dynamic_rotate %160 by %c31_i32_71 dim 1 : vector<17x32xf32>, i32 -> vector<17x32xf32>
    %c1_i32_72 = arith.constant 1 : i32
    %162 = tpu.dynamic_rotate %160 by %c1_i32_72 dim 1 : vector<17x32xf32>, i32 -> vector<17x32xf32>
    %163 = arith.mulf %160, %6 : vector<17x32xf32>
    %164 = arith.mulf %161, %7 : vector<17x32xf32>
    %165 = arith.addf %163, %164 : vector<17x32xf32>
    %166 = arith.mulf %162, %8 : vector<17x32xf32>
    %167 = arith.addf %165, %166 : vector<17x32xf32>
    %168 = vector.extract_strided_slice %159 {offsets = [0, 32], sizes = [17, 32], strides = [1, 1]} : vector<17x96xf32> to vector<17x32xf32>
    %c31_i32_73 = arith.constant 31 : i32
    %169 = tpu.dynamic_rotate %168 by %c31_i32_73 dim 1 : vector<17x32xf32>, i32 -> vector<17x32xf32>
    %c1_i32_74 = arith.constant 1 : i32
    %170 = tpu.dynamic_rotate %168 by %c1_i32_74 dim 1 : vector<17x32xf32>, i32 -> vector<17x32xf32>
    %171 = arith.mulf %168, %6 : vector<17x32xf32>
    %172 = arith.mulf %169, %7 : vector<17x32xf32>
    %173 = arith.addf %171, %172 : vector<17x32xf32>
    %174 = arith.mulf %170, %8 : vector<17x32xf32>
    %175 = arith.addf %173, %174 : vector<17x32xf32>
    %176 = vector.extract_strided_slice %159 {offsets = [0, 64], sizes = [17, 32], strides = [1, 1]} : vector<17x96xf32> to vector<17x32xf32>
    %177 = vector.shape_cast %167 : vector<17x32xf32> to vector<1x17x32xf32>
    %178 = vector.shape_cast %175 : vector<17x32xf32> to vector<1x17x32xf32>
    %179 = vector.shape_cast %176 : vector<17x32xf32> to vector<1x17x32xf32>
    %180 = vector.extract_strided_slice %177 {offsets = [0, 0, 0], sizes = [1, 17, 8], strides = [1, 1, 1]} : vector<1x17x32xf32> to vector<1x17x8xf32>
    %181 = vector.extract_strided_slice %177 {offsets = [0, 0, 8], sizes = [1, 17, 8], strides = [1, 1, 1]} : vector<1x17x32xf32> to vector<1x17x8xf32>
    %182 = vector.extract_strided_slice %177 {offsets = [0, 0, 16], sizes = [1, 17, 8], strides = [1, 1, 1]} : vector<1x17x32xf32> to vector<1x17x8xf32>
    %183 = vector.extract_strided_slice %177 {offsets = [0, 0, 24], sizes = [1, 17, 8], strides = [1, 1, 1]} : vector<1x17x32xf32> to vector<1x17x8xf32>
    %184 = tpu.concatenate %180, %181, %182, %183 in 0 : vector<1x17x8xf32>, vector<1x17x8xf32>, vector<1x17x8xf32>, vector<1x17x8xf32> -> vector<4x17x8xf32>
    %185 = vector.extract_strided_slice %178 {offsets = [0, 0, 0], sizes = [1, 17, 8], strides = [1, 1, 1]} : vector<1x17x32xf32> to vector<1x17x8xf32>
    %186 = vector.extract_strided_slice %178 {offsets = [0, 0, 8], sizes = [1, 17, 8], strides = [1, 1, 1]} : vector<1x17x32xf32> to vector<1x17x8xf32>
    %187 = vector.extract_strided_slice %178 {offsets = [0, 0, 16], sizes = [1, 17, 8], strides = [1, 1, 1]} : vector<1x17x32xf32> to vector<1x17x8xf32>
    %188 = vector.extract_strided_slice %178 {offsets = [0, 0, 24], sizes = [1, 17, 8], strides = [1, 1, 1]} : vector<1x17x32xf32> to vector<1x17x8xf32>
    %189 = tpu.concatenate %185, %186, %187, %188 in 0 : vector<1x17x8xf32>, vector<1x17x8xf32>, vector<1x17x8xf32>, vector<1x17x8xf32> -> vector<4x17x8xf32>
    %190 = vector.extract_strided_slice %179 {offsets = [0, 0, 0], sizes = [1, 17, 8], strides = [1, 1, 1]} : vector<1x17x32xf32> to vector<1x17x8xf32>
    %191 = vector.extract_strided_slice %179 {offsets = [0, 0, 8], sizes = [1, 17, 8], strides = [1, 1, 1]} : vector<1x17x32xf32> to vector<1x17x8xf32>
    %192 = vector.extract_strided_slice %179 {offsets = [0, 0, 16], sizes = [1, 17, 8], strides = [1, 1, 1]} : vector<1x17x32xf32> to vector<1x17x8xf32>
    %193 = vector.extract_strided_slice %179 {offsets = [0, 0, 24], sizes = [1, 17, 8], strides = [1, 1, 1]} : vector<1x17x32xf32> to vector<1x17x8xf32>
    %194 = tpu.concatenate %190, %191, %192, %193 in 0 : vector<1x17x8xf32>, vector<1x17x8xf32>, vector<1x17x8xf32>, vector<1x17x8xf32> -> vector<4x17x8xf32>
    "tpu.trace_start"() <{level = 10 : i32, message = "bqd,bkd->bqk"}> : () -> ()
    %cst_75 = arith.constant dense<0.000000e+00> : vector<4x17x17xf32>
    %195 = tpu.matmul %184, %189, %cst_75 {dimension_numbers = #tpu.dot_dimension_numbers<[2], [2], [1], [1], [0, 0, 0, 1, 1, 1], [0], [0]>} : vector<4x17x8xf32>, vector<4x17x8xf32>, vector<4x17x17xf32> -> vector<4x17x17xf32>
    "tpu.trace_stop"() : () -> ()
    %cst_76 = arith.constant dense<0xFF800000> : vector<4x17xf32>
    %196 = vector.multi_reduction <maximumf>, %195, %cst_76 [2] : vector<4x17x17xf32> to vector<4x17xf32>
    %197 = vector.shape_cast %196 : vector<4x17xf32> to vector<4x17x1xf32>
    %198 = vector.broadcast %197 : vector<4x17x1xf32> to vector<4x17x17xf32>
    %199 = arith.subf %195, %198 : vector<4x17x17xf32>
    %200 = math.exp %199 : vector<4x17x17xf32>
    %cst_77 = arith.constant dense<0.000000e+00> : vector<4x17xf32>
    %201 = vector.multi_reduction <add>, %200, %cst_77 [2] : vector<4x17x17xf32> to vector<4x17xf32>
    %202 = vector.shape_cast %201 : vector<4x17xf32> to vector<4x17x1xf32>
    %203 = tpu.reciprocal %202 {approx = true} : vector<4x17x1xf32> -> vector<4x17x1xf32>
    %204 = vector.broadcast %203 : vector<4x17x1xf32> to vector<4x17x17xf32>
    %205 = arith.mulf %200, %204 : vector<4x17x17xf32>
    "tpu.trace_start"() <{level = 10 : i32, message = "bqk,bkd->bqd"}> : () -> ()
    %cst_78 = arith.constant dense<0.000000e+00> : vector<4x17x8xf32>
    %206 = tpu.matmul %205, %194, %cst_78 {dimension_numbers = #tpu.dot_dimension_numbers<[2], [1], [1], [2], [0, 0, 0, 1, 1, 2], [0], [0]>} : vector<4x17x17xf32>, vector<4x17x8xf32>, vector<4x17x8xf32> -> vector<4x17x8xf32>
    "tpu.trace_stop"() : () -> ()
    %207 = vector.extract_strided_slice %206 {offsets = [0, 0, 0], sizes = [1, 17, 8], strides = [1, 1, 1]} : vector<4x17x8xf32> to vector<1x17x8xf32>
    %208 = vector.extract_strided_slice %206 {offsets = [1, 0, 0], sizes = [1, 17, 8], strides = [1, 1, 1]} : vector<4x17x8xf32> to vector<1x17x8xf32>
    %209 = vector.extract_strided_slice %206 {offsets = [2, 0, 0], sizes = [1, 17, 8], strides = [1, 1, 1]} : vector<4x17x8xf32> to vector<1x17x8xf32>
    %210 = vector.extract_strided_slice %206 {offsets = [3, 0, 0], sizes = [1, 17, 8], strides = [1, 1, 1]} : vector<4x17x8xf32> to vector<1x17x8xf32>
    %211 = tpu.concatenate %207, %208, %209, %210 in 2 : vector<1x17x8xf32>, vector<1x17x8xf32>, vector<1x17x8xf32>, vector<1x17x8xf32> -> vector<1x17x32xf32>
    %212 = vector.shape_cast %211 : vector<1x17x32xf32> to vector<17x32xf32>
    %c1_79 = arith.constant 1 : index
    %c0_80 = arith.constant 0 : index
    %c0_81 = arith.constant 0 : index
    %213 = vector.load %arg9[%c1_79, %c0_80, %c0_81] : memref<2x32x32xf32, #tpu.memory_space<vmem>>, vector<1x32x32xf32>
    %214 = vector.shape_cast %213 : vector<1x32x32xf32> to vector<32x32xf32>
    %cst_82 = arith.constant dense<0.000000e+00> : vector<17x32xf32>
    %215 = tpu.matmul %212, %214, %cst_82 {dimension_numbers = #tpu.dot_dimension_numbers<[1], [0], [0], [1], [0, 0, 1, 1], [], []>} : vector<17x32xf32>, vector<32x32xf32>, vector<17x32xf32> -> vector<17x32xf32>
    %216 = arith.addf %136, %215 : vector<17x32xf32>
    %c1_83 = arith.constant 1 : index
    %c0_84 = arith.constant 0 : index
    %c0_85 = arith.constant 0 : index
    %217 = vector.load %arg10[%c1_83, %c0_84, %c0_85] : memref<2x1x32xf32, #tpu.memory_space<vmem>>, vector<1x1x32xf32>
    %218 = vector.shape_cast %217 : vector<1x1x32xf32> to vector<1x32xf32>
    %219 = vector.broadcast %218 : vector<1x32xf32> to vector<17x32xf32>
    %220 = arith.addf %216, %219 : vector<17x32xf32>
    %cst_86 = arith.constant dense<0.000000e+00> : vector<17xf32>
    %221 = vector.multi_reduction <add>, %220, %cst_86 [1] : vector<17x32xf32> to vector<17xf32>
    %222 = vector.shape_cast %221 : vector<17xf32> to vector<17x1xf32>
    %cst_87 = arith.constant 3.200000e+01 : f32
    %223 = vector.broadcast %cst_87 : f32 to vector<17x1xf32>
    %224 = arith.divf %222, %223 : vector<17x1xf32>
    %225 = vector.broadcast %224 : vector<17x1xf32> to vector<17x32xf32>
    %226 = arith.subf %220, %225 : vector<17x32xf32>
    %227 = arith.mulf %226, %226 : vector<17x32xf32>
    %cst_88 = arith.constant dense<0.000000e+00> : vector<17xf32>
    %228 = vector.multi_reduction <add>, %227, %cst_88 [1] : vector<17x32xf32> to vector<17xf32>
    %229 = vector.shape_cast %228 : vector<17xf32> to vector<17x1xf32>
    %cst_89 = arith.constant 3.200000e+01 : f32
    %230 = vector.broadcast %cst_89 : f32 to vector<17x1xf32>
    %231 = arith.divf %229, %230 : vector<17x1xf32>
    %cst_90 = arith.constant 9.99999997E-7 : f32
    %232 = vector.broadcast %cst_90 : f32 to vector<17x1xf32>
    %233 = arith.addf %231, %232 : vector<17x1xf32>
    %234 = math.rsqrt %233 : vector<17x1xf32>
    %235 = vector.broadcast %234 : vector<17x1xf32> to vector<17x32xf32>
    %236 = arith.mulf %226, %235 : vector<17x32xf32>
    %c1_91 = arith.constant 1 : index
    %c0_92 = arith.constant 0 : index
    %c0_93 = arith.constant 0 : index
    %237 = vector.load %arg11[%c1_91, %c0_92, %c0_93] : memref<2x32x128xf32, #tpu.memory_space<vmem>>, vector<1x32x128xf32>
    %238 = vector.shape_cast %237 : vector<1x32x128xf32> to vector<32x128xf32>
    %cst_94 = arith.constant dense<0.000000e+00> : vector<17x128xf32>
    %239 = tpu.matmul %236, %238, %cst_94 {dimension_numbers = #tpu.dot_dimension_numbers<[1], [0], [0], [1], [0, 0, 1, 1], [], []>} : vector<17x32xf32>, vector<32x128xf32>, vector<17x128xf32> -> vector<17x128xf32>
    %c1_95 = arith.constant 1 : index
    %c0_96 = arith.constant 0 : index
    %c0_97 = arith.constant 0 : index
    %240 = vector.load %arg12[%c1_95, %c0_96, %c0_97] : memref<2x1x128xf32, #tpu.memory_space<vmem>>, vector<1x1x128xf32>
    %241 = vector.shape_cast %240 : vector<1x1x128xf32> to vector<1x128xf32>
    %242 = vector.broadcast %241 : vector<1x128xf32> to vector<17x128xf32>
    %243 = arith.addf %239, %242 : vector<17x128xf32>
    %cst_98 = arith.constant 5.000000e-01 : f32
    %244 = vector.broadcast %cst_98 : f32 to vector<17x128xf32>
    %245 = arith.mulf %244, %243 : vector<17x128xf32>
    %cst_99 = arith.constant 4.471500e-02 : f32
    %246 = vector.broadcast %cst_99 : f32 to vector<17x128xf32>
    %247 = arith.mulf %246, %243 : vector<17x128xf32>
    %248 = arith.mulf %247, %243 : vector<17x128xf32>
    %249 = arith.mulf %248, %243 : vector<17x128xf32>
    %250 = arith.addf %243, %249 : vector<17x128xf32>
    %cst_100 = arith.constant 0.797884583 : f32
    %251 = vector.broadcast %cst_100 : f32 to vector<17x128xf32>
    %252 = arith.mulf %251, %250 : vector<17x128xf32>
    %253 = math.tanh %252 : vector<17x128xf32>
    %cst_101 = arith.constant 1.000000e+00 : f32
    %254 = vector.broadcast %cst_101 : f32 to vector<17x128xf32>
    %255 = arith.addf %254, %253 : vector<17x128xf32>
    %256 = arith.mulf %245, %255 : vector<17x128xf32>
    %c1_102 = arith.constant 1 : index
    %c0_103 = arith.constant 0 : index
    %c0_104 = arith.constant 0 : index
    %257 = vector.load %arg13[%c1_102, %c0_103, %c0_104] : memref<2x128x32xf32, #tpu.memory_space<vmem>>, vector<1x128x32xf32>
    %258 = vector.shape_cast %257 : vector<1x128x32xf32> to vector<128x32xf32>
    %cst_105 = arith.constant dense<0.000000e+00> : vector<17x32xf32>
    %259 = tpu.matmul %256, %258, %cst_105 {dimension_numbers = #tpu.dot_dimension_numbers<[1], [0], [0], [1], [0, 0, 1, 1], [], []>} : vector<17x128xf32>, vector<128x32xf32>, vector<17x32xf32> -> vector<17x32xf32>
    %260 = arith.addf %220, %259 : vector<17x32xf32>
    %c1_106 = arith.constant 1 : index
    %c0_107 = arith.constant 0 : index
    %c0_108 = arith.constant 0 : index
    %261 = vector.load %arg14[%c1_106, %c0_107, %c0_108] : memref<2x1x32xf32, #tpu.memory_space<vmem>>, vector<1x1x32xf32>
    %262 = vector.shape_cast %261 : vector<1x1x32xf32> to vector<1x32xf32>
    %263 = vector.broadcast %262 : vector<1x32xf32> to vector<17x32xf32>
    %264 = arith.addf %260, %263 : vector<17x32xf32>
    %265 = vector.extract_strided_slice %264 {offsets = [0, 0], sizes = [1, 32], strides = [1, 1]} : vector<17x32xf32> to vector<1x32xf32>
    %cst_109 = arith.constant dense<0.000000e+00> : vector<1xf32>
    %266 = vector.multi_reduction <add>, %265, %cst_109 [1] : vector<1x32xf32> to vector<1xf32>
    %267 = vector.shape_cast %266 : vector<1xf32> to vector<1x1xf32>
    %cst_110 = arith.constant 3.200000e+01 : f32
    %268 = vector.broadcast %cst_110 : f32 to vector<1x1xf32>
    %269 = arith.divf %267, %268 : vector<1x1xf32>
    %270 = vector.broadcast %269 : vector<1x1xf32> to vector<1x32xf32>
    %271 = arith.subf %265, %270 : vector<1x32xf32>
    %272 = arith.mulf %271, %271 : vector<1x32xf32>
    %cst_111 = arith.constant dense<0.000000e+00> : vector<1xf32>
    %273 = vector.multi_reduction <add>, %272, %cst_111 [1] : vector<1x32xf32> to vector<1xf32>
    %274 = vector.shape_cast %273 : vector<1xf32> to vector<1x1xf32>
    %cst_112 = arith.constant 3.200000e+01 : f32
    %275 = vector.broadcast %cst_112 : f32 to vector<1x1xf32>
    %276 = arith.divf %274, %275 : vector<1x1xf32>
    %cst_113 = arith.constant 9.99999997E-7 : f32
    %277 = vector.broadcast %cst_113 : f32 to vector<1x1xf32>
    %278 = arith.addf %276, %277 : vector<1x1xf32>
    %279 = math.rsqrt %278 : vector<1x1xf32>
    %280 = vector.broadcast %279 : vector<1x1xf32> to vector<1x32xf32>
    %281 = arith.mulf %271, %280 : vector<1x32xf32>
    %c0_114 = arith.constant 0 : index
    %c0_115 = arith.constant 0 : index
    %282 = vector.load %arg15[%c0_114, %c0_115] : memref<32x128xf32, #tpu.memory_space<vmem>>, vector<32x128xf32>
    %cst_116 = arith.constant dense<0.000000e+00> : vector<1x128xf32>
    %283 = tpu.matmul %281, %282, %cst_116 {dimension_numbers = #tpu.dot_dimension_numbers<[1], [0], [0], [1], [0, 0, 1, 1], [], []>} : vector<1x32xf32>, vector<32x128xf32>, vector<1x128xf32> -> vector<1x128xf32>
    %c0_117 = arith.constant 0 : index
    %c0_118 = arith.constant 0 : index
    %284 = vector.load %arg16[%c0_117, %c0_118] : memref<1x128xf32, #tpu.memory_space<vmem>>, vector<1x128xf32>
    %285 = arith.addf %283, %284 : vector<1x128xf32>
    %c0_119 = arith.constant 0 : index
    %c0_120 = arith.constant 0 : index
    %c0_121 = arith.constant 0 : index
    %286 = vector.load %arg17[%c0_119, %c0_120, %c0_121] : memref<1x1x128xf32, #tpu.memory_space<vmem>>, vector<1x1x128xf32>
    %287 = vector.shape_cast %286 : vector<1x1x128xf32> to vector<1x128xf32>
    %288 = vector.shape_cast %285 : vector<1x128xf32> to vector<1x1x128xf32>
    tpu.vector_store %arg17[%c0_119, %c0_120, %c0_121], %288 {strides = array<i32>} : memref<1x1x128xf32, #tpu.memory_space<vmem>>, vector<1x1x128xf32>,
    return
  }
  func.func @transform_0(%arg0: i32) -> (i32, i32, i32) {
    %c0_i32 = arith.constant 0 : i32
    %c0_i32_0 = arith.constant 0 : i32
    %c0_i32_1 = arith.constant 0 : i32
    return %arg0, %c0_i32, %c0_i32_0 : i32, i32, i32
  }
  func.func @transform_1(%arg0: i32) -> (i32, i32) {
    %c0_i32 = arith.constant 0 : i32
    %c0_i32_0 = arith.constant 0 : i32
    %c0_i32_1 = arith.constant 0 : i32
    return %c0_i32, %c0_i32_0 : i32, i32
  }
  func.func @transform_2(%arg0: i32) -> (i32, i32) {
    %c0_i32 = arith.constant 0 : i32
    %c0_i32_0 = arith.constant 0 : i32
    %c0_i32_1 = arith.constant 0 : i32
    return %c0_i32, %c0_i32_0 : i32, i32
  }
  func.func @transform_3(%arg0: i32) -> (i32, i32) {
    %c0_i32 = arith.constant 0 : i32
    %c0_i32_0 = arith.constant 0 : i32
    %c0_i32_1 = arith.constant 0 : i32
    return %c0_i32, %c0_i32_0 : i32, i32
  }
  func.func @transform_4(%arg0: i32) -> (i32, i32) {
    %c0_i32 = arith.constant 0 : i32
    %c0_i32_0 = arith.constant 0 : i32
    %c0_i32_1 = arith.constant 0 : i32
    return %c0_i32, %c0_i32_0 : i32, i32
  }
  func.func @transform_5(%arg0: i32) -> (i32, i32) {
    %c0_i32 = arith.constant 0 : i32
    %c0_i32_0 = arith.constant 0 : i32
    %c0_i32_1 = arith.constant 0 : i32
    return %c0_i32, %c0_i32_0 : i32, i32
  }
  func.func @transform_6(%arg0: i32) -> (i32, i32, i32) {
    %c0_i32 = arith.constant 0 : i32
    %c0_i32_0 = arith.constant 0 : i32
    %c0_i32_1 = arith.constant 0 : i32
    %c0_i32_2 = arith.constant 0 : i32
    return %c0_i32, %c0_i32_0, %c0_i32_1 : i32, i32, i32
  }
  func.func @transform_7(%arg0: i32) -> (i32, i32, i32) {
    %c0_i32 = arith.constant 0 : i32
    %c0_i32_0 = arith.constant 0 : i32
    %c0_i32_1 = arith.constant 0 : i32
    %c0_i32_2 = arith.constant 0 : i32
    return %c0_i32, %c0_i32_0, %c0_i32_1 : i32, i32, i32
  }
  func.func @transform_8(%arg0: i32) -> (i32, i32, i32) {
    %c0_i32 = arith.constant 0 : i32
    %c0_i32_0 = arith.constant 0 : i32
    %c0_i32_1 = arith.constant 0 : i32
    %c0_i32_2 = arith.constant 0 : i32
    return %c0_i32, %c0_i32_0, %c0_i32_1 : i32, i32, i32
  }
  func.func @transform_9(%arg0: i32) -> (i32, i32, i32) {
    %c0_i32 = arith.constant 0 : i32
    %c0_i32_0 = arith.constant 0 : i32
    %c0_i32_1 = arith.constant 0 : i32
    %c0_i32_2 = arith.constant 0 : i32
    return %c0_i32, %c0_i32_0, %c0_i32_1 : i32, i32, i32
  }
  func.func @transform_10(%arg0: i32) -> (i32, i32, i32) {
    %c0_i32 = arith.constant 0 : i32
    %c0_i32_0 = arith.constant 0 : i32
    %c0_i32_1 = arith.constant 0 : i32
    %c0_i32_2 = arith.constant 0 : i32
    return %c0_i32, %c0_i32_0, %c0_i32_1 : i32, i32, i32
  }
  func.func @transform_11(%arg0: i32) -> (i32, i32, i32) {
    %c0_i32 = arith.constant 0 : i32
    %c0_i32_0 = arith.constant 0 : i32
    %c0_i32_1 = arith.constant 0 : i32
    %c0_i32_2 = arith.constant 0 : i32
    return %c0_i32, %c0_i32_0, %c0_i32_1 : i32, i32, i32
  }
  func.func @transform_12(%arg0: i32) -> (i32, i32, i32) {
    %c0_i32 = arith.constant 0 : i32
    %c0_i32_0 = arith.constant 0 : i32
    %c0_i32_1 = arith.constant 0 : i32
    %c0_i32_2 = arith.constant 0 : i32
    return %c0_i32, %c0_i32_0, %c0_i32_1 : i32, i32, i32
  }
  func.func @transform_13(%arg0: i32) -> (i32, i32, i32) {
    %c0_i32 = arith.constant 0 : i32
    %c0_i32_0 = arith.constant 0 : i32
    %c0_i32_1 = arith.constant 0 : i32
    %c0_i32_2 = arith.constant 0 : i32
    return %c0_i32, %c0_i32_0, %c0_i32_1 : i32, i32, i32
  }
  func.func @transform_14(%arg0: i32) -> (i32, i32) {
    %c0_i32 = arith.constant 0 : i32
    %c0_i32_0 = arith.constant 0 : i32
    %c0_i32_1 = arith.constant 0 : i32
    return %c0_i32, %c0_i32_0 : i32, i32
  }
  func.func @transform_15(%arg0: i32) -> (i32, i32) {
    %c0_i32 = arith.constant 0 : i32
    %c0_i32_0 = arith.constant 0 : i32
    %c0_i32_1 = arith.constant 0 : i32
    return %c0_i32, %c0_i32_0 : i32, i32
  }
  func.func @transform_16(%arg0: i32) -> (i32, i32, i32) {
    %c0_i32 = arith.constant 0 : i32
    %c0_i32_0 = arith.constant 0 : i32
    %c0_i32_1 = arith.constant 0 : i32
    return %arg0, %c0_i32, %c0_i32_0 : i32, i32, i32
  }
}

</mosaic_0001>

<llo_original>
// kernel: mul.46
$region0: #{mul.46}
  #allocation0 [shape = 's32[1]{0}', space=sflag, size = 0x4, scoped, tag = 'scoped memory for mul.46']
  %s0 = inlined_call_operand.vmem [shape: f32[2,1,32], index: 0, kind: input, shape index: {}]
  %s1 = inlined_call_operand.vmem [shape: f32[2,1,32], index: 1, kind: input, shape index: {}]
  %s2 = inlined_call_operand.vmem [shape: f32[2,1,32], index: 2, kind: output, shape index: {}]
  %v3 = vld [vmem:[%s0] sm:$0x1]
  %v4 = vld [vmem:[%s1] sm:$0x1]
  %5 = xla_tuple %v3, %v4
  %6 = xla_tuple %5
  %v7 = vmul.f32 %v3, %v4
  %8 = xla_tuple %v7
  %9 = vst [vmem:[%s2] sm:$0x1] %v7
  %s10 = scalar_lea.vmem %s0, 1
  %v11 = vld [vmem:[%s10] sm:$0x1]
  %s12 = scalar_lea.vmem %s1, 1
  %v13 = vld [vmem:[%s12] sm:$0x1]
  %14 = xla_tuple %v11, %v13
  %15 = xla_tuple %14
  %v16 = vmul.f32 %v11, %v13
  %17 = xla_tuple %v16
  %s18 = scalar_lea.vmem %s2, 1
  %19 = vst [vmem:[%s18] sm:$0x1] %v16

// kernel: rope_vit_forward.1
$region0: #{rope_vit_forward.1}
  #allocation0 [shape = 'u32[]', space=smem, size = 0x4, offset = 0x4, fixed_abs, tag = 'smem constant byte address 0x4 - core index']
  #allocation1 [shape = 'u32[144,128]{1,0:T(1,128)}', space=vmem, size = 0x12000, scoped, tag = 'internal scratch']
  %s0 = inlined_call_operand.vmem [shape: f32[2,17,64], index: 0, kind: input, shape index: {}]
  %s1 = inlined_call_operand.vmem [shape: f32[64,32], index: 1, kind: input, shape index: {}]
  %s2 = inlined_call_operand.vmem [shape: f32[17,32], index: 2, kind: input, shape index: {}]
  %s3 = inlined_call_operand.vmem [shape: f32[17,32], index: 3, kind: input, shape index: {}]
  %s4 = inlined_call_operand.vmem [shape: f32[17,32], index: 4, kind: input, shape index: {}]
  %s5 = inlined_call_operand.vmem [shape: f32[17,32], index: 5, kind: input, shape index: {}]
  %s6 = inlined_call_operand.vmem [shape: f32[2,32,96], index: 6, kind: input, shape index: {}]
  %s7 = inlined_call_operand.vmem [shape: f32[2,1,96], index: 7, kind: input, shape index: {}]
  %s8 = inlined_call_operand.vmem [shape: f32[2,32,32], index: 8, kind: input, shape index: {}]
  %s9 = inlined_call_operand.vmem [shape: f32[2,1,32], index: 9, kind: input, shape index: {}]
  %s10 = inlined_call_operand.vmem [shape: f32[2,32,128], index: 10, kind: input, shape index: {}]
  %s11 = inlined_call_operand.vmem [shape: f32[2,1,128], index: 11, kind: input, shape index: {}]
  %s12 = inlined_call_operand.vmem [shape: f32[2,128,32], index: 12, kind: input, shape index: {}]
  %s13 = inlined_call_operand.vmem [shape: f32[2,1,32], index: 13, kind: input, shape index: {}]
  %s14 = inlined_call_operand.vmem [shape: f32[32,128], index: 14, kind: input, shape index: {}]
  %s15 = inlined_call_operand.vmem [shape: f32[1,128], index: 15, kind: input, shape index: {}]
  %s16 = inlined_call_operand.hbm [shape: f32[2,1,128], index: 16, kind: output, shape index: {}]
  %s17 = sld [smem:[#allocation0]]
  $region97: #{rope_vit_forward.1} parent=0
    _
  %s19 = ssub.s32 1, %s17
  %s20 = scalar_select 0, %s19, %s17
  $region1: #{rope_vit_forward.1} parent=0
    #allocation2 [shape = 'u8[1024]{0}', space=vmem, size = 0x400, scoped, tag = 'output window, operand 0']
    #allocation3 [shape = 's32[2]{0}', space=sflag, size = 0x8, scoped, tag = 'scoped memory for rope_vit_forward.1']
    %21 = vsyncpa [#allocation3], 0
    %s22 = scalar_lea.sflag [#allocation3], 1
    %23 = vsyncpa %s22, 0
    loop: start=0, step=1, limit=4
    $region2: #{rope_vit_forward.1} parent=1 // loop_pre_header
      _
    $region3: #{rope_vit_forward.1} parent=1 // loop_header
      %s25 = sphi 0, %s29
      %p26 = scmp.ge.s32.totalorder %s25, 4
      %s35 = sphi 0, %s37
      %s38 = sphi 0, %s35
      %s39 = sphi 0, %s38
      %s55 = sphi 0, %s39
      %s59 = sphi 0, %s59
      %s61 = sphi 0, %s59
      %s62 = sphi 0, %s61
      %s76 = sphi 0, %s62
      %s80 = sphi 0, %s80
      %s82 = sphi 0, %s80
      %s83 = sphi 0, %s82
      %s97 = sphi 0, %s83
      %s101 = sphi 0, %s101
      %s103 = sphi 0, %s101
      %s104 = sphi 0, %s103
      %s118 = sphi 0, %s104
      %s122 = sphi 0, %s122
      %s124 = sphi 0, %s122
      %s125 = sphi 0, %s124
      %s139 = sphi 0, %s125
      %s143 = sphi 0, %s143
      %s145 = sphi 0, %s143
      %s146 = sphi 0, %s145
      %s160 = sphi 0, %s146
      %s164 = sphi 0, %s164
      %s166 = sphi 0, %s164
      %s167 = sphi 0, %s166
      %s181 = sphi 0, %s167
      %s185 = sphi 0, %s185
      %s187 = sphi 0, %s185
      %s188 = sphi 0, %s187
      %s202 = sphi 0, %s188
      %s206 = sphi 0, %s206
      %s208 = sphi 0, %s206
      %s209 = sphi 0, %s208
      %s223 = sphi 0, %s209
      %s227 = sphi 0, %s227
      %s229 = sphi 0, %s227
      %s230 = sphi 0, %s229
      %s244 = sphi 0, %s230
      %s248 = sphi 0, %s248
      %s250 = sphi 0, %s248
      %s251 = sphi 0, %s250
      %s265 = sphi 0, %s251
      %s269 = sphi 0, %s269
      %s271 = sphi 0, %s269
      %s272 = sphi 0, %s271
      %s286 = sphi 0, %s272
      %s290 = sphi 0, %s290
      %s292 = sphi 0, %s290
      %s293 = sphi 0, %s292
      %s307 = sphi 0, %s293
      %s311 = sphi 0, %s311
      %s313 = sphi 0, %s311
      %s314 = sphi 0, %s313
      %s328 = sphi 0, %s314
      %s332 = sphi 0, %s332
      %s334 = sphi 0, %s332
      %s335 = sphi 0, %s334
      %s349 = sphi 0, %s335
      %s353 = sphi 0, %s353
      %s355 = sphi 0, %s353
      %s356 = sphi 0, %s355
      %s370 = sphi 0, %s356
      %s376 = sphi 0, %s378
      %s379 = sphi 0, %s376
      %s380 = sphi 0, %s379
      %s396 = sphi 0, %s380
    $region4: #{rope_vit_forward.1} parent=1 // loop_header_branch
      %28 = sbr.rel (%p26) target = $region8
    $region5: #{rope_vit_forward.1} parent=1 // loop_body
      %s30 = ssub.s32 %s25, 1
      %s31 = ssub.s32 %s25, 2
      %s32 = sadd.s32 %s25, 1
      %s33 = ssub.s32 %s25, %s32
      %p34 = scmp.eq.s32.totalorder %s33, 0
      %s36 = sadd.s32 %s35, 1
      %s37 = scalar_select %p34, %s35, %s36
      %p40 = pneg %p34
      %p41 = scmp.eq.s32.totalorder %s25, 1
      %p42 = por %p40, %p41
      %p43 = scmp.ne.s32.totalorder %s35, %s38
      %p44 = scmp.eq.s32.totalorder %s25, 0
      %p45 = por %p43, %p44
      %p46 = scmp.ne.s32.totalorder %s35, %s38
      %p47 = scmp.eq.s32.totalorder %s30, 1
      %p48 = por %p46, %p47
      %p49 = scmp.ne.s32.totalorder %s38, %s39
      %p50 = scmp.eq.s32.totalorder %s30, 0
      %p51 = por %p49, %p50
      %p52 = scmp.ne.s32.totalorder %s38, %s39
      %p53 = scmp.eq.s32.totalorder %s31, 1
      %p54 = por %p52, %p53
      %p56 = scmp.ne.s32.totalorder %s39, %s55
      %p57 = scmp.eq.s32.totalorder %s31, 0
      %p58 = por %p56, %p57
      %s60 = sadd.s32 %s59, 1
      %p63 = scmp.eq.s32.totalorder %s25, 1
      %p64 = scmp.ne.s32.totalorder %s59, %s61
      %p65 = scmp.eq.s32.totalorder %s25, 0
      %p66 = por %p64, %p65
      %p67 = scmp.ne.s32.totalorder %s59, %s61
      %p68 = scmp.eq.s32.totalorder %s30, 1
      %p69 = por %p67, %p68
      %p70 = scmp.ne.s32.totalorder %s61, %s62
      %p71 = scmp.eq.s32.totalorder %s30, 0
      %p72 = por %p70, %p71
      %p73 = scmp.ne.s32.totalorder %s61, %s62
      %p74 = scmp.eq.s32.totalorder %s31, 1
      %p75 = por %p73, %p74
      %p77 = scmp.ne.s32.totalorder %s62, %s76
      %p78 = scmp.eq.s32.totalorder %s31, 0
      %p79 = por %p77, %p78
      %s81 = sadd.s32 %s80, 1
      %p84 = scmp.eq.s32.totalorder %s25, 1
      %p85 = scmp.ne.s32.totalorder %s80, %s82
      %p86 = scmp.eq.s32.totalorder %s25, 0
      %p87 = por %p85, %p86
      %p88 = scmp.ne.s32.totalorder %s80, %s82
      %p89 = scmp.eq.s32.totalorder %s30, 1
      %p90 = por %p88, %p89
      %p91 = scmp.ne.s32.totalorder %s82, %s83
      %p92 = scmp.eq.s32.totalorder %s30, 0
      %p93 = por %p91, %p92
      %p94 = scmp.ne.s32.totalorder %s82, %s83
      %p95 = scmp.eq.s32.totalorder %s31, 1
      %p96 = por %p94, %p95
      %p98 = scmp.ne.s32.totalorder %s83, %s97
      %p99 = scmp.eq.s32.totalorder %s31, 0
      %p100 = por %p98, %p99
      %s102 = sadd.s32 %s101, 1
      %p105 = scmp.eq.s32.totalorder %s25, 1
      %p106 = scmp.ne.s32.totalorder %s101, %s103
      %p107 = scmp.eq.s32.totalorder %s25, 0
      %p108 = por %p106, %p107
      %p109 = scmp.ne.s32.totalorder %s101, %s103
      %p110 = scmp.eq.s32.totalorder %s30, 1
      %p111 = por %p109, %p110
      %p112 = scmp.ne.s32.totalorder %s103, %s104
      %p113 = scmp.eq.s32.totalorder %s30, 0
      %p114 = por %p112, %p113
      %p115 = scmp.ne.s32.totalorder %s103, %s104
      %p116 = scmp.eq.s32.totalorder %s31, 1
      %p117 = por %p115, %p116
      %p119 = scmp.ne.s32.totalorder %s104, %s118
      %p120 = scmp.eq.s32.totalorder %s31, 0
      %p121 = por %p119, %p120
      %s123 = sadd.s32 %s122, 1
      %p126 = scmp.eq.s32.totalorder %s25, 1
      %p127 = scmp.ne.s32.totalorder %s122, %s124
      %p128 = scmp.eq.s32.totalorder %s25, 0
      %p129 = por %p127, %p128
      %p130 = scmp.ne.s32.totalorder %s122, %s124
      %p131 = scmp.eq.s32.totalorder %s30, 1
      %p132 = por %p130, %p131
      %p133 = scmp.ne.s32.totalorder %s124, %s125
      %p134 = scmp.eq.s32.totalorder %s30, 0
      %p135 = por %p133, %p134
      %p136 = scmp.ne.s32.totalorder %s124, %s125
      %p137 = scmp.eq.s32.totalorder %s31, 1
      %p138 = por %p136, %p137
      %p140 = scmp.ne.s32.totalorder %s125, %s139
      %p141 = scmp.eq.s32.totalorder %s31, 0
      %p142 = por %p140, %p141
      %s144 = sadd.s32 %s143, 1
      %p147 = scmp.eq.s32.totalorder %s25, 1
      %p148 = scmp.ne.s32.totalorder %s143, %s145
      %p149 = scmp.eq.s32.totalorder %s25, 0
      %p150 = por %p148, %p149
      %p151 = scmp.ne.s32.totalorder %s143, %s145
      %p152 = scmp.eq.s32.totalorder %s30, 1
      %p153 = por %p151, %p152
      %p154 = scmp.ne.s32.totalorder %s145, %s146
      %p155 = scmp.eq.s32.totalorder %s30, 0
      %p156 = por %p154, %p155
      %p157 = scmp.ne.s32.totalorder %s145, %s146
      %p158 = scmp.eq.s32.totalorder %s31, 1
      %p159 = por %p157, %p158
      %p161 = scmp.ne.s32.totalorder %s146, %s160
      %p162 = scmp.eq.s32.totalorder %s31, 0
      %p163 = por %p161, %p162
      %s165 = sadd.s32 %s164, 1
      %p168 = scmp.eq.s32.totalorder %s25, 1
      %p169 = scmp.ne.s32.totalorder %s164, %s166
      %p170 = scmp.eq.s32.totalorder %s25, 0
      %p171 = por %p169, %p170
      %p172 = scmp.ne.s32.totalorder %s164, %s166
      %p173 = scmp.eq.s32.totalorder %s30, 1
      %p174 = por %p172, %p173
      %p175 = scmp.ne.s32.totalorder %s166, %s167
      %p176 = scmp.eq.s32.totalorder %s30, 0
      %p177 = por %p175, %p176
      %p178 = scmp.ne.s32.totalorder %s166, %s167
      %p179 = scmp.eq.s32.totalorder %s31, 1
      %p180 = por %p178, %p179
      %p182 = scmp.ne.s32.totalorder %s167, %s181
      %p183 = scmp.eq.s32.totalorder %s31, 0
      %p184 = por %p182, %p183
      %s186 = sadd.s32 %s185, 1
      %p189 = scmp.eq.s32.totalorder %s25, 1
      %p190 = scmp.ne.s32.totalorder %s185, %s187
      %p191 = scmp.eq.s32.totalorder %s25, 0
      %p192 = por %p190, %p191
      %p193 = scmp.ne.s32.totalorder %s185, %s187
      %p194 = scmp.eq.s32.totalorder %s30, 1
      %p195 = por %p193, %p194
      %p196 = scmp.ne.s32.totalorder %s187, %s188
      %p197 = scmp.eq.s32.totalorder %s30, 0
      %p198 = por %p196, %p197
      %p199 = scmp.ne.s32.totalorder %s187, %s188
      %p200 = scmp.eq.s32.totalorder %s31, 1
      %p201 = por %p199, %p200
      %p203 = scmp.ne.s32.totalorder %s188, %s202
      %p204 = scmp.eq.s32.totalorder %s31, 0
      %p205 = por %p203, %p204
      %s207 = sadd.s32 %s206, 1
      %p210 = scmp.eq.s32.totalorder %s25, 1
      %p211 = scmp.ne.s32.totalorder %s206, %s208
      %p212 = scmp.eq.s32.totalorder %s25, 0
      %p213 = por %p211, %p212
      %p214 = scmp.ne.s32.totalorder %s206, %s208
      %p215 = scmp.eq.s32.totalorder %s30, 1
      %p216 = por %p214, %p215
      %p217 = scmp.ne.s32.totalorder %s208, %s209
      %p218 = scmp.eq.s32.totalorder %s30, 0
      %p219 = por %p217, %p218
      %p220 = scmp.ne.s32.totalorder %s208, %s209
      %p221 = scmp.eq.s32.totalorder %s31, 1
      %p222 = por %p220, %p221
      %p224 = scmp.ne.s32.totalorder %s209, %s223
      %p225 = scmp.eq.s32.totalorder %s31, 0
      %p226 = por %p224, %p225
      %s228 = sadd.s32 %s227, 1
      %p231 = scmp.eq.s32.totalorder %s25, 1
      %p232 = scmp.ne.s32.totalorder %s227, %s229
      %p233 = scmp.eq.s32.totalorder %s25, 0
      %p234 = por %p232, %p233
      %p235 = scmp.ne.s32.totalorder %s227, %s229
      %p236 = scmp.eq.s32.totalorder %s30, 1
      %p237 = por %p235, %p236
      %p238 = scmp.ne.s32.totalorder %s229, %s230
      %p239 = scmp.eq.s32.totalorder %s30, 0
      %p240 = por %p238, %p239
      %p241 = scmp.ne.s32.totalorder %s229, %s230
      %p242 = scmp.eq.s32.totalorder %s31, 1
      %p243 = por %p241, %p242
      %p245 = scmp.ne.s32.totalorder %s230, %s244
      %p246 = scmp.eq.s32.totalorder %s31, 0
      %p247 = por %p245, %p246
      %s249 = sadd.s32 %s248, 1
      %p252 = scmp.eq.s32.totalorder %s25, 1
      %p253 = scmp.ne.s32.totalorder %s248, %s250
      %p254 = scmp.eq.s32.totalorder %s25, 0
      %p255 = por %p253, %p254
      %p256 = scmp.ne.s32.totalorder %s248, %s250
      %p257 = scmp.eq.s32.totalorder %s30, 1
      %p258 = por %p256, %p257
      %p259 = scmp.ne.s32.totalorder %s250, %s251
      %p260 = scmp.eq.s32.totalorder %s30, 0
      %p261 = por %p259, %p260
      %p262 = scmp.ne.s32.totalorder %s250, %s251
      %p263 = scmp.eq.s32.totalorder %s31, 1
      %p264 = por %p262, %p263
      %p266 = scmp.ne.s32.totalorder %s251, %s265
      %p267 = scmp.eq.s32.totalorder %s31, 0
      %p268 = por %p266, %p267
      %s270 = sadd.s32 %s269, 1
      %p273 = scmp.eq.s32.totalorder %s25, 1
      %p274 = scmp.ne.s32.totalorder %s269, %s271
      %p275 = scmp.eq.s32.totalorder %s25, 0
      %p276 = por %p274, %p275
      %p277 = scmp.ne.s32.totalorder %s269, %s271
      %p278 = scmp.eq.s32.totalorder %s30, 1
      %p279 = por %p277, %p278
      %p280 = scmp.ne.s32.totalorder %s271, %s272
      %p281 = scmp.eq.s32.totalorder %s30, 0
      %p282 = por %p280, %p281
      %p283 = scmp.ne.s32.totalorder %s271, %s272
      %p284 = scmp.eq.s32.totalorder %s31, 1
      %p285 = por %p283, %p284
      %p287 = scmp.ne.s32.totalorder %s272, %s286
      %p288 = scmp.eq.s32.totalorder %s31, 0
      %p289 = por %p287, %p288
      %s291 = sadd.s32 %s290, 1
      %p294 = scmp.eq.s32.totalorder %s25, 1
      %p295 = scmp.ne.s32.totalorder %s290, %s292
      %p296 = scmp.eq.s32.totalorder %s25, 0
      %p297 = por %p295, %p296
      %p298 = scmp.ne.s32.totalorder %s290, %s292
      %p299 = scmp.eq.s32.totalorder %s30, 1
      %p300 = por %p298, %p299
      %p301 = scmp.ne.s32.totalorder %s292, %s293
      %p302 = scmp.eq.s32.totalorder %s30, 0
      %p303 = por %p301, %p302
      %p304 = scmp.ne.s32.totalorder %s292, %s293
      %p305 = scmp.eq.s32.totalorder %s31, 1
      %p306 = por %p304, %p305
      %p308 = scmp.ne.s32.totalorder %s293, %s307
      %p309 = scmp.eq.s32.totalorder %s31, 0
      %p310 = por %p308, %p309
      %s312 = sadd.s32 %s311, 1
      %p315 = scmp.eq.s32.totalorder %s25, 1
      %p316 = scmp.ne.s32.totalorder %s311, %s313
      %p317 = scmp.eq.s32.totalorder %s25, 0
      %p318 = por %p316, %p317
      %p319 = scmp.ne.s32.totalorder %s311, %s313
      %p320 = scmp.eq.s32.totalorder %s30, 1
      %p321 = por %p319, %p320
      %p322 = scmp.ne.s32.totalorder %s313, %s314
      %p323 = scmp.eq.s32.totalorder %s30, 0
      %p324 = por %p322, %p323
      %p325 = scmp.ne.s32.totalorder %s313, %s314
      %p326 = scmp.eq.s32.totalorder %s31, 1
      %p327 = por %p325, %p326
      %p329 = scmp.ne.s32.totalorder %s314, %s328
      %p330 = scmp.eq.s32.totalorder %s31, 0
      %p331 = por %p329, %p330
      %s333 = sadd.s32 %s332, 1
      %p336 = scmp.eq.s32.totalorder %s25, 1
      %p337 = scmp.ne.s32.totalorder %s332, %s334
      %p338 = scmp.eq.s32.totalorder %s25, 0
      %p339 = por %p337, %p338
      %p340 = scmp.ne.s32.totalorder %s332, %s334
      %p341 = scmp.eq.s32.totalorder %s30, 1
      %p342 = por %p340, %p341
      %p343 = scmp.ne.s32.totalorder %s334, %s335
      %p344 = scmp.eq.s32.totalorder %s30, 0
      %p345 = por %p343, %p344
      %p346 = scmp.ne.s32.totalorder %s334, %s335
      %p347 = scmp.eq.s32.totalorder %s31, 1
      %p348 = por %p346, %p347
      %p350 = scmp.ne.s32.totalorder %s335, %s349
      %p351 = scmp.eq.s32.totalorder %s31, 0
      %p352 = por %p350, %p351
      %s354 = sadd.s32 %s353, 1
      %p357 = scmp.eq.s32.totalorder %s25, 1
      %p358 = scmp.ne.s32.totalorder %s353, %s355
      %p359 = scmp.eq.s32.totalorder %s25, 0
      %p360 = por %p358, %p359
      %p361 = scmp.ne.s32.totalorder %s353, %s355
      %p362 = scmp.eq.s32.totalorder %s30, 1
      %p363 = por %p361, %p362
      %p364 = scmp.ne.s32.totalorder %s355, %s356
      %p365 = scmp.eq.s32.totalorder %s30, 0
      %p366 = por %p364, %p365
      %p367 = scmp.ne.s32.totalorder %s355, %s356
      %p368 = scmp.eq.s32.totalorder %s31, 1
      %p369 = por %p367, %p368
      %p371 = scmp.ne.s32.totalorder %s356, %s370
      %p372 = scmp.eq.s32.totalorder %s31, 0
      %p373 = por %p371, %p372
      %s374 = ssub.s32 %s25, %s32
      %p375 = scmp.eq.s32.totalorder %s374, 0
      %s377 = sadd.s32 %s376, 1
      %s378 = scalar_select %p375, %s376, %s377
      %p381 = pneg %p375
      %p382 = scmp.eq.s32.totalorder %s25, 1
      %p383 = por %p381, %p382
      %p384 = scmp.ne.s32.totalorder %s376, %s379
      %p385 = scmp.eq.s32.totalorder %s25, 0
      %p386 = por %p384, %p385
      %p387 = scmp.ne.s32.totalorder %s376, %s379
      %p388 = scmp.eq.s32.totalorder %s30, 1
      %p389 = por %p387, %p388
      %p390 = scmp.ne.s32.totalorder %s379, %s380
      %p391 = scmp.eq.s32.totalorder %s30, 0
      %p392 = por %p390, %p391
      %p393 = scmp.ne.s32.totalorder %s379, %s380
      %p394 = scmp.eq.s32.totalorder %s31, 1
      %p395 = por %p393, %p394
      %p397 = scmp.ne.s32.totalorder %s380, %s396
      %p398 = scmp.eq.s32.totalorder %s31, 0
      %p399 = por %p397, %p398
      %p400 = scmp.le.s32.totalorder 1, %s25
      %p401 = scmp.lt.s32.totalorder %s25, 3
      %p402 = pnand %p400, %p401
      %p403 = pneg %p402
      // Predicated region
      $region9: #{rope_vit_forward.1} parent=5 // pred_check
        _
      $region10: #{rope_vit_forward.1} parent=5 // pred_check_branch
        %405 = sbr.rel (%p402) target = $region12
      $region11: #{rope_vit_forward.1} parent=5 // pred_region
        %s406 = ssub.s32 %s25, 1
        // Predicated region
        $region13: #{rope_vit_forward.1} parent=11 // pred_check
          %p407 = pneg %p72
        $region14: #{rope_vit_forward.1} parent=11 // pred_check_branch
          %409 = sbr.rel (%p407) target = $region16
        $region15: #{rope_vit_forward.1} parent=11 // pred_region
          _
        $region16: #{rope_vit_forward.1} parent=11 // pred_fallthru
          _
        // Predicated region
        $region17: #{rope_vit_forward.1} parent=11 // pred_check
          %p410 = pneg %p93
        $region18: #{rope_vit_forward.1} parent=11 // pred_check_branch
          %412 = sbr.rel (%p410) target = $region20
        $region19: #{rope_vit_forward.1} parent=11 // pred_region
          _
        $region20: #{rope_vit_forward.1} parent=11 // pred_fallthru
          _
        // Predicated region
        $region21: #{rope_vit_forward.1} parent=11 // pred_check
          %p413 = pneg %p114
        $region22: #{rope_vit_forward.1} parent=11 // pred_check_branch
          %415 = sbr.rel (%p413) target = $region24
        $region23: #{rope_vit_forward.1} parent=11 // pred_region
          _
        $region24: #{rope_vit_forward.1} parent=11 // pred_fallthru
          _
        // Predicated region
        $region25: #{rope_vit_forward.1} parent=11 // pred_check
          %p416 = pneg %p135
        $region26: #{rope_vit_forward.1} parent=11 // pred_check_branch
          %418 = sbr.rel (%p416) target = $region28
        $region27: #{rope_vit_forward.1} parent=11 // pred_region
          _
        $region28: #{rope_vit_forward.1} parent=11 // pred_fallthru
          _
        // Predicated region
        $region29: #{rope_vit_forward.1} parent=11 // pred_check
          %p419 = pneg %p156
        $region30: #{rope_vit_forward.1} parent=11 // pred_check_branch
          %421 = sbr.rel (%p419) target = $region32
        $region31: #{rope_vit_forward.1} parent=11 // pred_region
          _
        $region32: #{rope_vit_forward.1} parent=11 // pred_fallthru
          _
        // Predicated region
        $region33: #{rope_vit_forward.1} parent=11 // pred_check
          %p422 = pneg %p177
        $region34: #{rope_vit_forward.1} parent=11 // pred_check_branch
          %424 = sbr.rel (%p422) target = $region36
        $region35: #{rope_vit_forward.1} parent=11 // pred_region
          _
        $region36: #{rope_vit_forward.1} parent=11 // pred_fallthru
          _
        // Predicated region
        $region37: #{rope_vit_forward.1} parent=11 // pred_check
          %p425 = pneg %p198
        $region38: #{rope_vit_forward.1} parent=11 // pred_check_branch
          %427 = sbr.rel (%p425) target = $region40
        $region39: #{rope_vit_forward.1} parent=11 // pred_region
          _
        $region40: #{rope_vit_forward.1} parent=11 // pred_fallthru
          _
        // Predicated region
        $region41: #{rope_vit_forward.1} parent=11 // pred_check
          %p428 = pneg %p219
        $region42: #{rope_vit_forward.1} parent=11 // pred_check_branch
          %430 = sbr.rel (%p428) target = $region44
        $region43: #{rope_vit_forward.1} parent=11 // pred_region
          _
        $region44: #{rope_vit_forward.1} parent=11 // pred_fallthru
          _
        // Predicated region
        $region45: #{rope_vit_forward.1} parent=11 // pred_check
          %p431 = pneg %p240
        $region46: #{rope_vit_forward.1} parent=11 // pred_check_branch
          %433 = sbr.rel (%p431) target = $region48
        $region47: #{rope_vit_forward.1} parent=11 // pred_region
          _
        $region48: #{rope_vit_forward.1} parent=11 // pred_fallthru
          _
        // Predicated region
        $region49: #{rope_vit_forward.1} parent=11 // pred_check
          %p434 = pneg %p261
        $region50: #{rope_vit_forward.1} parent=11 // pred_check_branch
          %436 = sbr.rel (%p434) target = $region52
        $region51: #{rope_vit_forward.1} parent=11 // pred_region
          _
        $region52: #{rope_vit_forward.1} parent=11 // pred_fallthru
          _
        // Predicated region
        $region53: #{rope_vit_forward.1} parent=11 // pred_check
          %p437 = pneg %p282
        $region54: #{rope_vit_forward.1} parent=11 // pred_check_branch
          %439 = sbr.rel (%p437) target = $region56
        $region55: #{rope_vit_forward.1} parent=11 // pred_region
          _
        $region56: #{rope_vit_forward.1} parent=11 // pred_fallthru
          _
        // Predicated region
        $region57: #{rope_vit_forward.1} parent=11 // pred_check
          %p440 = pneg %p303
        $region58: #{rope_vit_forward.1} parent=11 // pred_check_branch
          %442 = sbr.rel (%p440) target = $region60
        $region59: #{rope_vit_forward.1} parent=11 // pred_region
          _
        $region60: #{rope_vit_forward.1} parent=11 // pred_fallthru
          _
        // Predicated region
        $region61: #{rope_vit_forward.1} parent=11 // pred_check
          %p443 = pneg %p324
        $region62: #{rope_vit_forward.1} parent=11 // pred_check_branch
          %445 = sbr.rel (%p443) target = $region64
        $region63: #{rope_vit_forward.1} parent=11 // pred_region
          _
        $region64: #{rope_vit_forward.1} parent=11 // pred_fallthru
          _
        // Predicated region
        $region65: #{rope_vit_forward.1} parent=11 // pred_check
          %p446 = pneg %p345
        $region66: #{rope_vit_forward.1} parent=11 // pred_check_branch
          %448 = sbr.rel (%p446) target = $region68
        $region67: #{rope_vit_forward.1} parent=11 // pred_region
          _
        $region68: #{rope_vit_forward.1} parent=11 // pred_fallthru
          _
        // Predicated region
        $region69: #{rope_vit_forward.1} parent=11 // pred_check
          %p449 = pneg %p366
        $region70: #{rope_vit_forward.1} parent=11 // pred_check_branch
          %451 = sbr.rel (%p449) target = $region72
        $region71: #{rope_vit_forward.1} parent=11 // pred_region
          _
        $region72: #{rope_vit_forward.1} parent=11 // pred_fallthru
          _
      $region12: #{rope_vit_forward.1} parent=5 // pred_fallthru
        _
      %p452 = scmp.lt.s32.totalorder %s25, 2
      // Predicated region
      $region73: #{rope_vit_forward.1} parent=5 // pred_check
        %p453 = pneg %p452
      $region74: #{rope_vit_forward.1} parent=5 // pred_check_branch
        %455 = sbr.rel (%p453) target = $region76
      $region75: #{rope_vit_forward.1} parent=5 // pred_region
        // Predicated region
        $region77: #{rope_vit_forward.1} parent=75 // pred_check
          %p456 = pneg %p45
        $region78: #{rope_vit_forward.1} parent=75 // pred_check_branch
          %458 = sbr.rel (%p456) target = $region80
        $region79: #{rope_vit_forward.1} parent=75 // pred_region
          %p459 = scmp.lt.s32.totalorder %s25, 1
          %s460 = scalar_select %p459, %s25, 1
          %s461 = smul.addr %s460, 3
          %s462 = smul.addr %s461, 8
          %s463 = scalar_lea.vmem %s0, %s462
        $region80: #{rope_vit_forward.1} parent=75 // pred_fallthru
          _
      $region76: #{rope_vit_forward.1} parent=5 // pred_fallthru
        _
      %p464 = scmp.le.s32.totalorder 1, %s25
      %p465 = scmp.lt.s32.totalorder %s25, 3
      %p466 = pnand %p464, %p465
      %p467 = pneg %p466
      // Predicated region
      $region81: #{rope_vit_forward.1} parent=5 // pred_check
        _
      $region82: #{rope_vit_forward.1} parent=5 // pred_check_branch
        %469 = sbr.rel (%p466) target = $region84
      $region83: #{rope_vit_forward.1} parent=5 // pred_region
        %s470 = ssub.s32 %s25, 1
        %p471 = scmp.lt.s32.totalorder %s30, 1
        %s472 = scalar_select %p471, %s30, 1
        %s473 = smul.addr %s472, 3
        %s474 = smul.addr %s473, 8
        %s475 = scalar_lea.vmem %s0, %s474
        %p476 = pneg %p51
        %p477 = pneg %p48
        %p478 = pneg %p72
        %p479 = pneg %p69
        %p480 = pneg %p93
        %p481 = pneg %p90
        %p482 = pneg %p114
        %p483 = pneg %p111
        %p484 = pneg %p135
        %p485 = pneg %p132
        %p486 = pneg %p156
        %p487 = pneg %p153
        %p488 = pneg %p177
        %p489 = pneg %p174
        %p490 = pneg %p198
        %p491 = pneg %p195
        %p492 = pneg %p219
        %p493 = pneg %p216
        %p494 = pneg %p240
        %p495 = pneg %p237
        %p496 = pneg %p261
        %p497 = pneg %p258
        %p498 = pneg %p282
        %p499 = pneg %p279
        %p500 = pneg %p303
        %p501 = pneg %p300
        %p502 = pneg %p324
        %p503 = pneg %p321
        %p504 = pneg %p345
        %p505 = pneg %p342
        %p506 = pneg %p366
        %p507 = pneg %p363
        %p508 = pneg %p392
        %p509 = pneg %p389
        %s510 = sand.u32 %s379, 1
        %s511 = scalar_lea.sflag [#allocation3], %s510
        %s512 = sand.u32 %s379, 1
        %s513 = scalar_lea.vmem [#allocation2], %s512
        %p514 = scmp.lt.s32.totalorder %s30, 1
        %s515 = scalar_select %p514, %s30, 1
        %s516 = smul.addr %s515, 3
        %s517 = smul.addr %s516, 8
        %s518 = scalar_lea.vmem %s0, %s517
        %v519 = vld [vmem:[%s518] sm:$0xff]
        %v520 = vld [vmem:[%s518 + $0x8] sm:$0xff]
        %v521 = vld [vmem:[%s518 + $0x10] sm:$0x1]
        %v522 = vld [vmem:[%s1] sm:$0xff]
        %v523 = vld [vmem:[%s1 + $0x8] sm:$0xff]
        %v524 = vld [vmem:[%s1 + $0x10] sm:$0xff]
        %v525 = vld [vmem:[%s1 + $0x18] sm:$0xff]
        %v526 = vld [vmem:[%s1 + $0x20] sm:$0xff]
        %v527 = vld [vmem:[%s1 + $0x28] sm:$0xff]
        %v528 = vld [vmem:[%s1 + $0x30] sm:$0xff]
        %v529 = vld [vmem:[%s1 + $0x38] sm:$0xff]
        %v530 = vld [vmem:[%s2] sm:$0xff]
        %v531 = vld [vmem:[%s2 + $0x8] sm:$0xff]
        %v532 = vld [vmem:[%s2 + $0x10] sm:$0x1]
        %vm533 = vcmask 523264
        %v535 = vsel %vm533, %v519, 0
        %v538 = vsel %vm533, %v520, 0
        %v541 = vsel %vm533, %v521, 0
        %543 = vmatprep.subr.mxu0 0.0
        %544 = vmatpush1.msra.mxu0 0.0
        %545 = vmatprep.subr.mxu0 0.0
        %546 = vmatpush1.msra.mxu0 0.0
        %547 = vmatprep.subr.mxu0 0.0
        %548 = vmatpush1.msra.mxu0 0.0
        %549 = vmatprep.subr.mxu0 0.0
        %550 = vmatpush1.msra.mxu0 0.0
        %551 = vmatprep.subr.mxu0 0.0
        %552 = vmatpush1.msra.mxu0 0.0
        %553 = vmatprep.subr.mxu0 0.0
        %554 = vmatpush1.msra.mxu0 0.0
        %555 = vmatprep.subr.mxu0 0.0
        %556 = vmatpush1.msra.mxu0 0.0
        %557 = vmatprep.subr.mxu0 0.0
        %558 = vmatpush1.msra.mxu0 0.0
        %559 = vmatprep.subr.mxu0 0.0
        %560 = vmatpush1.msra.mxu0 %v529
        %561 = vmatprep.subr.mxu0 0.0
        %562 = vmatpush1.msra.mxu0 %v528
        %563 = vmatprep.subr.mxu0 0.0
        %564 = vmatpush1.msra.mxu0 %v527
        %565 = vmatprep.subr.mxu0 0.0
        %566 = vmatpush1.msra.mxu0 %v526
        %567 = vmatprep.subr.mxu0 0.0
        %568 = vmatpush1.msra.mxu0 %v525
        %569 = vmatprep.subr.mxu0 0.0
        %570 = vmatpush1.msra.mxu0 %v524
        %571 = vmatprep.subr.mxu0 0.0
        %572 = vmatpush1.msra.mxu0 %v523
        %573 = vmatprep.subr.mxu0 0.0
        %574 = vmatpush1.msra.mxu0 %v522
        %575 = vmatprep.subr.mxu0 0.0
        %576 = vmatpush2.msra.mxu0 0.0
        %577 = vmatprep.subr.mxu0 0.0
        %578 = vmatpush2.msra.mxu0 0.0
        %579 = vmatprep.subr.mxu0 0.0
        %580 = vmatpush2.msra.mxu0 0.0
        %581 = vmatprep.subr.mxu0 0.0
        %582 = vmatpush2.msra.mxu0 0.0
        %583 = vmatprep.subr.mxu0 0.0
        %584 = vmatpush2.msra.mxu0 0.0
        %585 = vmatprep.subr.mxu0 0.0
        %586 = vmatpush2.msra.mxu0 0.0
        %587 = vmatprep.subr.mxu0 0.0
        %588 = vmatpush2.msra.mxu0 0.0
        %589 = vmatprep.subr.mxu0 0.0
        %590 = vmatpush2.msra.mxu0 0.0
        %591 = vmatprep.subr.mxu0 0.0
        %592 = vmatpush2.msra.mxu0 0.0
        %593 = vmatprep.subr.mxu0 0.0
        %594 = vmatpush2.msra.mxu0 0.0
        %595 = vmatprep.subr.mxu0 0.0
        %596 = vmatpush2.msra.mxu0 0.0
        %597 = vmatprep.subr.mxu0 0.0
        %598 = vmatpush2.msra.mxu0 0.0
        %599 = vmatprep.subr.mxu0 0.0
        %600 = vmatpush2.msra.mxu0 0.0
        %601 = vmatprep.subr.mxu0 0.0
        %602 = vmatpush2.msra.mxu0 0.0
        %603 = vmatprep.subr.mxu0 0.0
        %604 = vmatpush2.msra.mxu0 0.0
        %605 = vmatprep.subr.mxu0 0.0
        %606 = vmatpush2.msra.mxu0 0.0
        %607 = vmatprep.mubr.f32.mxu0 0.0
        %608 = vmatmul.mubr.f32.gmra.mxu0 %v535
        %v609 = vpop.f32.mrf.mxu0
        %v610 = vadd.f32 %v530, %v609
        %v611 = vpop.f32.mrf.mxu0
        %612 = vmatprep.mubr.f32.mxu0 0.0
        %613 = vmatmul.mubr.f32.gmra.mxu0 %v538
        %v614 = vpop.f32.mrf.mxu0
        %v615 = vadd.f32 %v531, %v614
        %v616 = vpop.f32.mrf.mxu0
        %617 = vmatprep.mubr.f32.mxu0 0.0
        %618 = vmatmul.mubr.f32.gmra.mxu0 %v541
        %v619 = vpop.f32.mrf.mxu0
        %v620 = vadd.f32 %v532, %v619
        %v621 = vpop.f32.mrf.mxu0
        %622 = vdwg.mxu0
        %v623 = vld [vmem:[%s3] sm:$0xff]
        %v624 = vld [vmem:[%s3 + $0x8] sm:$0xff]
        %v625 = vld [vmem:[%s3 + $0x10] sm:$0x1]
        %v626 = vld [vmem:[%s4] sm:$0xff]
        %v627 = vld [vmem:[%s4 + $0x8] sm:$0xff]
        %v628 = vld [vmem:[%s4 + $0x10] sm:$0x1]
        %v629 = vld [vmem:[%s5] sm:$0xff]
        %v630 = vld [vmem:[%s5 + $0x8] sm:$0xff]
        %v631 = vld [vmem:[%s5 + $0x10] sm:$0x1]
        %vm632 = vcmask 261120
        %v633 = vsel %vm632, %v610, 0.0
        %634 = vadd.xlane.f32.xlu0 %v633
        %v635 = vpop.xlane.xlu0 %634
        %v636 = vsel %vm632, %v615, 0.0
        %637 = vadd.xlane.f32.xlu0 %v636
        %v638 = vpop.xlane.xlu0 %637
        %vm639 = vcmask 253952
        %v640 = vsel %vm639, %v620, 0.0
        %641 = vadd.xlane.f32.xlu0 %v640
        %v642 = vpop.xlane.xlu0 %641
        %v643 = vrcp.pop 32.0
        %v644 = vmul.f32 %v635, %v643
        %v645 = vmul.f32 %v638, %v643
        %v646 = vmul.f32 %v642, %v643
        %v647 = vsub.f32 %v610, %v644
        %v648 = vsub.f32 %v615, %v645
        %v649 = vsub.f32 %v620, %v646
        %v650 = vmul.f32 %v647, %v647
        %v651 = vmul.f32 %v648, %v648
        %v652 = vmul.f32 %v649, %v649
        %v653 = vsel %vm632, %v650, 0.0
        %654 = vadd.xlane.f32.xlu0 %v653
        %v655 = vpop.xlane.xlu0 %654
        %v656 = vsel %vm632, %v651, 0.0
        %657 = vadd.xlane.f32.xlu0 %v656
        %v658 = vpop.xlane.xlu0 %657
        %v659 = vsel %vm639, %v652, 0.0
        %660 = vadd.xlane.f32.xlu0 %v659
        %v661 = vpop.xlane.xlu0 %660
        %v662 = vmul.f32 %v655, %v643
        %v663 = vmul.f32 %v658, %v643
        %v664 = vmul.f32 %v661, %v643
        %v665 = vadd.f32 %v662, 1e-06
        %v666 = vadd.f32 %v663, 1e-06
        %v667 = vadd.f32 %v664, 1e-06
        %v668 = vrsqrt.pop %v665
        %v669 = vrsqrt.pop %v666
        %v670 = vrsqrt.pop %v667
        %v671 = vmul.f32 %v647, %v668
        %v672 = vmul.f32 %v648, %v669
        %v673 = vmul.f32 %v649, %v670
        %v674 = vld [vmem:[%s6] sm:$0xff]
        %v675 = vld [vmem:[%s6 + $0x8] sm:$0xff]
        %v676 = vld [vmem:[%s6 + $0x10] sm:$0xff]
        %v677 = vld [vmem:[%s6 + $0x18] sm:$0xff]
        %v678 = vld [vmem:[%s7] sm:$0x1]
        %v680 = vlaneseq
        %v681 = vshrl.u32 %v680, 7
        %v682 = vsub.s32 0, %v681
        %v683 = vrot.slane %v678, %v682
        %v686 = vsel %vm632, %v671, 0
        %v689 = vsel %vm632, %v672, 0
        %v692 = vsel %vm632, %v673, 0
        %694 = vmatprep.subr.mxu0 0.0
        %695 = vmatpush1.msra.mxu0 0.0
        %696 = vmatprep.subr.mxu0 0.0
        %697 = vmatpush1.msra.mxu0 0.0
        %698 = vmatprep.subr.mxu0 0.0
        %699 = vmatpush1.msra.mxu0 0.0
        %700 = vmatprep.subr.mxu0 0.0
        %701 = vmatpush1.msra.mxu0 0.0
        %702 = vmatprep.subr.mxu0 0.0
        %703 = vmatpush1.msra.mxu0 0.0
        %704 = vmatprep.subr.mxu0 0.0
        %705 = vmatpush1.msra.mxu0 0.0
        %706 = vmatprep.subr.mxu0 0.0
        %707 = vmatpush1.msra.mxu0 0.0
        %708 = vmatprep.subr.mxu0 0.0
        %709 = vmatpush1.msra.mxu0 0.0
        %710 = vmatprep.subr.mxu0 0.0
        %711 = vmatpush1.msra.mxu0 0.0
        %712 = vmatprep.subr.mxu0 0.0
        %713 = vmatpush1.msra.mxu0 0.0
        %714 = vmatprep.subr.mxu0 0.0
        %715 = vmatpush1.msra.mxu0 0.0
        %716 = vmatprep.subr.mxu0 0.0
        %717 = vmatpush1.msra.mxu0 0.0
        %718 = vmatprep.subr.mxu0 0.0
        %719 = vmatpush1.msra.mxu0 %v677
        %720 = vmatprep.subr.mxu0 0.0
        %721 = vmatpush1.msra.mxu0 %v676
        %722 = vmatprep.subr.mxu0 0.0
        %723 = vmatpush1.msra.mxu0 %v675
        %724 = vmatprep.subr.mxu0 0.0
        %725 = vmatpush1.msra.mxu0 %v674
        %726 = vmatprep.subr.mxu0 0.0
        %727 = vmatpush2.msra.mxu0 0.0
        %728 = vmatprep.subr.mxu0 0.0
        %729 = vmatpush2.msra.mxu0 0.0
        %730 = vmatprep.subr.mxu0 0.0
        %731 = vmatpush2.msra.mxu0 0.0
        %732 = vmatprep.subr.mxu0 0.0
        %733 = vmatpush2.msra.mxu0 0.0
        %734 = vmatprep.subr.mxu0 0.0
        %735 = vmatpush2.msra.mxu0 0.0
        %736 = vmatprep.subr.mxu0 0.0
        %737 = vmatpush2.msra.mxu0 0.0
        %738 = vmatprep.subr.mxu0 0.0
        %739 = vmatpush2.msra.mxu0 0.0
        %740 = vmatprep.subr.mxu0 0.0
        %741 = vmatpush2.msra.mxu0 0.0
        %742 = vmatprep.subr.mxu0 0.0
        %743 = vmatpush2.msra.mxu0 0.0
        %744 = vmatprep.subr.mxu0 0.0
        %745 = vmatpush2.msra.mxu0 0.0
        %746 = vmatprep.subr.mxu0 0.0
        %747 = vmatpush2.msra.mxu0 0.0
        %748 = vmatprep.subr.mxu0 0.0
        %749 = vmatpush2.msra.mxu0 0.0
        %750 = vmatprep.subr.mxu0 0.0
        %751 = vmatpush2.msra.mxu0 0.0
        %752 = vmatprep.subr.mxu0 0.0
        %753 = vmatpush2.msra.mxu0 0.0
        %754 = vmatprep.subr.mxu0 0.0
        %755 = vmatpush2.msra.mxu0 0.0
        %756 = vmatprep.subr.mxu0 0.0
        %757 = vmatpush2.msra.mxu0 0.0
        %758 = vmatprep.mubr.f32.mxu0 0.0
        %759 = vmatmul.mubr.f32.gmra.mxu0 %v686
        %v760 = vpop.f32.mrf.mxu0
        %v761 = vadd.f32 %v683, %v760
        %v762 = vpop.f32.mrf.mxu0
        %763 = vmatprep.mubr.f32.mxu0 0.0
        %764 = vmatmul.mubr.f32.gmra.mxu0 %v689
        %v765 = vpop.f32.mrf.mxu0
        %v766 = vadd.f32 %v683, %v765
        %v767 = vpop.f32.mrf.mxu0
        %768 = vmatprep.mubr.f32.mxu0 0.0
        %769 = vmatmul.mubr.f32.gmra.mxu0 %v692
        %v770 = vpop.f32.mrf.mxu0
        %v771 = vadd.f32 %v683, %v770
        %v772 = vpop.f32.mrf.mxu0
        %773 = vdwg.mxu0
        %vm774 = vcmask 1047808
        %775 = vrot.lane.b32.xlu0 %v761, 32
        %v776 = vpop.permute.xlu0 %775
        %v777 = vsel %vm774, %v776, %v761
        %778 = vrot.lane.b32.xlu0 %v766, 32
        %v779 = vpop.permute.xlu0 %778
        %v780 = vsel %vm774, %v779, %v766
        %781 = vrot.lane.b32.xlu0 %v771, 32
        %v782 = vpop.permute.xlu0 %781
        %v783 = vsel %vm774, %v782, %v771
        %784 = vrot.lane.b32.xlu0 %v777, 32
        %v785 = vpop.permute.xlu0 %784
        %786 = vrot.lane.b32.xlu0 %v780, 32
        %v787 = vpop.permute.xlu0 %786
        %788 = vrot.lane.b32.xlu0 %v783, 32
        %v789 = vpop.permute.xlu0 %788
        %v790 = vsel %vm774, %v785, %v761
        %v791 = vsel %vm774, %v787, %v766
        %v792 = vsel %vm774, %v789, %v771
        %v793 = vmul.f32 %v761, %v623
        %v794 = vmul.f32 %v766, %v624
        %v795 = vmul.f32 %v771, %v625
        %799 = vrot.lane.b32.xlu0 %v626, 1
        %v800 = vpop.permute.xlu0 %799
        %801 = vrot.lane.b32.xlu0 %v627, 1
        %v802 = vpop.permute.xlu0 %801
        %803 = vrot.lane.b32.xlu0 %v628, 1
        %v804 = vpop.permute.xlu0 %803
        %v808 = vmul.f32 %v790, %v800
        %v809 = vmul.f32 %v791, %v802
        %v810 = vmul.f32 %v792, %v804
        %814 = vrot.lane.b32.xlu0 %v808, 127
        %v815 = vpop.permute.xlu0 %814
        %816 = vrot.lane.b32.xlu0 %v809, 127
        %v817 = vpop.permute.xlu0 %816
        %818 = vrot.lane.b32.xlu0 %v810, 127
        %v819 = vpop.permute.xlu0 %818
        %v823 = vadd.f32 %v793, %v815
        %v824 = vadd.f32 %v794, %v817
        %v825 = vadd.f32 %v795, %v819
        %829 = vrot.lane.b32.xlu0 %v629, 31
        %v830 = vpop.permute.xlu0 %829
        %831 = vrot.lane.b32.xlu0 %v630, 31
        %v832 = vpop.permute.xlu0 %831
        %833 = vrot.lane.b32.xlu0 %v631, 31
        %v834 = vpop.permute.xlu0 %833
        %v838 = vmul.f32 %v790, %v830
        %v839 = vmul.f32 %v791, %v832
        %v840 = vmul.f32 %v792, %v834
        %844 = vrot.lane.b32.xlu0 %v838, 97
        %v845 = vpop.permute.xlu0 %844
        %846 = vrot.lane.b32.xlu0 %v839, 97
        %v847 = vpop.permute.xlu0 %846
        %848 = vrot.lane.b32.xlu0 %v840, 97
        %v849 = vpop.permute.xlu0 %848
        %v853 = vadd.f32 %v823, %v845
        %v854 = vadd.f32 %v824, %v847
        %v855 = vadd.f32 %v825, %v849
        %859 = vrot.lane.b32.xlu0 %v761, 96
        %v860 = vpop.permute.xlu0 %859
        %861 = vrot.lane.b32.xlu0 %v766, 96
        %v862 = vpop.permute.xlu0 %861
        %863 = vrot.lane.b32.xlu0 %v771, 96
        %v864 = vpop.permute.xlu0 %863
        %868 = vrot.lane.b32.xlu0 %v860, 32
        %v869 = vpop.permute.xlu0 %868
        %v870 = vsel %vm774, %v869, %v860
        %871 = vrot.lane.b32.xlu0 %v862, 32
        %v872 = vpop.permute.xlu0 %871
        %v873 = vsel %vm774, %v872, %v862
        %874 = vrot.lane.b32.xlu0 %v864, 32
        %v875 = vpop.permute.xlu0 %874
        %v876 = vsel %vm774, %v875, %v864
        %877 = vrot.lane.b32.xlu0 %v870, 32
        %v878 = vpop.permute.xlu0 %877
        %879 = vrot.lane.b32.xlu0 %v873, 32
        %v880 = vpop.permute.xlu0 %879
        %881 = vrot.lane.b32.xlu0 %v876, 32
        %v882 = vpop.permute.xlu0 %881
        %v883 = vsel %vm774, %v878, %v860
        %v884 = vsel %vm774, %v880, %v862
        %v885 = vsel %vm774, %v882, %v864
        %889 = vrot.lane.b32.xlu0 %v623, 32
        %v890 = vpop.permute.xlu0 %889
        %891 = vrot.lane.b32.xlu0 %v624, 32
        %v892 = vpop.permute.xlu0 %891
        %893 = vrot.lane.b32.xlu0 %v625, 32
        %v894 = vpop.permute.xlu0 %893
        %v898 = vmul.f32 %v761, %v890
        %v899 = vmul.f32 %v766, %v892
        %v900 = vmul.f32 %v771, %v894
        %v901 = vmul.f32 %v883, %v800
        %v902 = vmul.f32 %v884, %v802
        %v903 = vmul.f32 %v885, %v804
        %907 = vrot.lane.b32.xlu0 %v901, 31
        %v908 = vpop.permute.xlu0 %907
        %909 = vrot.lane.b32.xlu0 %v902, 31
        %v910 = vpop.permute.xlu0 %909
        %911 = vrot.lane.b32.xlu0 %v903, 31
        %v912 = vpop.permute.xlu0 %911
        %v916 = vadd.f32 %v898, %v908
        %v917 = vadd.f32 %v899, %v910
        %v918 = vadd.f32 %v900, %v912
        %v919 = vmul.f32 %v883, %v830
        %v920 = vmul.f32 %v884, %v832
        %v921 = vmul.f32 %v885, %v834
        %925 = vrot.lane.b32.xlu0 %v919, 1
        %v926 = vpop.permute.xlu0 %925
        %927 = vrot.lane.b32.xlu0 %v920, 1
        %v928 = vpop.permute.xlu0 %927
        %929 = vrot.lane.b32.xlu0 %v921, 1
        %v930 = vpop.permute.xlu0 %929
        %v934 = vadd.f32 %v916, %v926
        %v935 = vadd.f32 %v917, %v928
        %v936 = vadd.f32 %v918, %v930
        %940 = vrot.lane.b32.xlu0 %v853, 120
        %v941 = vpop.permute.xlu0 %940
        %942 = vrot.lane.b32.xlu0 %v854, 120
        %v943 = vpop.permute.xlu0 %942
        %944 = vrot.lane.b32.xlu0 %v855, 120
        %v945 = vpop.permute.xlu0 %944
        %946 = vrot.lane.b32.xlu0 %v853, 112
        %v947 = vpop.permute.xlu0 %946
        %948 = vrot.lane.b32.xlu0 %v854, 112
        %v949 = vpop.permute.xlu0 %948
        %950 = vrot.lane.b32.xlu0 %v855, 112
        %v951 = vpop.permute.xlu0 %950
        %952 = vrot.lane.b32.xlu0 %v853, 104
        %v953 = vpop.permute.xlu0 %952
        %954 = vrot.lane.b32.xlu0 %v854, 104
        %v955 = vpop.permute.xlu0 %954
        %956 = vrot.lane.b32.xlu0 %v855, 104
        %v957 = vpop.permute.xlu0 %956
        %961 = vrot.lane.b32.xlu0 %v934, 120
        %v962 = vpop.permute.xlu0 %961
        %963 = vrot.lane.b32.xlu0 %v935, 120
        %v964 = vpop.permute.xlu0 %963
        %965 = vrot.lane.b32.xlu0 %v936, 120
        %v966 = vpop.permute.xlu0 %965
        %967 = vrot.lane.b32.xlu0 %v934, 112
        %v968 = vpop.permute.xlu0 %967
        %969 = vrot.lane.b32.xlu0 %v935, 112
        %v970 = vpop.permute.xlu0 %969
        %971 = vrot.lane.b32.xlu0 %v936, 112
        %v972 = vpop.permute.xlu0 %971
        %973 = vrot.lane.b32.xlu0 %v934, 104
        %v974 = vpop.permute.xlu0 %973
        %975 = vrot.lane.b32.xlu0 %v935, 104
        %v976 = vpop.permute.xlu0 %975
        %977 = vrot.lane.b32.xlu0 %v936, 104
        %v978 = vpop.permute.xlu0 %977
        %979 = vrot.lane.b32.xlu0 %v761, 120
        %v980 = vpop.permute.xlu0 %979
        %981 = vrot.lane.b32.xlu0 %v766, 120
        %v982 = vpop.permute.xlu0 %981
        %983 = vrot.lane.b32.xlu0 %v771, 120
        %v984 = vpop.permute.xlu0 %983
        %985 = vrot.lane.b32.xlu0 %v761, 112
        %v986 = vpop.permute.xlu0 %985
        %987 = vrot.lane.b32.xlu0 %v766, 112
        %v988 = vpop.permute.xlu0 %987
        %989 = vrot.lane.b32.xlu0 %v771, 112
        %v990 = vpop.permute.xlu0 %989
        %991 = vrot.lane.b32.xlu0 %v761, 104
        %v992 = vpop.permute.xlu0 %991
        %993 = vrot.lane.b32.xlu0 %v766, 104
        %v994 = vpop.permute.xlu0 %993
        %995 = vrot.lane.b32.xlu0 %v771, 104
        %v996 = vpop.permute.xlu0 %995
        %997 = vrot.lane.b32.xlu0 %v934, 96
        %v998 = vpop.permute.xlu0 %997
        %999 = vrot.lane.b32.xlu0 %v935, 96
        %v1000 = vpop.permute.xlu0 %999
        %1001 = vrot.lane.b32.xlu0 %v936, 96
        %v1002 = vpop.permute.xlu0 %1001
        %vm1003 = vcmask 64512
        %v1004 = vsel %vm1003, %v853, 0
        %v1006 = vsel %vm1003, %v854, 0
        %v1008 = vsel %vm1003, %v855, 0
        %v1010 = vsel %vm1003, %v998, 0
        %v1012 = vsel %vm1003, %v1000, 0
        %v1014 = vsel %vm1003, %v1002, 0
        %1016 = vmatprep.subr.mxu0 0.0
        %1017 = vmatpush1.xpose.msra.mxu0 0.0
        %1018 = vmatprep.subr.mxu0 0.0
        %1019 = vmatpush1.xpose.msra.mxu0 0.0
        %1020 = vmatprep.subr.mxu0 0.0
        %1021 = vmatpush1.xpose.msra.mxu0 0.0
        %1022 = vmatprep.subr.mxu0 0.0
        %1023 = vmatpush1.xpose.msra.mxu0 0.0
        %1024 = vmatprep.subr.mxu0 0.0
        %1025 = vmatpush1.xpose.msra.mxu0 0.0
        %1026 = vmatprep.subr.mxu0 0.0
        %1027 = vmatpush1.xpose.msra.mxu0 0.0
        %1028 = vmatprep.subr.mxu0 0.0
        %1029 = vmatpush1.xpose.msra.mxu0 0.0
        %1030 = vmatprep.subr.mxu0 0.0
        %1031 = vmatpush1.xpose.msra.mxu0 0.0
        %1032 = vmatprep.subr.mxu0 0.0
        %1033 = vmatpush1.xpose.msra.mxu0 0.0
        %1034 = vmatprep.subr.mxu0 0.0
        %1035 = vmatpush1.xpose.msra.mxu0 0.0
        %1036 = vmatprep.subr.mxu0 0.0
        %1037 = vmatpush1.xpose.msra.mxu0 0.0
        %1038 = vmatprep.subr.mxu0 0.0
        %1039 = vmatpush1.xpose.msra.mxu0 0.0
        %1040 = vmatprep.subr.mxu0 0.0
        %1041 = vmatpush1.xpose.msra.mxu0 0.0
        %1042 = vmatprep.subr.mxu0 0.0
        %1043 = vmatpush1.xpose.msra.mxu0 %v1014
        %1044 = vmatprep.subr.mxu0 0.0
        %1045 = vmatpush1.xpose.msra.mxu0 %v1012
        %1046 = vmatprep.subr.mxu0 0.0
        %1047 = vmatpush1.xpose.msra.mxu0 %v1010
        %1048 = vmatprep.subr.mxu0 0.0
        %1049 = vmatpush2.xpose.msra.mxu0 0.0
        %1050 = vmatprep.subr.mxu0 0.0
        %1051 = vmatpush2.xpose.msra.mxu0 0.0
        %1052 = vmatprep.subr.mxu0 0.0
        %1053 = vmatpush2.xpose.msra.mxu0 0.0
        %1054 = vmatprep.subr.mxu0 0.0
        %1055 = vmatpush2.xpose.msra.mxu0 0.0
        %1056 = vmatprep.subr.mxu0 0.0
        %1057 = vmatpush2.xpose.msra.mxu0 0.0
        %1058 = vmatprep.subr.mxu0 0.0
        %1059 = vmatpush2.xpose.msra.mxu0 0.0
        %1060 = vmatprep.subr.mxu0 0.0
        %1061 = vmatpush2.xpose.msra.mxu0 0.0
        %1062 = vmatprep.subr.mxu0 0.0
        %1063 = vmatpush2.xpose.msra.mxu0 0.0
        %1064 = vmatprep.subr.mxu0 0.0
        %1065 = vmatpush2.xpose.msra.mxu0 0.0
        %1066 = vmatprep.subr.mxu0 0.0
        %1067 = vmatpush2.xpose.msra.mxu0 0.0
        %1068 = vmatprep.subr.mxu0 0.0
        %1069 = vmatpush2.xpose.msra.mxu0 0.0
        %1070 = vmatprep.subr.mxu0 0.0
        %1071 = vmatpush2.xpose.msra.mxu0 0.0
        %1072 = vmatprep.subr.mxu0 0.0
        %1073 = vmatpush2.xpose.msra.mxu0 0.0
        %1074 = vmatprep.subr.mxu0 0.0
        %1075 = vmatpush2.xpose.msra.mxu0 0.0
        %1076 = vmatprep.subr.mxu0 0.0
        %1077 = vmatpush2.xpose.msra.mxu0 0.0
        %1078 = vmatprep.subr.mxu0 0.0
        %1079 = vmatpush2.xpose.msra.mxu0 0.0
        %1080 = vmatprep.mubr.f32.mxu0 0.0
        %1081 = vmatmul.mubr.f32.gmra.mxu0 %v1004
        %v1082 = vpop.f32.mrf.mxu0
        %v1083 = vadd.f32 0.0, %v1082
        %v1084 = vpop.f32.mrf.mxu0
        %1085 = vmatprep.mubr.f32.mxu0 0.0
        %1086 = vmatmul.mubr.f32.gmra.mxu0 %v1006
        %v1087 = vpop.f32.mrf.mxu0
        %v1088 = vadd.f32 0.0, %v1087
        %v1089 = vpop.f32.mrf.mxu0
        %1090 = vmatprep.mubr.f32.mxu0 0.0
        %1091 = vmatmul.mubr.f32.gmra.mxu0 %v1008
        %v1092 = vpop.f32.mrf.mxu0
        %v1093 = vadd.f32 0.0, %v1092
        %v1094 = vpop.f32.mrf.mxu0
        %1095 = vdwg.mxu0
        %1096 = vrot.lane.b32.xlu0 %v962, 96
        %v1097 = vpop.permute.xlu0 %1096
        %1098 = vrot.lane.b32.xlu0 %v964, 96
        %v1099 = vpop.permute.xlu0 %1098
        %1100 = vrot.lane.b32.xlu0 %v966, 96
        %v1101 = vpop.permute.xlu0 %1100
        %v1102 = vsel %vm1003, %v941, 0
        %v1104 = vsel %vm1003, %v943, 0
        %v1106 = vsel %vm1003, %v945, 0
        %v1108 = vsel %vm1003, %v1097, 0
        %v1110 = vsel %vm1003, %v1099, 0
        %v1112 = vsel %vm1003, %v1101, 0
        %1114 = vmatprep.subr.mxu0 0.0
        %1115 = vmatpush1.xpose.msra.mxu0 0.0
        %1116 = vmatprep.subr.mxu0 0.0
        %1117 = vmatpush1.xpose.msra.mxu0 0.0
        %1118 = vmatprep.subr.mxu0 0.0
        %1119 = vmatpush1.xpose.msra.mxu0 0.0
        %1120 = vmatprep.subr.mxu0 0.0
        %1121 = vmatpush1.xpose.msra.mxu0 0.0
        %1122 = vmatprep.subr.mxu0 0.0
        %1123 = vmatpush1.xpose.msra.mxu0 0.0
        %1124 = vmatprep.subr.mxu0 0.0
        %1125 = vmatpush1.xpose.msra.mxu0 0.0
        %1126 = vmatprep.subr.mxu0 0.0
        %1127 = vmatpush1.xpose.msra.mxu0 0.0
        %1128 = vmatprep.subr.mxu0 0.0
        %1129 = vmatpush1.xpose.msra.mxu0 0.0
        %1130 = vmatprep.subr.mxu0 0.0
        %1131 = vmatpush1.xpose.msra.mxu0 0.0
        %1132 = vmatprep.subr.mxu0 0.0
        %1133 = vmatpush1.xpose.msra.mxu0 0.0
        %1134 = vmatprep.subr.mxu0 0.0
        %1135 = vmatpush1.xpose.msra.mxu0 0.0
        %1136 = vmatprep.subr.mxu0 0.0
        %1137 = vmatpush1.xpose.msra.mxu0 0.0
        %1138 = vmatprep.subr.mxu0 0.0
        %1139 = vmatpush1.xpose.msra.mxu0 0.0
        %1140 = vmatprep.subr.mxu0 0.0
        %1141 = vmatpush1.xpose.msra.mxu0 %v1112
        %1142 = vmatprep.subr.mxu0 0.0
        %1143 = vmatpush1.xpose.msra.mxu0 %v1110
        %1144 = vmatprep.subr.mxu0 0.0
        %1145 = vmatpush1.xpose.msra.mxu0 %v1108
        %1146 = vmatprep.subr.mxu0 0.0
        %1147 = vmatpush2.xpose.msra.mxu0 0.0
        %1148 = vmatprep.subr.mxu0 0.0
        %1149 = vmatpush2.xpose.msra.mxu0 0.0
        %1150 = vmatprep.subr.mxu0 0.0
        %1151 = vmatpush2.xpose.msra.mxu0 0.0
        %1152 = vmatprep.subr.mxu0 0.0
        %1153 = vmatpush2.xpose.msra.mxu0 0.0
        %1154 = vmatprep.subr.mxu0 0.0
        %1155 = vmatpush2.xpose.msra.mxu0 0.0
        %1156 = vmatprep.subr.mxu0 0.0
        %1157 = vmatpush2.xpose.msra.mxu0 0.0
        %1158 = vmatprep.subr.mxu0 0.0
        %1159 = vmatpush2.xpose.msra.mxu0 0.0
        %1160 = vmatprep.subr.mxu0 0.0
        %1161 = vmatpush2.xpose.msra.mxu0 0.0
        %1162 = vmatprep.subr.mxu0 0.0
        %1163 = vmatpush2.xpose.msra.mxu0 0.0
        %1164 = vmatprep.subr.mxu0 0.0
        %1165 = vmatpush2.xpose.msra.mxu0 0.0
        %1166 = vmatprep.subr.mxu0 0.0
        %1167 = vmatpush2.xpose.msra.mxu0 0.0
        %1168 = vmatprep.subr.mxu0 0.0
        %1169 = vmatpush2.xpose.msra.mxu0 0.0
        %1170 = vmatprep.subr.mxu0 0.0
        %1171 = vmatpush2.xpose.msra.mxu0 0.0
        %1172 = vmatprep.subr.mxu0 0.0
        %1173 = vmatpush2.xpose.msra.mxu0 0.0
        %1174 = vmatprep.subr.mxu0 0.0
        %1175 = vmatpush2.xpose.msra.mxu0 0.0
        %1176 = vmatprep.subr.mxu0 0.0
        %1177 = vmatpush2.xpose.msra.mxu0 0.0
        %1178 = vmatprep.mubr.f32.mxu0 0.0
        %1179 = vmatmul.mubr.f32.gmra.mxu0 %v1102
        %v1180 = vpop.f32.mrf.mxu0
        %v1181 = vadd.f32 0.0, %v1180
        %v1182 = vpop.f32.mrf.mxu0
        %1183 = vmatprep.mubr.f32.mxu0 0.0
        %1184 = vmatmul.mubr.f32.gmra.mxu0 %v1104
        %v1185 = vpop.f32.mrf.mxu0
        %v1186 = vadd.f32 0.0, %v1185
        %v1187 = vpop.f32.mrf.mxu0
        %1188 = vmatprep.mubr.f32.mxu0 0.0
        %1189 = vmatmul.mubr.f32.gmra.mxu0 %v1106
        %v1190 = vpop.f32.mrf.mxu0
        %v1191 = vadd.f32 0.0, %v1190
        %v1192 = vpop.f32.mrf.mxu0
        %1193 = vdwg.mxu0
        %1194 = vrot.lane.b32.xlu0 %v968, 96
        %v1195 = vpop.permute.xlu0 %1194
        %1196 = vrot.lane.b32.xlu0 %v970, 96
        %v1197 = vpop.permute.xlu0 %1196
        %1198 = vrot.lane.b32.xlu0 %v972, 96
        %v1199 = vpop.permute.xlu0 %1198
        %v1200 = vsel %vm1003, %v947, 0
        %v1202 = vsel %vm1003, %v949, 0
        %v1204 = vsel %vm1003, %v951, 0
        %v1206 = vsel %vm1003, %v1195, 0
        %v1208 = vsel %vm1003, %v1197, 0
        %v1210 = vsel %vm1003, %v1199, 0
        %1212 = vmatprep.subr.mxu0 0.0
        %1213 = vmatpush1.xpose.msra.mxu0 0.0
        %1214 = vmatprep.subr.mxu0 0.0
        %1215 = vmatpush1.xpose.msra.mxu0 0.0
        %1216 = vmatprep.subr.mxu0 0.0
        %1217 = vmatpush1.xpose.msra.mxu0 0.0
        %1218 = vmatprep.subr.mxu0 0.0
        %1219 = vmatpush1.xpose.msra.mxu0 0.0
        %1220 = vmatprep.subr.mxu0 0.0
        %1221 = vmatpush1.xpose.msra.mxu0 0.0
        %1222 = vmatprep.subr.mxu0 0.0
        %1223 = vmatpush1.xpose.msra.mxu0 0.0
        %1224 = vmatprep.subr.mxu0 0.0
        %1225 = vmatpush1.xpose.msra.mxu0 0.0
        %1226 = vmatprep.subr.mxu0 0.0
        %1227 = vmatpush1.xpose.msra.mxu0 0.0
        %1228 = vmatprep.subr.mxu0 0.0
        %1229 = vmatpush1.xpose.msra.mxu0 0.0
        %1230 = vmatprep.subr.mxu0 0.0
        %1231 = vmatpush1.xpose.msra.mxu0 0.0
        %1232 = vmatprep.subr.mxu0 0.0
        %1233 = vmatpush1.xpose.msra.mxu0 0.0
        %1234 = vmatprep.subr.mxu0 0.0
        %1235 = vmatpush1.xpose.msra.mxu0 0.0
        %1236 = vmatprep.subr.mxu0 0.0
        %1237 = vmatpush1.xpose.msra.mxu0 0.0
        %1238 = vmatprep.subr.mxu0 0.0
        %1239 = vmatpush1.xpose.msra.mxu0 %v1210
        %1240 = vmatprep.subr.mxu0 0.0
        %1241 = vmatpush1.xpose.msra.mxu0 %v1208
        %1242 = vmatprep.subr.mxu0 0.0
        %1243 = vmatpush1.xpose.msra.mxu0 %v1206
        %1244 = vmatprep.subr.mxu0 0.0
        %1245 = vmatpush2.xpose.msra.mxu0 0.0
        %1246 = vmatprep.subr.mxu0 0.0
        %1247 = vmatpush2.xpose.msra.mxu0 0.0
        %1248 = vmatprep.subr.mxu0 0.0
        %1249 = vmatpush2.xpose.msra.mxu0 0.0
        %1250 = vmatprep.subr.mxu0 0.0
        %1251 = vmatpush2.xpose.msra.mxu0 0.0
        %1252 = vmatprep.subr.mxu0 0.0
        %1253 = vmatpush2.xpose.msra.mxu0 0.0
        %1254 = vmatprep.subr.mxu0 0.0
        %1255 = vmatpush2.xpose.msra.mxu0 0.0
        %1256 = vmatprep.subr.mxu0 0.0
        %1257 = vmatpush2.xpose.msra.mxu0 0.0
        %1258 = vmatprep.subr.mxu0 0.0
        %1259 = vmatpush2.xpose.msra.mxu0 0.0
        %1260 = vmatprep.subr.mxu0 0.0
        %1261 = vmatpush2.xpose.msra.mxu0 0.0
        %1262 = vmatprep.subr.mxu0 0.0
        %1263 = vmatpush2.xpose.msra.mxu0 0.0
        %1264 = vmatprep.subr.mxu0 0.0
        %1265 = vmatpush2.xpose.msra.mxu0 0.0
        %1266 = vmatprep.subr.mxu0 0.0
        %1267 = vmatpush2.xpose.msra.mxu0 0.0
        %1268 = vmatprep.subr.mxu0 0.0
        %1269 = vmatpush2.xpose.msra.mxu0 0.0
        %1270 = vmatprep.subr.mxu0 0.0
        %1271 = vmatpush2.xpose.msra.mxu0 0.0
        %1272 = vmatprep.subr.mxu0 0.0
        %1273 = vmatpush2.xpose.msra.mxu0 0.0
        %1274 = vmatprep.subr.mxu0 0.0
        %1275 = vmatpush2.xpose.msra.mxu0 0.0
        %1276 = vmatprep.mubr.f32.mxu0 0.0
        %1277 = vmatmul.mubr.f32.gmra.mxu0 %v1200
        %v1278 = vpop.f32.mrf.mxu0
        %v1279 = vadd.f32 0.0, %v1278
        %v1280 = vpop.f32.mrf.mxu0
        %1281 = vmatprep.mubr.f32.mxu0 0.0
        %1282 = vmatmul.mubr.f32.gmra.mxu0 %v1202
        %v1283 = vpop.f32.mrf.mxu0
        %v1284 = vadd.f32 0.0, %v1283
        %v1285 = vpop.f32.mrf.mxu0
        %1286 = vmatprep.mubr.f32.mxu0 0.0
        %1287 = vmatmul.mubr.f32.gmra.mxu0 %v1204
        %v1288 = vpop.f32.mrf.mxu0
        %v1289 = vadd.f32 0.0, %v1288
        %v1290 = vpop.f32.mrf.mxu0
        %1291 = vdwg.mxu0
        %1292 = vrot.lane.b32.xlu0 %v974, 96
        %v1293 = vpop.permute.xlu0 %1292
        %1294 = vrot.lane.b32.xlu0 %v976, 96
        %v1295 = vpop.permute.xlu0 %1294
        %1296 = vrot.lane.b32.xlu0 %v978, 96
        %v1297 = vpop.permute.xlu0 %1296
        %v1298 = vsel %vm1003, %v953, 0
        %v1300 = vsel %vm1003, %v955, 0
        %v1302 = vsel %vm1003, %v957, 0
        %v1304 = vsel %vm1003, %v1293, 0
        %v1306 = vsel %vm1003, %v1295, 0
        %v1308 = vsel %vm1003, %v1297, 0
        %1310 = vmatprep.subr.mxu0 0.0
        %1311 = vmatpush1.xpose.msra.mxu0 0.0
        %1312 = vmatprep.subr.mxu0 0.0
        %1313 = vmatpush1.xpose.msra.mxu0 0.0
        %1314 = vmatprep.subr.mxu0 0.0
        %1315 = vmatpush1.xpose.msra.mxu0 0.0
        %1316 = vmatprep.subr.mxu0 0.0
        %1317 = vmatpush1.xpose.msra.mxu0 0.0
        %1318 = vmatprep.subr.mxu0 0.0
        %1319 = vmatpush1.xpose.msra.mxu0 0.0
        %1320 = vmatprep.subr.mxu0 0.0
        %1321 = vmatpush1.xpose.msra.mxu0 0.0
        %1322 = vmatprep.subr.mxu0 0.0
        %1323 = vmatpush1.xpose.msra.mxu0 0.0
        %1324 = vmatprep.subr.mxu0 0.0
        %1325 = vmatpush1.xpose.msra.mxu0 0.0
        %1326 = vmatprep.subr.mxu0 0.0
        %1327 = vmatpush1.xpose.msra.mxu0 0.0
        %1328 = vmatprep.subr.mxu0 0.0
        %1329 = vmatpush1.xpose.msra.mxu0 0.0
        %1330 = vmatprep.subr.mxu0 0.0
        %1331 = vmatpush1.xpose.msra.mxu0 0.0
        %1332 = vmatprep.subr.mxu0 0.0
        %1333 = vmatpush1.xpose.msra.mxu0 0.0
        %1334 = vmatprep.subr.mxu0 0.0
        %1335 = vmatpush1.xpose.msra.mxu0 0.0
        %1336 = vmatprep.subr.mxu0 0.0
        %1337 = vmatpush1.xpose.msra.mxu0 %v1308
        %1338 = vmatprep.subr.mxu0 0.0
        %1339 = vmatpush1.xpose.msra.mxu0 %v1306
        %1340 = vmatprep.subr.mxu0 0.0
        %1341 = vmatpush1.xpose.msra.mxu0 %v1304
        %1342 = vmatprep.subr.mxu0 0.0
        %1343 = vmatpush2.xpose.msra.mxu0 0.0
        %1344 = vmatprep.subr.mxu0 0.0
        %1345 = vmatpush2.xpose.msra.mxu0 0.0
        %1346 = vmatprep.subr.mxu0 0.0
        %1347 = vmatpush2.xpose.msra.mxu0 0.0
        %1348 = vmatprep.subr.mxu0 0.0
        %1349 = vmatpush2.xpose.msra.mxu0 0.0
        %1350 = vmatprep.subr.mxu0 0.0
        %1351 = vmatpush2.xpose.msra.mxu0 0.0
        %1352 = vmatprep.subr.mxu0 0.0
        %1353 = vmatpush2.xpose.msra.mxu0 0.0
        %1354 = vmatprep.subr.mxu0 0.0
        %1355 = vmatpush2.xpose.msra.mxu0 0.0
        %1356 = vmatprep.subr.mxu0 0.0
        %1357 = vmatpush2.xpose.msra.mxu0 0.0
        %1358 = vmatprep.subr.mxu0 0.0
        %1359 = vmatpush2.xpose.msra.mxu0 0.0
        %1360 = vmatprep.subr.mxu0 0.0
        %1361 = vmatpush2.xpose.msra.mxu0 0.0
        %1362 = vmatprep.subr.mxu0 0.0
        %1363 = vmatpush2.xpose.msra.mxu0 0.0
        %1364 = vmatprep.subr.mxu0 0.0
        %1365 = vmatpush2.xpose.msra.mxu0 0.0
        %1366 = vmatprep.subr.mxu0 0.0
        %1367 = vmatpush2.xpose.msra.mxu0 0.0
        %1368 = vmatprep.subr.mxu0 0.0
        %1369 = vmatpush2.xpose.msra.mxu0 0.0
        %1370 = vmatprep.subr.mxu0 0.0
        %1371 = vmatpush2.xpose.msra.mxu0 0.0
        %1372 = vmatprep.subr.mxu0 0.0
        %1373 = vmatpush2.xpose.msra.mxu0 0.0
        %1374 = vmatprep.mubr.f32.mxu0 0.0
        %1375 = vmatmul.mubr.f32.gmra.mxu0 %v1298
        %v1376 = vpop.f32.mrf.mxu0
        %v1377 = vadd.f32 0.0, %v1376
        %v1378 = vpop.f32.mrf.mxu0
        %1379 = vmatprep.mubr.f32.mxu0 0.0
        %1380 = vmatmul.mubr.f32.gmra.mxu0 %v1300
        %v1381 = vpop.f32.mrf.mxu0
        %v1382 = vadd.f32 0.0, %v1381
        %v1383 = vpop.f32.mrf.mxu0
        %1384 = vmatprep.mubr.f32.mxu0 0.0
        %1385 = vmatmul.mubr.f32.gmra.mxu0 %v1302
        %v1386 = vpop.f32.mrf.mxu0
        %v1387 = vadd.f32 0.0, %v1386
        %v1388 = vpop.f32.mrf.mxu0
        %1389 = vdwg.mxu0
        %vm1390 = vcmask 138240
        %v1391 = vsel %vm1390, %v1083, -inf
        %1392 = vmax.xlane.f32.xlu0 %v1391
        %v1393 = vpop.xlane.xlu0 %1392
        %v1394 = vsel %vm1390, %v1088, -inf
        %1395 = vmax.xlane.f32.xlu0 %v1394
        %v1396 = vpop.xlane.xlu0 %1395
        %vm1397 = vcmask 131072
        %v1398 = vsel %vm1397, %v1093, -inf
        %1399 = vmax.xlane.f32.xlu0 %v1398
        %v1400 = vpop.xlane.xlu0 %1399
        %v1401 = vsel %vm1390, %v1181, -inf
        %1402 = vmax.xlane.f32.xlu0 %v1401
        %v1403 = vpop.xlane.xlu0 %1402
        %v1404 = vsel %vm1390, %v1186, -inf
        %1405 = vmax.xlane.f32.xlu0 %v1404
        %v1406 = vpop.xlane.xlu0 %1405
        %v1407 = vsel %vm1397, %v1191, -inf
        %1408 = vmax.xlane.f32.xlu0 %v1407
        %v1409 = vpop.xlane.xlu0 %1408
        %v1410 = vsel %vm1390, %v1279, -inf
        %1411 = vmax.xlane.f32.xlu0 %v1410
        %v1412 = vpop.xlane.xlu0 %1411
        %v1413 = vsel %vm1390, %v1284, -inf
        %1414 = vmax.xlane.f32.xlu0 %v1413
        %v1415 = vpop.xlane.xlu0 %1414
        %v1416 = vsel %vm1397, %v1289, -inf
        %1417 = vmax.xlane.f32.xlu0 %v1416
        %v1418 = vpop.xlane.xlu0 %1417
        %v1419 = vsel %vm1390, %v1377, -inf
        %1420 = vmax.xlane.f32.xlu0 %v1419
        %v1421 = vpop.xlane.xlu0 %1420
        %v1422 = vsel %vm1390, %v1382, -inf
        %1423 = vmax.xlane.f32.xlu0 %v1422
        %v1424 = vpop.xlane.xlu0 %1423
        %v1425 = vsel %vm1397, %v1387, -inf
        %1426 = vmax.xlane.f32.xlu0 %v1425
        %v1427 = vpop.xlane.xlu0 %1426
        %v1428 = vsub.f32 %v1083, %v1393
        %v1429 = vsub.f32 %v1088, %v1396
        %v1430 = vsub.f32 %v1093, %v1400
        %v1431 = vsub.f32 %v1181, %v1403
        %v1432 = vsub.f32 %v1186, %v1406
        %v1433 = vsub.f32 %v1191, %v1409
        %v1434 = vsub.f32 %v1279, %v1412
        %v1435 = vsub.f32 %v1284, %v1415
        %v1436 = vsub.f32 %v1289, %v1418
        %v1437 = vsub.f32 %v1377, %v1421
        %v1438 = vsub.f32 %v1382, %v1424
        %v1439 = vsub.f32 %v1387, %v1427
        %v1440 = vmul.f32 %v1428, 1.442695
        %v1441 = vpow.pop %v1440
        %v1442 = vmul.f32 %v1429, 1.442695
        %v1443 = vpow.pop %v1442
        %v1444 = vmul.f32 %v1430, 1.442695
        %v1445 = vpow.pop %v1444
        %v1446 = vmul.f32 %v1431, 1.442695
        %v1447 = vpow.pop %v1446
        %v1448 = vmul.f32 %v1432, 1.442695
        %v1449 = vpow.pop %v1448
        %v1450 = vmul.f32 %v1433, 1.442695
        %v1451 = vpow.pop %v1450
        %v1452 = vmul.f32 %v1434, 1.442695
        %v1453 = vpow.pop %v1452
        %v1454 = vmul.f32 %v1435, 1.442695
        %v1455 = vpow.pop %v1454
        %v1456 = vmul.f32 %v1436, 1.442695
        %v1457 = vpow.pop %v1456
        %v1458 = vmul.f32 %v1437, 1.442695
        %v1459 = vpow.pop %v1458
        %v1460 = vmul.f32 %v1438, 1.442695
        %v1461 = vpow.pop %v1460
        %v1462 = vmul.f32 %v1439, 1.442695
        %v1463 = vpow.pop %v1462
        %v1464 = vsel %vm1390, %v1441, 0.0
        %1465 = vadd.xlane.f32.xlu0 %v1464
        %v1466 = vpop.xlane.xlu0 %1465
        %v1467 = vsel %vm1390, %v1443, 0.0
        %1468 = vadd.xlane.f32.xlu0 %v1467
        %v1469 = vpop.xlane.xlu0 %1468
        %v1470 = vsel %vm1397, %v1445, 0.0
        %1471 = vadd.xlane.f32.xlu0 %v1470
        %v1472 = vpop.xlane.xlu0 %1471
        %v1473 = vsel %vm1390, %v1447, 0.0
        %1474 = vadd.xlane.f32.xlu0 %v1473
        %v1475 = vpop.xlane.xlu0 %1474
        %v1476 = vsel %vm1390, %v1449, 0.0
        %1477 = vadd.xlane.f32.xlu0 %v1476
        %v1478 = vpop.xlane.xlu0 %1477
        %v1479 = vsel %vm1397, %v1451, 0.0
        %1480 = vadd.xlane.f32.xlu0 %v1479
        %v1481 = vpop.xlane.xlu0 %1480
        %v1482 = vsel %vm1390, %v1453, 0.0
        %1483 = vadd.xlane.f32.xlu0 %v1482
        %v1484 = vpop.xlane.xlu0 %1483
        %v1485 = vsel %vm1390, %v1455, 0.0
        %1486 = vadd.xlane.f32.xlu0 %v1485
        %v1487 = vpop.xlane.xlu0 %1486
        %v1488 = vsel %vm1397, %v1457, 0.0
        %1489 = vadd.xlane.f32.xlu0 %v1488
        %v1490 = vpop.xlane.xlu0 %1489
        %v1491 = vsel %vm1390, %v1459, 0.0
        %1492 = vadd.xlane.f32.xlu0 %v1491
        %v1493 = vpop.xlane.xlu0 %1492
        %v1494 = vsel %vm1390, %v1461, 0.0
        %1495 = vadd.xlane.f32.xlu0 %v1494
        %v1496 = vpop.xlane.xlu0 %1495
        %v1497 = vsel %vm1397, %v1463, 0.0
        %1498 = vadd.xlane.f32.xlu0 %v1497
        %v1499 = vpop.xlane.xlu0 %1498
        %v1500 = vrcp.pop %v1466
        %v1501 = vrcp.pop %v1469
        %v1502 = vrcp.pop %v1472
        %v1503 = vrcp.pop %v1475
        %v1504 = vrcp.pop %v1478
        %v1505 = vrcp.pop %v1481
        %v1506 = vrcp.pop %v1484
        %v1507 = vrcp.pop %v1487
        %v1508 = vrcp.pop %v1490
        %v1509 = vrcp.pop %v1493
        %v1510 = vrcp.pop %v1496
        %v1511 = vrcp.pop %v1499
        %v1512 = vmul.f32 %v1441, %v1500
        %v1513 = vmul.f32 %v1443, %v1501
        %v1514 = vmul.f32 %v1445, %v1502
        %v1515 = vmul.f32 %v1447, %v1503
        %v1516 = vmul.f32 %v1449, %v1504
        %v1517 = vmul.f32 %v1451, %v1505
        %v1518 = vmul.f32 %v1453, %v1506
        %v1519 = vmul.f32 %v1455, %v1507
        %v1520 = vmul.f32 %v1457, %v1508
        %v1521 = vmul.f32 %v1459, %v1509
        %v1522 = vmul.f32 %v1461, %v1510
        %v1523 = vmul.f32 %v1463, %v1511
        %1524 = vrot.lane.b32.xlu0 %v761, 64
        %v1525 = vpop.permute.xlu0 %1524
        %1526 = vrot.lane.b32.xlu0 %v766, 64
        %v1527 = vpop.permute.xlu0 %1526
        %1528 = vrot.lane.b32.xlu0 %v771, 64
        %v1529 = vpop.permute.xlu0 %1528
        %v1533 = vsel %vm1390, %v1512, 0
        %v1536 = vsel %vm1390, %v1513, 0
        %v1539 = vsel %vm1390, %v1514, 0
        %vm1541 = vcmask 1040384
        %v1542 = vsel %vm1541, %v1529, 0
        %1544 = vmatprep.subr.mxu0 0.0
        %1545 = vmatpush1.msra.mxu0 0.0
        %1546 = vmatprep.subr.mxu0 0.0
        %1547 = vmatpush1.msra.mxu0 0.0
        %1548 = vmatprep.subr.mxu0 0.0
        %1549 = vmatpush1.msra.mxu0 0.0
        %1550 = vmatprep.subr.mxu0 0.0
        %1551 = vmatpush1.msra.mxu0 0.0
        %1552 = vmatprep.subr.mxu0 0.0
        %1553 = vmatpush1.msra.mxu0 0.0
        %1554 = vmatprep.subr.mxu0 0.0
        %1555 = vmatpush1.msra.mxu0 0.0
        %1556 = vmatprep.subr.mxu0 0.0
        %1557 = vmatpush1.msra.mxu0 0.0
        %1558 = vmatprep.subr.mxu0 0.0
        %1559 = vmatpush1.msra.mxu0 0.0
        %1560 = vmatprep.subr.mxu0 0.0
        %1561 = vmatpush1.msra.mxu0 0.0
        %1562 = vmatprep.subr.mxu0 0.0
        %1563 = vmatpush1.msra.mxu0 0.0
        %1564 = vmatprep.subr.mxu0 0.0
        %1565 = vmatpush1.msra.mxu0 0.0
        %1566 = vmatprep.subr.mxu0 0.0
        %1567 = vmatpush1.msra.mxu0 0.0
        %1568 = vmatprep.subr.mxu0 0.0
        %1569 = vmatpush1.msra.mxu0 0.0
        %1570 = vmatprep.subr.mxu0 0.0
        %1571 = vmatpush1.msra.mxu0 %v1542
        %1572 = vmatprep.subr.mxu0 0.0
        %1573 = vmatpush1.msra.mxu0 %v1527
        %1574 = vmatprep.subr.mxu0 0.0
        %1575 = vmatpush1.msra.mxu0 %v1525
        %1576 = vmatprep.subr.mxu0 0.0
        %1577 = vmatpush2.msra.mxu0 0.0
        %1578 = vmatprep.subr.mxu0 0.0
        %1579 = vmatpush2.msra.mxu0 0.0
        %1580 = vmatprep.subr.mxu0 0.0
        %1581 = vmatpush2.msra.mxu0 0.0
        %1582 = vmatprep.subr.mxu0 0.0
        %1583 = vmatpush2.msra.mxu0 0.0
        %1584 = vmatprep.subr.mxu0 0.0
        %1585 = vmatpush2.msra.mxu0 0.0
        %1586 = vmatprep.subr.mxu0 0.0
        %1587 = vmatpush2.msra.mxu0 0.0
        %1588 = vmatprep.subr.mxu0 0.0
        %1589 = vmatpush2.msra.mxu0 0.0
        %1590 = vmatprep.subr.mxu0 0.0
        %1591 = vmatpush2.msra.mxu0 0.0
        %1592 = vmatprep.subr.mxu0 0.0
        %1593 = vmatpush2.msra.mxu0 0.0
        %1594 = vmatprep.subr.mxu0 0.0
        %1595 = vmatpush2.msra.mxu0 0.0
        %1596 = vmatprep.subr.mxu0 0.0
        %1597 = vmatpush2.msra.mxu0 0.0
        %1598 = vmatprep.subr.mxu0 0.0
        %1599 = vmatpush2.msra.mxu0 0.0
        %1600 = vmatprep.subr.mxu0 0.0
        %1601 = vmatpush2.msra.mxu0 0.0
        %1602 = vmatprep.subr.mxu0 0.0
        %1603 = vmatpush2.msra.mxu0 0.0
        %1604 = vmatprep.subr.mxu0 0.0
        %1605 = vmatpush2.msra.mxu0 0.0
        %1606 = vmatprep.subr.mxu0 0.0
        %1607 = vmatpush2.msra.mxu0 0.0
        %1608 = vmatprep.mubr.f32.mxu0 0.0
        %1609 = vmatmul.mubr.f32.gmra.mxu0 %v1533
        %v1610 = vpop.f32.mrf.mxu0
        %v1611 = vadd.f32 0.0, %v1610
        %v1612 = vpop.f32.mrf.mxu0
        %1613 = vmatprep.mubr.f32.mxu0 0.0
        %1614 = vmatmul.mubr.f32.gmra.mxu0 %v1536
        %v1615 = vpop.f32.mrf.mxu0
        %v1616 = vadd.f32 0.0, %v1615
        %v1617 = vpop.f32.mrf.mxu0
        %1618 = vmatprep.mubr.f32.mxu0 0.0
        %1619 = vmatmul.mubr.f32.gmra.mxu0 %v1539
        %v1620 = vpop.f32.mrf.mxu0
        %v1621 = vadd.f32 0.0, %v1620
        %v1622 = vpop.f32.mrf.mxu0
        %1623 = vdwg.mxu0
        %1624 = vrot.lane.b32.xlu0 %v980, 64
        %v1625 = vpop.permute.xlu0 %1624
        %1626 = vrot.lane.b32.xlu0 %v982, 64
        %v1627 = vpop.permute.xlu0 %1626
        %1628 = vrot.lane.b32.xlu0 %v984, 64
        %v1629 = vpop.permute.xlu0 %1628
        %v1633 = vsel %vm1390, %v1515, 0
        %v1636 = vsel %vm1390, %v1516, 0
        %v1639 = vsel %vm1390, %v1517, 0
        %v1641 = vsel %vm1541, %v1629, 0
        %1643 = vmatprep.subr.mxu0 0.0
        %1644 = vmatpush1.msra.mxu0 0.0
        %1645 = vmatprep.subr.mxu0 0.0
        %1646 = vmatpush1.msra.mxu0 0.0
        %1647 = vmatprep.subr.mxu0 0.0
        %1648 = vmatpush1.msra.mxu0 0.0
        %1649 = vmatprep.subr.mxu0 0.0
        %1650 = vmatpush1.msra.mxu0 0.0
        %1651 = vmatprep.subr.mxu0 0.0
        %1652 = vmatpush1.msra.mxu0 0.0
        %1653 = vmatprep.subr.mxu0 0.0
        %1654 = vmatpush1.msra.mxu0 0.0
        %1655 = vmatprep.subr.mxu0 0.0
        %1656 = vmatpush1.msra.mxu0 0.0
        %1657 = vmatprep.subr.mxu0 0.0
        %1658 = vmatpush1.msra.mxu0 0.0
        %1659 = vmatprep.subr.mxu0 0.0
        %1660 = vmatpush1.msra.mxu0 0.0
        %1661 = vmatprep.subr.mxu0 0.0
        %1662 = vmatpush1.msra.mxu0 0.0
        %1663 = vmatprep.subr.mxu0 0.0
        %1664 = vmatpush1.msra.mxu0 0.0
        %1665 = vmatprep.subr.mxu0 0.0
        %1666 = vmatpush1.msra.mxu0 0.0
        %1667 = vmatprep.subr.mxu0 0.0
        %1668 = vmatpush1.msra.mxu0 0.0
        %1669 = vmatprep.subr.mxu0 0.0
        %1670 = vmatpush1.msra.mxu0 %v1641
        %1671 = vmatprep.subr.mxu0 0.0
        %1672 = vmatpush1.msra.mxu0 %v1627
        %1673 = vmatprep.subr.mxu0 0.0
        %1674 = vmatpush1.msra.mxu0 %v1625
        %1675 = vmatprep.subr.mxu0 0.0
        %1676 = vmatpush2.msra.mxu0 0.0
        %1677 = vmatprep.subr.mxu0 0.0
        %1678 = vmatpush2.msra.mxu0 0.0
        %1679 = vmatprep.subr.mxu0 0.0
        %1680 = vmatpush2.msra.mxu0 0.0
        %1681 = vmatprep.subr.mxu0 0.0
        %1682 = vmatpush2.msra.mxu0 0.0
        %1683 = vmatprep.subr.mxu0 0.0
        %1684 = vmatpush2.msra.mxu0 0.0
        %1685 = vmatprep.subr.mxu0 0.0
        %1686 = vmatpush2.msra.mxu0 0.0
        %1687 = vmatprep.subr.mxu0 0.0
        %1688 = vmatpush2.msra.mxu0 0.0
        %1689 = vmatprep.subr.mxu0 0.0
        %1690 = vmatpush2.msra.mxu0 0.0
        %1691 = vmatprep.subr.mxu0 0.0
        %1692 = vmatpush2.msra.mxu0 0.0
        %1693 = vmatprep.subr.mxu0 0.0
        %1694 = vmatpush2.msra.mxu0 0.0
        %1695 = vmatprep.subr.mxu0 0.0
        %1696 = vmatpush2.msra.mxu0 0.0
        %1697 = vmatprep.subr.mxu0 0.0
        %1698 = vmatpush2.msra.mxu0 0.0
        %1699 = vmatprep.subr.mxu0 0.0
        %1700 = vmatpush2.msra.mxu0 0.0
        %1701 = vmatprep.subr.mxu0 0.0
        %1702 = vmatpush2.msra.mxu0 0.0
        %1703 = vmatprep.subr.mxu0 0.0
        %1704 = vmatpush2.msra.mxu0 0.0
        %1705 = vmatprep.subr.mxu0 0.0
        %1706 = vmatpush2.msra.mxu0 0.0
        %1707 = vmatprep.mubr.f32.mxu0 0.0
        %1708 = vmatmul.mubr.f32.gmra.mxu0 %v1633
        %v1709 = vpop.f32.mrf.mxu0
        %v1710 = vadd.f32 0.0, %v1709
        %v1711 = vpop.f32.mrf.mxu0
        %1712 = vmatprep.mubr.f32.mxu0 0.0
        %1713 = vmatmul.mubr.f32.gmra.mxu0 %v1636
        %v1714 = vpop.f32.mrf.mxu0
        %v1715 = vadd.f32 0.0, %v1714
        %v1716 = vpop.f32.mrf.mxu0
        %1717 = vmatprep.mubr.f32.mxu0 0.0
        %1718 = vmatmul.mubr.f32.gmra.mxu0 %v1639
        %v1719 = vpop.f32.mrf.mxu0
        %v1720 = vadd.f32 0.0, %v1719
        %v1721 = vpop.f32.mrf.mxu0
        %1722 = vdwg.mxu0
        %1723 = vrot.lane.b32.xlu0 %v986, 64
        %v1724 = vpop.permute.xlu0 %1723
        %1725 = vrot.lane.b32.xlu0 %v988, 64
        %v1726 = vpop.permute.xlu0 %1725
        %1727 = vrot.lane.b32.xlu0 %v990, 64
        %v1728 = vpop.permute.xlu0 %1727
        %v1732 = vsel %vm1390, %v1518, 0
        %v1735 = vsel %vm1390, %v1519, 0
        %v1738 = vsel %vm1390, %v1520, 0
        %v1740 = vsel %vm1541, %v1728, 0
        %1742 = vmatprep.subr.mxu0 0.0
        %1743 = vmatpush1.msra.mxu0 0.0
        %1744 = vmatprep.subr.mxu0 0.0
        %1745 = vmatpush1.msra.mxu0 0.0
        %1746 = vmatprep.subr.mxu0 0.0
        %1747 = vmatpush1.msra.mxu0 0.0
        %1748 = vmatprep.subr.mxu0 0.0
        %1749 = vmatpush1.msra.mxu0 0.0
        %1750 = vmatprep.subr.mxu0 0.0
        %1751 = vmatpush1.msra.mxu0 0.0
        %1752 = vmatprep.subr.mxu0 0.0
        %1753 = vmatpush1.msra.mxu0 0.0
        %1754 = vmatprep.subr.mxu0 0.0
        %1755 = vmatpush1.msra.mxu0 0.0
        %1756 = vmatprep.subr.mxu0 0.0
        %1757 = vmatpush1.msra.mxu0 0.0
        %1758 = vmatprep.subr.mxu0 0.0
        %1759 = vmatpush1.msra.mxu0 0.0
        %1760 = vmatprep.subr.mxu0 0.0
        %1761 = vmatpush1.msra.mxu0 0.0
        %1762 = vmatprep.subr.mxu0 0.0
        %1763 = vmatpush1.msra.mxu0 0.0
        %1764 = vmatprep.subr.mxu0 0.0
        %1765 = vmatpush1.msra.mxu0 0.0
        %1766 = vmatprep.subr.mxu0 0.0
        %1767 = vmatpush1.msra.mxu0 0.0
        %1768 = vmatprep.subr.mxu0 0.0
        %1769 = vmatpush1.msra.mxu0 %v1740
        %1770 = vmatprep.subr.mxu0 0.0
        %1771 = vmatpush1.msra.mxu0 %v1726
        %1772 = vmatprep.subr.mxu0 0.0
        %1773 = vmatpush1.msra.mxu0 %v1724
        %1774 = vmatprep.subr.mxu0 0.0
        %1775 = vmatpush2.msra.mxu0 0.0
        %1776 = vmatprep.subr.mxu0 0.0
        %1777 = vmatpush2.msra.mxu0 0.0
        %1778 = vmatprep.subr.mxu0 0.0
        %1779 = vmatpush2.msra.mxu0 0.0
        %1780 = vmatprep.subr.mxu0 0.0
        %1781 = vmatpush2.msra.mxu0 0.0
        %1782 = vmatprep.subr.mxu0 0.0
        %1783 = vmatpush2.msra.mxu0 0.0
        %1784 = vmatprep.subr.mxu0 0.0
        %1785 = vmatpush2.msra.mxu0 0.0
        %1786 = vmatprep.subr.mxu0 0.0
        %1787 = vmatpush2.msra.mxu0 0.0
        %1788 = vmatprep.subr.mxu0 0.0
        %1789 = vmatpush2.msra.mxu0 0.0
        %1790 = vmatprep.subr.mxu0 0.0
        %1791 = vmatpush2.msra.mxu0 0.0
        %1792 = vmatprep.subr.mxu0 0.0
        %1793 = vmatpush2.msra.mxu0 0.0
        %1794 = vmatprep.subr.mxu0 0.0
        %1795 = vmatpush2.msra.mxu0 0.0
        %1796 = vmatprep.subr.mxu0 0.0
        %1797 = vmatpush2.msra.mxu0 0.0
        %1798 = vmatprep.subr.mxu0 0.0
        %1799 = vmatpush2.msra.mxu0 0.0
        %1800 = vmatprep.subr.mxu0 0.0
        %1801 = vmatpush2.msra.mxu0 0.0
        %1802 = vmatprep.subr.mxu0 0.0
        %1803 = vmatpush2.msra.mxu0 0.0
        %1804 = vmatprep.subr.mxu0 0.0
        %1805 = vmatpush2.msra.mxu0 0.0
        %1806 = vmatprep.mubr.f32.mxu0 0.0
        %1807 = vmatmul.mubr.f32.gmra.mxu0 %v1732
        %v1808 = vpop.f32.mrf.mxu0
        %v1809 = vadd.f32 0.0, %v1808
        %v1810 = vpop.f32.mrf.mxu0
        %1811 = vmatprep.mubr.f32.mxu0 0.0
        %1812 = vmatmul.mubr.f32.gmra.mxu0 %v1735
        %v1813 = vpop.f32.mrf.mxu0
        %v1814 = vadd.f32 0.0, %v1813
        %v1815 = vpop.f32.mrf.mxu0
        %1816 = vmatprep.mubr.f32.mxu0 0.0
        %1817 = vmatmul.mubr.f32.gmra.mxu0 %v1738
        %v1818 = vpop.f32.mrf.mxu0
        %v1819 = vadd.f32 0.0, %v1818
        %v1820 = vpop.f32.mrf.mxu0
        %1821 = vdwg.mxu0
        %1822 = vrot.lane.b32.xlu0 %v992, 64
        %v1823 = vpop.permute.xlu0 %1822
        %1824 = vrot.lane.b32.xlu0 %v994, 64
        %v1825 = vpop.permute.xlu0 %1824
        %1826 = vrot.lane.b32.xlu0 %v996, 64
        %v1827 = vpop.permute.xlu0 %1826
        %v1831 = vsel %vm1390, %v1521, 0
        %v1834 = vsel %vm1390, %v1522, 0
        %v1837 = vsel %vm1390, %v1523, 0
        %v1839 = vsel %vm1541, %v1827, 0
        %1841 = vmatprep.subr.mxu0 0.0
        %1842 = vmatpush1.msra.mxu0 0.0
        %1843 = vmatprep.subr.mxu0 0.0
        %1844 = vmatpush1.msra.mxu0 0.0
        %1845 = vmatprep.subr.mxu0 0.0
        %1846 = vmatpush1.msra.mxu0 0.0
        %1847 = vmatprep.subr.mxu0 0.0
        %1848 = vmatpush1.msra.mxu0 0.0
        %1849 = vmatprep.subr.mxu0 0.0
        %1850 = vmatpush1.msra.mxu0 0.0
        %1851 = vmatprep.subr.mxu0 0.0
        %1852 = vmatpush1.msra.mxu0 0.0
        %1853 = vmatprep.subr.mxu0 0.0
        %1854 = vmatpush1.msra.mxu0 0.0
        %1855 = vmatprep.subr.mxu0 0.0
        %1856 = vmatpush1.msra.mxu0 0.0
        %1857 = vmatprep.subr.mxu0 0.0
        %1858 = vmatpush1.msra.mxu0 0.0
        %1859 = vmatprep.subr.mxu0 0.0
        %1860 = vmatpush1.msra.mxu0 0.0
        %1861 = vmatprep.subr.mxu0 0.0
        %1862 = vmatpush1.msra.mxu0 0.0
        %1863 = vmatprep.subr.mxu0 0.0
        %1864 = vmatpush1.msra.mxu0 0.0
        %1865 = vmatprep.subr.mxu0 0.0
        %1866 = vmatpush1.msra.mxu0 0.0
        %1867 = vmatprep.subr.mxu0 0.0
        %1868 = vmatpush1.msra.mxu0 %v1839
        %1869 = vmatprep.subr.mxu0 0.0
        %1870 = vmatpush1.msra.mxu0 %v1825
        %1871 = vmatprep.subr.mxu0 0.0
        %1872 = vmatpush1.msra.mxu0 %v1823
        %1873 = vmatprep.subr.mxu0 0.0
        %1874 = vmatpush2.msra.mxu0 0.0
        %1875 = vmatprep.subr.mxu0 0.0
        %1876 = vmatpush2.msra.mxu0 0.0
        %1877 = vmatprep.subr.mxu0 0.0
        %1878 = vmatpush2.msra.mxu0 0.0
        %1879 = vmatprep.subr.mxu0 0.0
        %1880 = vmatpush2.msra.mxu0 0.0
        %1881 = vmatprep.subr.mxu0 0.0
        %1882 = vmatpush2.msra.mxu0 0.0
        %1883 = vmatprep.subr.mxu0 0.0
        %1884 = vmatpush2.msra.mxu0 0.0
        %1885 = vmatprep.subr.mxu0 0.0
        %1886 = vmatpush2.msra.mxu0 0.0
        %1887 = vmatprep.subr.mxu0 0.0
        %1888 = vmatpush2.msra.mxu0 0.0
        %1889 = vmatprep.subr.mxu0 0.0
        %1890 = vmatpush2.msra.mxu0 0.0
        %1891 = vmatprep.subr.mxu0 0.0
        %1892 = vmatpush2.msra.mxu0 0.0
        %1893 = vmatprep.subr.mxu0 0.0
        %1894 = vmatpush2.msra.mxu0 0.0
        %1895 = vmatprep.subr.mxu0 0.0
        %1896 = vmatpush2.msra.mxu0 0.0
        %1897 = vmatprep.subr.mxu0 0.0
        %1898 = vmatpush2.msra.mxu0 0.0
        %1899 = vmatprep.subr.mxu0 0.0
        %1900 = vmatpush2.msra.mxu0 0.0
        %1901 = vmatprep.subr.mxu0 0.0
        %1902 = vmatpush2.msra.mxu0 0.0
        %1903 = vmatprep.subr.mxu0 0.0
        %1904 = vmatpush2.msra.mxu0 0.0
        %1905 = vmatprep.mubr.f32.mxu0 0.0
        %1906 = vmatmul.mubr.f32.gmra.mxu0 %v1831
        %v1907 = vpop.f32.mrf.mxu0
        %v1908 = vadd.f32 0.0, %v1907
        %v1909 = vpop.f32.mrf.mxu0
        %1910 = vmatprep.mubr.f32.mxu0 0.0
        %1911 = vmatmul.mubr.f32.gmra.mxu0 %v1834
        %v1912 = vpop.f32.mrf.mxu0
        %v1913 = vadd.f32 0.0, %v1912
        %v1914 = vpop.f32.mrf.mxu0
        %1915 = vmatprep.mubr.f32.mxu0 0.0
        %1916 = vmatmul.mubr.f32.gmra.mxu0 %v1837
        %v1917 = vpop.f32.mrf.mxu0
        %v1918 = vadd.f32 0.0, %v1917
        %v1919 = vpop.f32.mrf.mxu0
        %1920 = vdwg.mxu0
        %1924 = vrot.lane.b32.xlu0 %v1710, 8
        %v1925 = vpop.permute.xlu0 %1924
        %1926 = vrot.lane.b32.xlu0 %v1715, 8
        %v1927 = vpop.permute.xlu0 %1926
        %1928 = vrot.lane.b32.xlu0 %v1720, 8
        %v1929 = vpop.permute.xlu0 %1928
        %1936 = vrot.lane.b32.xlu0 %v1809, 16
        %v1937 = vpop.permute.xlu0 %1936
        %1938 = vrot.lane.b32.xlu0 %v1814, 16
        %v1939 = vpop.permute.xlu0 %1938
        %1940 = vrot.lane.b32.xlu0 %v1819, 16
        %v1941 = vpop.permute.xlu0 %1940
        %1948 = vrot.lane.b32.xlu0 %v1908, 24
        %v1949 = vpop.permute.xlu0 %1948
        %1950 = vrot.lane.b32.xlu0 %v1913, 24
        %v1951 = vpop.permute.xlu0 %1950
        %1952 = vrot.lane.b32.xlu0 %v1918, 24
        %v1953 = vpop.permute.xlu0 %1952
        %v1957 = vsel %vm1003, %v1611, %v1925
        %v1958 = vsel %vm1003, %v1616, %v1927
        %v1959 = vsel %vm1003, %v1621, %v1929
        %vm1960 = vcmask 130048
        %v1961 = vsel %vm1960, %v1957, %v1937
        %v1962 = vsel %vm1960, %v1958, %v1939
        %v1963 = vsel %vm1960, %v1959, %v1941
        %vm1964 = vcmask 195584
        %v1965 = vsel %vm1964, %v1961, %v1949
        %v1966 = vsel %vm1964, %v1962, %v1951
        %v1967 = vsel %vm1964, %v1963, %v1953
        %v1968 = vld [vmem:[%s8] sm:$0xff]
        %v1969 = vld [vmem:[%s8 + $0x8] sm:$0xff]
        %v1970 = vld [vmem:[%s8 + $0x10] sm:$0xff]
        %v1971 = vld [vmem:[%s8 + $0x18] sm:$0xff]
        %v1973 = vsel %vm632, %v1965, 0
        %v1976 = vsel %vm632, %v1966, 0
        %v1979 = vsel %vm632, %v1967, 0
        %1981 = vmatprep.subr.mxu0 0.0
        %1982 = vmatpush1.msra.mxu0 0.0
        %1983 = vmatprep.subr.mxu0 0.0
        %1984 = vmatpush1.msra.mxu0 0.0
        %1985 = vmatprep.subr.mxu0 0.0
        %1986 = vmatpush1.msra.mxu0 0.0
        %1987 = vmatprep.subr.mxu0 0.0
        %1988 = vmatpush1.msra.mxu0 0.0
        %1989 = vmatprep.subr.mxu0 0.0
        %1990 = vmatpush1.msra.mxu0 0.0
        %1991 = vmatprep.subr.mxu0 0.0
        %1992 = vmatpush1.msra.mxu0 0.0
        %1993 = vmatprep.subr.mxu0 0.0
        %1994 = vmatpush1.msra.mxu0 0.0
        %1995 = vmatprep.subr.mxu0 0.0
        %1996 = vmatpush1.msra.mxu0 0.0
        %1997 = vmatprep.subr.mxu0 0.0
        %1998 = vmatpush1.msra.mxu0 0.0
        %1999 = vmatprep.subr.mxu0 0.0
        %2000 = vmatpush1.msra.mxu0 0.0
        %2001 = vmatprep.subr.mxu0 0.0
        %2002 = vmatpush1.msra.mxu0 0.0
        %2003 = vmatprep.subr.mxu0 0.0
        %2004 = vmatpush1.msra.mxu0 0.0
        %2005 = vmatprep.subr.mxu0 0.0
        %2006 = vmatpush1.msra.mxu0 %v1971
        %2007 = vmatprep.subr.mxu0 0.0
        %2008 = vmatpush1.msra.mxu0 %v1970
        %2009 = vmatprep.subr.mxu0 0.0
        %2010 = vmatpush1.msra.mxu0 %v1969
        %2011 = vmatprep.subr.mxu0 0.0
        %2012 = vmatpush1.msra.mxu0 %v1968
        %2013 = vmatprep.subr.mxu0 0.0
        %2014 = vmatpush2.msra.mxu0 0.0
        %2015 = vmatprep.subr.mxu0 0.0
        %2016 = vmatpush2.msra.mxu0 0.0
        %2017 = vmatprep.subr.mxu0 0.0
        %2018 = vmatpush2.msra.mxu0 0.0
        %2019 = vmatprep.subr.mxu0 0.0
        %2020 = vmatpush2.msra.mxu0 0.0
        %2021 = vmatprep.subr.mxu0 0.0
        %2022 = vmatpush2.msra.mxu0 0.0
        %2023 = vmatprep.subr.mxu0 0.0
        %2024 = vmatpush2.msra.mxu0 0.0
        %2025 = vmatprep.subr.mxu0 0.0
        %2026 = vmatpush2.msra.mxu0 0.0
        %2027 = vmatprep.subr.mxu0 0.0
        %2028 = vmatpush2.msra.mxu0 0.0
        %2029 = vmatprep.subr.mxu0 0.0
        %2030 = vmatpush2.msra.mxu0 0.0
        %2031 = vmatprep.subr.mxu0 0.0
        %2032 = vmatpush2.msra.mxu0 0.0
        %2033 = vmatprep.subr.mxu0 0.0
        %2034 = vmatpush2.msra.mxu0 0.0
        %2035 = vmatprep.subr.mxu0 0.0
        %2036 = vmatpush2.msra.mxu0 0.0
        %2037 = vmatprep.subr.mxu0 0.0
        %2038 = vmatpush2.msra.mxu0 0.0
        %2039 = vmatprep.subr.mxu0 0.0
        %2040 = vmatpush2.msra.mxu0 0.0
        %2041 = vmatprep.subr.mxu0 0.0
        %2042 = vmatpush2.msra.mxu0 0.0
        %2043 = vmatprep.subr.mxu0 0.0
        %2044 = vmatpush2.msra.mxu0 0.0
        %2045 = vmatprep.mubr.f32.mxu0 0.0
        %2046 = vmatmul.mubr.f32.gmra.mxu0 %v1973
        %v2047 = vpop.f32.mrf.mxu0
        %v2048 = vadd.f32 0.0, %v2047
        %v2049 = vpop.f32.mrf.mxu0
        %2050 = vmatprep.mubr.f32.mxu0 0.0
        %2051 = vmatmul.mubr.f32.gmra.mxu0 %v1976
        %v2052 = vpop.f32.mrf.mxu0
        %v2053 = vadd.f32 0.0, %v2052
        %v2054 = vpop.f32.mrf.mxu0
        %2055 = vmatprep.mubr.f32.mxu0 0.0
        %2056 = vmatmul.mubr.f32.gmra.mxu0 %v1979
        %v2057 = vpop.f32.mrf.mxu0
        %v2058 = vadd.f32 0.0, %v2057
        %v2059 = vpop.f32.mrf.mxu0
        %2060 = vdwg.mxu0
        %v2061 = vadd.f32 %v610, %v2048
        %v2062 = vadd.f32 %v615, %v2053
        %v2063 = vadd.f32 %v620, %v2058
        %v2064 = vld [vmem:[%s9] sm:$0x1]
        %v2066 = vlaneseq
        %v2067 = vshrl.u32 %v2066, 7
        %v2068 = vsub.s32 0, %v2067
        %v2069 = vrot.slane %v2064, %v2068
        %v2071 = vadd.f32 %v2061, %v2069
        %v2072 = vadd.f32 %v2062, %v2069
        %v2073 = vadd.f32 %v2063, %v2069
        %v2074 = vsel %vm632, %v2071, 0.0
        %2075 = vadd.xlane.f32.xlu0 %v2074
        %v2076 = vpop.xlane.xlu0 %2075
        %v2077 = vsel %vm632, %v2072, 0.0
        %2078 = vadd.xlane.f32.xlu0 %v2077
        %v2079 = vpop.xlane.xlu0 %2078
        %v2080 = vsel %vm639, %v2073, 0.0
        %2081 = vadd.xlane.f32.xlu0 %v2080
        %v2082 = vpop.xlane.xlu0 %2081
        %v2083 = vmul.f32 %v2076, %v643
        %v2084 = vmul.f32 %v2079, %v643
        %v2085 = vmul.f32 %v2082, %v643
        %v2086 = vsub.f32 %v2071, %v2083
        %v2087 = vsub.f32 %v2072, %v2084
        %v2088 = vsub.f32 %v2073, %v2085
        %v2089 = vmul.f32 %v2086, %v2086
        %v2090 = vmul.f32 %v2087, %v2087
        %v2091 = vmul.f32 %v2088, %v2088
        %v2092 = vsel %vm632, %v2089, 0.0
        %2093 = vadd.xlane.f32.xlu0 %v2092
        %v2094 = vpop.xlane.xlu0 %2093
        %v2095 = vsel %vm632, %v2090, 0.0
        %2096 = vadd.xlane.f32.xlu0 %v2095
        %v2097 = vpop.xlane.xlu0 %2096
        %v2098 = vsel %vm639, %v2091, 0.0
        %2099 = vadd.xlane.f32.xlu0 %v2098
        %v2100 = vpop.xlane.xlu0 %2099
        %v2101 = vmul.f32 %v2094, %v643
        %v2102 = vmul.f32 %v2097, %v643
        %v2103 = vmul.f32 %v2100, %v643
        %v2104 = vadd.f32 %v2101, 1e-06
        %v2105 = vadd.f32 %v2102, 1e-06
        %v2106 = vadd.f32 %v2103, 1e-06
        %v2107 = vrsqrt.pop %v2104
        %v2108 = vrsqrt.pop %v2105
        %v2109 = vrsqrt.pop %v2106
        %v2110 = vmul.f32 %v2086, %v2107
        %v2111 = vmul.f32 %v2087, %v2108
        %v2112 = vmul.f32 %v2088, %v2109
        %v2113 = vld [vmem:[%s10] sm:$0xff]
        %v2114 = vld [vmem:[%s10 + $0x8] sm:$0xff]
        %v2115 = vld [vmem:[%s10 + $0x10] sm:$0xff]
        %v2116 = vld [vmem:[%s10 + $0x18] sm:$0xff]
        %v2117 = vld [vmem:[%s11] sm:$0x1]
        %v2119 = vlaneseq
        %v2120 = vshrl.u32 %v2119, 7
        %v2121 = vsub.s32 0, %v2120
        %v2122 = vrot.slane %v2117, %v2121
        %v2125 = vsel %vm632, %v2110, 0
        %v2128 = vsel %vm632, %v2111, 0
        %v2131 = vsel %vm632, %v2112, 0
        %2133 = vmatprep.subr.mxu0 0.0
        %2134 = vmatpush1.msra.mxu0 0.0
        %2135 = vmatprep.subr.mxu0 0.0
        %2136 = vmatpush1.msra.mxu0 0.0
        %2137 = vmatprep.subr.mxu0 0.0
        %2138 = vmatpush1.msra.mxu0 0.0
        %2139 = vmatprep.subr.mxu0 0.0
        %2140 = vmatpush1.msra.mxu0 0.0
        %2141 = vmatprep.subr.mxu0 0.0
        %2142 = vmatpush1.msra.mxu0 0.0
        %2143 = vmatprep.subr.mxu0 0.0
        %2144 = vmatpush1.msra.mxu0 0.0
        %2145 = vmatprep.subr.mxu0 0.0
        %2146 = vmatpush1.msra.mxu0 0.0
        %2147 = vmatprep.subr.mxu0 0.0
        %2148 = vmatpush1.msra.mxu0 0.0
        %2149 = vmatprep.subr.mxu0 0.0
        %2150 = vmatpush1.msra.mxu0 0.0
        %2151 = vmatprep.subr.mxu0 0.0
        %2152 = vmatpush1.msra.mxu0 0.0
        %2153 = vmatprep.subr.mxu0 0.0
        %2154 = vmatpush1.msra.mxu0 0.0
        %2155 = vmatprep.subr.mxu0 0.0
        %2156 = vmatpush1.msra.mxu0 0.0
        %2157 = vmatprep.subr.mxu0 0.0
        %2158 = vmatpush1.msra.mxu0 %v2116
        %2159 = vmatprep.subr.mxu0 0.0
        %2160 = vmatpush1.msra.mxu0 %v2115
        %2161 = vmatprep.subr.mxu0 0.0
        %2162 = vmatpush1.msra.mxu0 %v2114
        %2163 = vmatprep.subr.mxu0 0.0
        %2164 = vmatpush1.msra.mxu0 %v2113
        %2165 = vmatprep.subr.mxu0 0.0
        %2166 = vmatpush2.msra.mxu0 0.0
        %2167 = vmatprep.subr.mxu0 0.0
        %2168 = vmatpush2.msra.mxu0 0.0
        %2169 = vmatprep.subr.mxu0 0.0
        %2170 = vmatpush2.msra.mxu0 0.0
        %2171 = vmatprep.subr.mxu0 0.0
        %2172 = vmatpush2.msra.mxu0 0.0
        %2173 = vmatprep.subr.mxu0 0.0
        %2174 = vmatpush2.msra.mxu0 0.0
        %2175 = vmatprep.subr.mxu0 0.0
        %2176 = vmatpush2.msra.mxu0 0.0
        %2177 = vmatprep.subr.mxu0 0.0
        %2178 = vmatpush2.msra.mxu0 0.0
        %2179 = vmatprep.subr.mxu0 0.0
        %2180 = vmatpush2.msra.mxu0 0.0
        %2181 = vmatprep.subr.mxu0 0.0
        %2182 = vmatpush2.msra.mxu0 0.0
        %2183 = vmatprep.subr.mxu0 0.0
        %2184 = vmatpush2.msra.mxu0 0.0
        %2185 = vmatprep.subr.mxu0 0.0
        %2186 = vmatpush2.msra.mxu0 0.0
        %2187 = vmatprep.subr.mxu0 0.0
        %2188 = vmatpush2.msra.mxu0 0.0
        %2189 = vmatprep.subr.mxu0 0.0
        %2190 = vmatpush2.msra.mxu0 0.0
        %2191 = vmatprep.subr.mxu0 0.0
        %2192 = vmatpush2.msra.mxu0 0.0
        %2193 = vmatprep.subr.mxu0 0.0
        %2194 = vmatpush2.msra.mxu0 0.0
        %2195 = vmatprep.subr.mxu0 0.0
        %2196 = vmatpush2.msra.mxu0 0.0
        %2197 = vmatprep.mubr.f32.mxu0 0.0
        %2198 = vmatmul.mubr.f32.gmra.mxu0 %v2125
        %v2199 = vpop.f32.mrf.mxu0
        %v2200 = vadd.f32 %v2122, %v2199
        %v2201 = vpop.f32.mrf.mxu0
        %2202 = vmatprep.mubr.f32.mxu0 0.0
        %2203 = vmatmul.mubr.f32.gmra.mxu0 %v2128
        %v2204 = vpop.f32.mrf.mxu0
        %v2205 = vadd.f32 %v2122, %v2204
        %v2206 = vpop.f32.mrf.mxu0
        %2207 = vmatprep.mubr.f32.mxu0 0.0
        %2208 = vmatmul.mubr.f32.gmra.mxu0 %v2131
        %v2209 = vpop.f32.mrf.mxu0
        %v2210 = vadd.f32 %v2122, %v2209
        %v2211 = vpop.f32.mrf.mxu0
        %2212 = vdwg.mxu0
        %v2213 = vmul.f32 %v2200, 0.5
        %v2214 = vmul.f32 %v2205, 0.5
        %v2215 = vmul.f32 %v2210, 0.5
        %v2216 = vmul.f32 %v2200, 0.044715
        %v2217 = vmul.f32 %v2205, 0.044715
        %v2218 = vmul.f32 %v2210, 0.044715
        %v2219 = vmul.f32 %v2216, %v2200
        %v2220 = vmul.f32 %v2217, %v2205
        %v2221 = vmul.f32 %v2218, %v2210
        %v2222 = vmul.f32 %v2219, %v2200
        %v2223 = vmul.f32 %v2220, %v2205
        %v2224 = vmul.f32 %v2221, %v2210
        %v2225 = vadd.f32 %v2200, %v2222
        %v2226 = vadd.f32 %v2205, %v2223
        %v2227 = vadd.f32 %v2210, %v2224
        %v2228 = vmul.f32 %v2225, 0.7978846
        %v2229 = vmul.f32 %v2226, 0.7978846
        %v2230 = vmul.f32 %v2227, 0.7978846
        %v2231 = vtanh.pop %v2228
        %v2232 = vtanh.pop %v2229
        %v2233 = vtanh.pop %v2230
        %v2234 = vadd.f32 %v2231, 1.0
        %v2235 = vadd.f32 %v2232, 1.0
        %v2236 = vadd.f32 %v2233, 1.0
        %v2237 = vmul.f32 %v2213, %v2234
        %v2238 = vmul.f32 %v2214, %v2235
        %v2239 = vmul.f32 %v2215, %v2236
        %v2240 = vld [vmem:[%s12] sm:$0xff]
        %v2241 = vld [vmem:[%s12 + $0x8] sm:$0xff]
        %v2242 = vld [vmem:[%s12 + $0x10] sm:$0xff]
        %v2243 = vld [vmem:[%s12 + $0x18] sm:$0xff]
        %v2244 = vld [vmem:[%s12 + $0x20] sm:$0xff]
        %v2245 = vld [vmem:[%s12 + $0x28] sm:$0xff]
        %v2246 = vld [vmem:[%s12 + $0x30] sm:$0xff]
        %v2247 = vld [vmem:[%s12 + $0x38] sm:$0xff]
        %v2248 = vld [vmem:[%s12 + $0x40] sm:$0xff]
        %v2249 = vld [vmem:[%s12 + $0x48] sm:$0xff]
        %v2250 = vld [vmem:[%s12 + $0x50] sm:$0xff]
        %v2251 = vld [vmem:[%s12 + $0x58] sm:$0xff]
        %v2252 = vld [vmem:[%s12 + $0x60] sm:$0xff]
        %v2253 = vld [vmem:[%s12 + $0x68] sm:$0xff]
        %v2254 = vld [vmem:[%s12 + $0x70] sm:$0xff]
        %v2255 = vld [vmem:[%s12 + $0x78] sm:$0xff]
        %2256 = vmatprep.subr.mxu0 0.0
        %2257 = vmatpush1.msra.mxu0 %v2255
        %2258 = vmatprep.subr.mxu0 0.0
        %2259 = vmatpush1.msra.mxu0 %v2254
        %2260 = vmatprep.subr.mxu0 0.0
        %2261 = vmatpush1.msra.mxu0 %v2253
        %2262 = vmatprep.subr.mxu0 0.0
        %2263 = vmatpush1.msra.mxu0 %v2252
        %2264 = vmatprep.subr.mxu0 0.0
        %2265 = vmatpush1.msra.mxu0 %v2251
        %2266 = vmatprep.subr.mxu0 0.0
        %2267 = vmatpush1.msra.mxu0 %v2250
        %2268 = vmatprep.subr.mxu0 0.0
        %2269 = vmatpush1.msra.mxu0 %v2249
        %2270 = vmatprep.subr.mxu0 0.0
        %2271 = vmatpush1.msra.mxu0 %v2248
        %2272 = vmatprep.subr.mxu0 0.0
        %2273 = vmatpush1.msra.mxu0 %v2247
        %2274 = vmatprep.subr.mxu0 0.0
        %2275 = vmatpush1.msra.mxu0 %v2246
        %2276 = vmatprep.subr.mxu0 0.0
        %2277 = vmatpush1.msra.mxu0 %v2245
        %2278 = vmatprep.subr.mxu0 0.0
        %2279 = vmatpush1.msra.mxu0 %v2244
        %2280 = vmatprep.subr.mxu0 0.0
        %2281 = vmatpush1.msra.mxu0 %v2243
        %2282 = vmatprep.subr.mxu0 0.0
        %2283 = vmatpush1.msra.mxu0 %v2242
        %2284 = vmatprep.subr.mxu0 0.0
        %2285 = vmatpush1.msra.mxu0 %v2241
        %2286 = vmatprep.subr.mxu0 0.0
        %2287 = vmatpush1.msra.mxu0 %v2240
        %2288 = vmatprep.subr.mxu0 0.0
        %2289 = vmatpush2.msra.mxu0 0.0
        %2290 = vmatprep.subr.mxu0 0.0
        %2291 = vmatpush2.msra.mxu0 0.0
        %2292 = vmatprep.subr.mxu0 0.0
        %2293 = vmatpush2.msra.mxu0 0.0
        %2294 = vmatprep.subr.mxu0 0.0
        %2295 = vmatpush2.msra.mxu0 0.0
        %2296 = vmatprep.subr.mxu0 0.0
        %2297 = vmatpush2.msra.mxu0 0.0
        %2298 = vmatprep.subr.mxu0 0.0
        %2299 = vmatpush2.msra.mxu0 0.0
        %2300 = vmatprep.subr.mxu0 0.0
        %2301 = vmatpush2.msra.mxu0 0.0
        %2302 = vmatprep.subr.mxu0 0.0
        %2303 = vmatpush2.msra.mxu0 0.0
        %2304 = vmatprep.subr.mxu0 0.0
        %2305 = vmatpush2.msra.mxu0 0.0
        %2306 = vmatprep.subr.mxu0 0.0
        %2307 = vmatpush2.msra.mxu0 0.0
        %2308 = vmatprep.subr.mxu0 0.0
        %2309 = vmatpush2.msra.mxu0 0.0
        %2310 = vmatprep.subr.mxu0 0.0
        %2311 = vmatpush2.msra.mxu0 0.0
        %2312 = vmatprep.subr.mxu0 0.0
        %2313 = vmatpush2.msra.mxu0 0.0
        %2314 = vmatprep.subr.mxu0 0.0
        %2315 = vmatpush2.msra.mxu0 0.0
        %2316 = vmatprep.subr.mxu0 0.0
        %2317 = vmatpush2.msra.mxu0 0.0
        %2318 = vmatprep.subr.mxu0 0.0
        %2319 = vmatpush2.msra.mxu0 0.0
        %2320 = vmatprep.mubr.f32.mxu0 0.0
        %2321 = vmatmul.mubr.f32.gmra.mxu0 %v2237
        %v2322 = vpop.f32.mrf.mxu0
        %v2323 = vadd.f32 0.0, %v2322
        %v2324 = vpop.f32.mrf.mxu0
        %2325 = vmatprep.mubr.f32.mxu0 0.0
        %2326 = vmatmul.mubr.f32.gmra.mxu0 %v2238
        %v2327 = vpop.f32.mrf.mxu0
        %v2328 = vadd.f32 0.0, %v2327
        %v2329 = vpop.f32.mrf.mxu0
        %2330 = vmatprep.mubr.f32.mxu0 0.0
        %2331 = vmatmul.mubr.f32.gmra.mxu0 %v2239
        %v2332 = vpop.f32.mrf.mxu0
        %v2333 = vadd.f32 0.0, %v2332
        %v2334 = vpop.f32.mrf.mxu0
        %2335 = vdwg.mxu0
        %v2336 = vadd.f32 %v2071, %v2323
        %v2337 = vadd.f32 %v2072, %v2328
        %v2338 = vadd.f32 %v2073, %v2333
        %v2339 = vld [vmem:[%s13] sm:$0x1]
        %v2341 = vlaneseq
        %v2342 = vshrl.u32 %v2341, 7
        %v2343 = vsub.s32 0, %v2342
        %v2344 = vrot.slane %v2339, %v2343
        %v2346 = vadd.f32 %v2336, %v2344
        %v2347 = vadd.f32 %v2337, %v2344
        %v2348 = vadd.f32 %v2338, %v2344
        %v2349 = vsel %vm632, %v2346, 0.0
        %2350 = vadd.xlane.f32.xlu0 %v2349
        %v2351 = vpop.xlane.xlu0 %2350
        %v2352 = vsel %vm632, %v2347, 0.0
        %2353 = vadd.xlane.f32.xlu0 %v2352
        %v2354 = vpop.xlane.xlu0 %2353
        %v2355 = vsel %vm639, %v2348, 0.0
        %2356 = vadd.xlane.f32.xlu0 %v2355
        %v2357 = vpop.xlane.xlu0 %2356
        %v2358 = vmul.f32 %v2351, %v643
        %v2359 = vmul.f32 %v2354, %v643
        %v2360 = vmul.f32 %v2357, %v643
        %v2361 = vsub.f32 %v2346, %v2358
        %v2362 = vsub.f32 %v2347, %v2359
        %v2363 = vsub.f32 %v2348, %v2360
        %v2364 = vmul.f32 %v2361, %v2361
        %v2365 = vmul.f32 %v2362, %v2362
        %v2366 = vmul.f32 %v2363, %v2363
        %v2367 = vsel %vm632, %v2364, 0.0
        %2368 = vadd.xlane.f32.xlu0 %v2367
        %v2369 = vpop.xlane.xlu0 %2368
        %v2370 = vsel %vm632, %v2365, 0.0
        %2371 = vadd.xlane.f32.xlu0 %v2370
        %v2372 = vpop.xlane.xlu0 %2371
        %v2373 = vsel %vm639, %v2366, 0.0
        %2374 = vadd.xlane.f32.xlu0 %v2373
        %v2375 = vpop.xlane.xlu0 %2374
        %v2376 = vmul.f32 %v2369, %v643
        %v2377 = vmul.f32 %v2372, %v643
        %v2378 = vmul.f32 %v2375, %v643
        %v2379 = vadd.f32 %v2376, 1e-06
        %v2380 = vadd.f32 %v2377, 1e-06
        %v2381 = vadd.f32 %v2378, 1e-06
        %v2382 = vrsqrt.pop %v2379
        %v2383 = vrsqrt.pop %v2380
        %v2384 = vrsqrt.pop %v2381
        %v2385 = vmul.f32 %v2361, %v2382
        %v2386 = vmul.f32 %v2362, %v2383
        %v2387 = vmul.f32 %v2363, %v2384
        %s2388 = scalar_lea.vmem %s6, 32
        %v2389 = vld [vmem:[%s2388] sm:$0xff]
        %v2390 = vld [vmem:[%s2388 + $0x8] sm:$0xff]
        %v2391 = vld [vmem:[%s2388 + $0x10] sm:$0xff]
        %v2392 = vld [vmem:[%s2388 + $0x18] sm:$0xff]
        %s2393 = scalar_lea.vmem %s7, 1
        %v2394 = vld [vmem:[%s2393] sm:$0x1]
        %v2396 = vlaneseq
        %v2397 = vshrl.u32 %v2396, 7
        %v2398 = vsub.s32 0, %v2397
        %v2399 = vrot.slane %v2394, %v2398
        %v2402 = vsel %vm632, %v2385, 0
        %v2405 = vsel %vm632, %v2386, 0
        %v2408 = vsel %vm632, %v2387, 0
        %2410 = vmatprep.subr.mxu0 0.0
        %2411 = vmatpush1.msra.mxu0 0.0
        %2412 = vmatprep.subr.mxu0 0.0
        %2413 = vmatpush1.msra.mxu0 0.0
        %2414 = vmatprep.subr.mxu0 0.0
        %2415 = vmatpush1.msra.mxu0 0.0
        %2416 = vmatprep.subr.mxu0 0.0
        %2417 = vmatpush1.msra.mxu0 0.0
        %2418 = vmatprep.subr.mxu0 0.0
        %2419 = vmatpush1.msra.mxu0 0.0
        %2420 = vmatprep.subr.mxu0 0.0
        %2421 = vmatpush1.msra.mxu0 0.0
        %2422 = vmatprep.subr.mxu0 0.0
        %2423 = vmatpush1.msra.mxu0 0.0
        %2424 = vmatprep.subr.mxu0 0.0
        %2425 = vmatpush1.msra.mxu0 0.0
        %2426 = vmatprep.subr.mxu0 0.0
        %2427 = vmatpush1.msra.mxu0 0.0
        %2428 = vmatprep.subr.mxu0 0.0
        %2429 = vmatpush1.msra.mxu0 0.0
        %2430 = vmatprep.subr.mxu0 0.0
        %2431 = vmatpush1.msra.mxu0 0.0
        %2432 = vmatprep.subr.mxu0 0.0
        %2433 = vmatpush1.msra.mxu0 0.0
        %2434 = vmatprep.subr.mxu0 0.0
        %2435 = vmatpush1.msra.mxu0 %v2392
        %2436 = vmatprep.subr.mxu0 0.0
        %2437 = vmatpush1.msra.mxu0 %v2391
        %2438 = vmatprep.subr.mxu0 0.0
        %2439 = vmatpush1.msra.mxu0 %v2390
        %2440 = vmatprep.subr.mxu0 0.0
        %2441 = vmatpush1.msra.mxu0 %v2389
        %2442 = vmatprep.subr.mxu0 0.0
        %2443 = vmatpush2.msra.mxu0 0.0
        %2444 = vmatprep.subr.mxu0 0.0
        %2445 = vmatpush2.msra.mxu0 0.0
        %2446 = vmatprep.subr.mxu0 0.0
        %2447 = vmatpush2.msra.mxu0 0.0
        %2448 = vmatprep.subr.mxu0 0.0
        %2449 = vmatpush2.msra.mxu0 0.0
        %2450 = vmatprep.subr.mxu0 0.0
        %2451 = vmatpush2.msra.mxu0 0.0
        %2452 = vmatprep.subr.mxu0 0.0
        %2453 = vmatpush2.msra.mxu0 0.0
        %2454 = vmatprep.subr.mxu0 0.0
        %2455 = vmatpush2.msra.mxu0 0.0
        %2456 = vmatprep.subr.mxu0 0.0
        %2457 = vmatpush2.msra.mxu0 0.0
        %2458 = vmatprep.subr.mxu0 0.0
        %2459 = vmatpush2.msra.mxu0 0.0
        %2460 = vmatprep.subr.mxu0 0.0
        %2461 = vmatpush2.msra.mxu0 0.0
        %2462 = vmatprep.subr.mxu0 0.0
        %2463 = vmatpush2.msra.mxu0 0.0
        %2464 = vmatprep.subr.mxu0 0.0
        %2465 = vmatpush2.msra.mxu0 0.0
        %2466 = vmatprep.subr.mxu0 0.0
        %2467 = vmatpush2.msra.mxu0 0.0
        %2468 = vmatprep.subr.mxu0 0.0
        %2469 = vmatpush2.msra.mxu0 0.0
        %2470 = vmatprep.subr.mxu0 0.0
        %2471 = vmatpush2.msra.mxu0 0.0
        %2472 = vmatprep.subr.mxu0 0.0
        %2473 = vmatpush2.msra.mxu0 0.0
        %2474 = vmatprep.mubr.f32.mxu0 0.0
        %2475 = vmatmul.mubr.f32.gmra.mxu0 %v2402
        %v2476 = vpop.f32.mrf.mxu0
        %v2477 = vadd.f32 %v2399, %v2476
        %v2478 = vpop.f32.mrf.mxu0
        %2479 = vmatprep.mubr.f32.mxu0 0.0
        %2480 = vmatmul.mubr.f32.gmra.mxu0 %v2405
        %v2481 = vpop.f32.mrf.mxu0
        %v2482 = vadd.f32 %v2399, %v2481
        %v2483 = vpop.f32.mrf.mxu0
        %2484 = vmatprep.mubr.f32.mxu0 0.0
        %2485 = vmatmul.mubr.f32.gmra.mxu0 %v2408
        %v2486 = vpop.f32.mrf.mxu0
        %v2487 = vadd.f32 %v2399, %v2486
        %v2488 = vpop.f32.mrf.mxu0
        %2489 = vdwg.mxu0
        %2490 = vrot.lane.b32.xlu0 %v2477, 32
        %v2491 = vpop.permute.xlu0 %2490
        %v2492 = vsel %vm774, %v2491, %v2477
        %2493 = vrot.lane.b32.xlu0 %v2482, 32
        %v2494 = vpop.permute.xlu0 %2493
        %v2495 = vsel %vm774, %v2494, %v2482
        %2496 = vrot.lane.b32.xlu0 %v2487, 32
        %v2497 = vpop.permute.xlu0 %2496
        %v2498 = vsel %vm774, %v2497, %v2487
        %2499 = vrot.lane.b32.xlu0 %v2492, 32
        %v2500 = vpop.permute.xlu0 %2499
        %2501 = vrot.lane.b32.xlu0 %v2495, 32
        %v2502 = vpop.permute.xlu0 %2501
        %2503 = vrot.lane.b32.xlu0 %v2498, 32
        %v2504 = vpop.permute.xlu0 %2503
        %v2505 = vsel %vm774, %v2500, %v2477
        %v2506 = vsel %vm774, %v2502, %v2482
        %v2507 = vsel %vm774, %v2504, %v2487
        %v2508 = vmul.f32 %v2477, %v623
        %v2509 = vmul.f32 %v2482, %v624
        %v2510 = vmul.f32 %v2487, %v625
        %v2511 = vmul.f32 %v2505, %v800
        %v2512 = vmul.f32 %v2506, %v802
        %v2513 = vmul.f32 %v2507, %v804
        %2517 = vrot.lane.b32.xlu0 %v2511, 127
        %v2518 = vpop.permute.xlu0 %2517
        %2519 = vrot.lane.b32.xlu0 %v2512, 127
        %v2520 = vpop.permute.xlu0 %2519
        %2521 = vrot.lane.b32.xlu0 %v2513, 127
        %v2522 = vpop.permute.xlu0 %2521
        %v2526 = vadd.f32 %v2508, %v2518
        %v2527 = vadd.f32 %v2509, %v2520
        %v2528 = vadd.f32 %v2510, %v2522
        %v2529 = vmul.f32 %v2505, %v830
        %v2530 = vmul.f32 %v2506, %v832
        %v2531 = vmul.f32 %v2507, %v834
        %2535 = vrot.lane.b32.xlu0 %v2529, 97
        %v2536 = vpop.permute.xlu0 %2535
        %2537 = vrot.lane.b32.xlu0 %v2530, 97
        %v2538 = vpop.permute.xlu0 %2537
        %2539 = vrot.lane.b32.xlu0 %v2531, 97
        %v2540 = vpop.permute.xlu0 %2539
        %v2544 = vadd.f32 %v2526, %v2536
        %v2545 = vadd.f32 %v2527, %v2538
        %v2546 = vadd.f32 %v2528, %v2540
        %2550 = vrot.lane.b32.xlu0 %v2477, 96
        %v2551 = vpop.permute.xlu0 %2550
        %2552 = vrot.lane.b32.xlu0 %v2482, 96
        %v2553 = vpop.permute.xlu0 %2552
        %2554 = vrot.lane.b32.xlu0 %v2487, 96
        %v2555 = vpop.permute.xlu0 %2554
        %2559 = vrot.lane.b32.xlu0 %v2551, 32
        %v2560 = vpop.permute.xlu0 %2559
        %v2561 = vsel %vm774, %v2560, %v2551
        %2562 = vrot.lane.b32.xlu0 %v2553, 32
        %v2563 = vpop.permute.xlu0 %2562
        %v2564 = vsel %vm774, %v2563, %v2553
        %2565 = vrot.lane.b32.xlu0 %v2555, 32
        %v2566 = vpop.permute.xlu0 %2565
        %v2567 = vsel %vm774, %v2566, %v2555
        %2568 = vrot.lane.b32.xlu0 %v2561, 32
        %v2569 = vpop.permute.xlu0 %2568
        %2570 = vrot.lane.b32.xlu0 %v2564, 32
        %v2571 = vpop.permute.xlu0 %2570
        %2572 = vrot.lane.b32.xlu0 %v2567, 32
        %v2573 = vpop.permute.xlu0 %2572
        %v2574 = vsel %vm774, %v2569, %v2551
        %v2575 = vsel %vm774, %v2571, %v2553
        %v2576 = vsel %vm774, %v2573, %v2555
        %v2577 = vmul.f32 %v2477, %v890
        %v2578 = vmul.f32 %v2482, %v892
        %v2579 = vmul.f32 %v2487, %v894
        %v2580 = vmul.f32 %v2574, %v800
        %v2581 = vmul.f32 %v2575, %v802
        %v2582 = vmul.f32 %v2576, %v804
        %2586 = vrot.lane.b32.xlu0 %v2580, 31
        %v2587 = vpop.permute.xlu0 %2586
        %2588 = vrot.lane.b32.xlu0 %v2581, 31
        %v2589 = vpop.permute.xlu0 %2588
        %2590 = vrot.lane.b32.xlu0 %v2582, 31
        %v2591 = vpop.permute.xlu0 %2590
        %v2595 = vadd.f32 %v2577, %v2587
        %v2596 = vadd.f32 %v2578, %v2589
        %v2597 = vadd.f32 %v2579, %v2591
        %v2598 = vmul.f32 %v2574, %v830
        %v2599 = vmul.f32 %v2575, %v832
        %v2600 = vmul.f32 %v2576, %v834
        %2604 = vrot.lane.b32.xlu0 %v2598, 1
        %v2605 = vpop.permute.xlu0 %2604
        %2606 = vrot.lane.b32.xlu0 %v2599, 1
        %v2607 = vpop.permute.xlu0 %2606
        %2608 = vrot.lane.b32.xlu0 %v2600, 1
        %v2609 = vpop.permute.xlu0 %2608
        %v2613 = vadd.f32 %v2595, %v2605
        %v2614 = vadd.f32 %v2596, %v2607
        %v2615 = vadd.f32 %v2597, %v2609
        %2619 = vrot.lane.b32.xlu0 %v2544, 120
        %v2620 = vpop.permute.xlu0 %2619
        %2621 = vrot.lane.b32.xlu0 %v2545, 120
        %v2622 = vpop.permute.xlu0 %2621
        %2623 = vrot.lane.b32.xlu0 %v2546, 120
        %v2624 = vpop.permute.xlu0 %2623
        %2625 = vrot.lane.b32.xlu0 %v2544, 112
        %v2626 = vpop.permute.xlu0 %2625
        %2627 = vrot.lane.b32.xlu0 %v2545, 112
        %v2628 = vpop.permute.xlu0 %2627
        %2629 = vrot.lane.b32.xlu0 %v2546, 112
        %v2630 = vpop.permute.xlu0 %2629
        %2631 = vrot.lane.b32.xlu0 %v2544, 104
        %v2632 = vpop.permute.xlu0 %2631
        %2633 = vrot.lane.b32.xlu0 %v2545, 104
        %v2634 = vpop.permute.xlu0 %2633
        %2635 = vrot.lane.b32.xlu0 %v2546, 104
        %v2636 = vpop.permute.xlu0 %2635
        %2640 = vrot.lane.b32.xlu0 %v2613, 120
        %v2641 = vpop.permute.xlu0 %2640
        %2642 = vrot.lane.b32.xlu0 %v2614, 120
        %v2643 = vpop.permute.xlu0 %2642
        %2644 = vrot.lane.b32.xlu0 %v2615, 120
        %v2645 = vpop.permute.xlu0 %2644
        %2646 = vrot.lane.b32.xlu0 %v2613, 112
        %v2647 = vpop.permute.xlu0 %2646
        %2648 = vrot.lane.b32.xlu0 %v2614, 112
        %v2649 = vpop.permute.xlu0 %2648
        %2650 = vrot.lane.b32.xlu0 %v2615, 112
        %v2651 = vpop.permute.xlu0 %2650
        %2652 = vrot.lane.b32.xlu0 %v2613, 104
        %v2653 = vpop.permute.xlu0 %2652
        %2654 = vrot.lane.b32.xlu0 %v2614, 104
        %v2655 = vpop.permute.xlu0 %2654
        %2656 = vrot.lane.b32.xlu0 %v2615, 104
        %v2657 = vpop.permute.xlu0 %2656
        %2658 = vrot.lane.b32.xlu0 %v2477, 120
        %v2659 = vpop.permute.xlu0 %2658
        %2660 = vrot.lane.b32.xlu0 %v2482, 120
        %v2661 = vpop.permute.xlu0 %2660
        %2662 = vrot.lane.b32.xlu0 %v2487, 120
        %v2663 = vpop.permute.xlu0 %2662
        %2664 = vrot.lane.b32.xlu0 %v2477, 112
        %v2665 = vpop.permute.xlu0 %2664
        %2666 = vrot.lane.b32.xlu0 %v2482, 112
        %v2667 = vpop.permute.xlu0 %2666
        %2668 = vrot.lane.b32.xlu0 %v2487, 112
        %v2669 = vpop.permute.xlu0 %2668
        %2670 = vrot.lane.b32.xlu0 %v2477, 104
        %v2671 = vpop.permute.xlu0 %2670
        %2672 = vrot.lane.b32.xlu0 %v2482, 104
        %v2673 = vpop.permute.xlu0 %2672
        %2674 = vrot.lane.b32.xlu0 %v2487, 104
        %v2675 = vpop.permute.xlu0 %2674
        %2676 = vrot.lane.b32.xlu0 %v2613, 96
        %v2677 = vpop.permute.xlu0 %2676
        %2678 = vrot.lane.b32.xlu0 %v2614, 96
        %v2679 = vpop.permute.xlu0 %2678
        %2680 = vrot.lane.b32.xlu0 %v2615, 96
        %v2681 = vpop.permute.xlu0 %2680
        %v2682 = vsel %vm1003, %v2544, 0
        %v2684 = vsel %vm1003, %v2545, 0
        %v2686 = vsel %vm1003, %v2546, 0
        %v2688 = vsel %vm1003, %v2677, 0
        %v2690 = vsel %vm1003, %v2679, 0
        %v2692 = vsel %vm1003, %v2681, 0
        %2694 = vmatprep.subr.mxu0 0.0
        %2695 = vmatpush1.xpose.msra.mxu0 0.0
        %2696 = vmatprep.subr.mxu0 0.0
        %2697 = vmatpush1.xpose.msra.mxu0 0.0
        %2698 = vmatprep.subr.mxu0 0.0
        %2699 = vmatpush1.xpose.msra.mxu0 0.0
        %2700 = vmatprep.subr.mxu0 0.0
        %2701 = vmatpush1.xpose.msra.mxu0 0.0
        %2702 = vmatprep.subr.mxu0 0.0
        %2703 = vmatpush1.xpose.msra.mxu0 0.0
        %2704 = vmatprep.subr.mxu0 0.0
        %2705 = vmatpush1.xpose.msra.mxu0 0.0
        %2706 = vmatprep.subr.mxu0 0.0
        %2707 = vmatpush1.xpose.msra.mxu0 0.0
        %2708 = vmatprep.subr.mxu0 0.0
        %2709 = vmatpush1.xpose.msra.mxu0 0.0
        %2710 = vmatprep.subr.mxu0 0.0
        %2711 = vmatpush1.xpose.msra.mxu0 0.0
        %2712 = vmatprep.subr.mxu0 0.0
        %2713 = vmatpush1.xpose.msra.mxu0 0.0
        %2714 = vmatprep.subr.mxu0 0.0
        %2715 = vmatpush1.xpose.msra.mxu0 0.0
        %2716 = vmatprep.subr.mxu0 0.0
        %2717 = vmatpush1.xpose.msra.mxu0 0.0
        %2718 = vmatprep.subr.mxu0 0.0
        %2719 = vmatpush1.xpose.msra.mxu0 0.0
        %2720 = vmatprep.subr.mxu0 0.0
        %2721 = vmatpush1.xpose.msra.mxu0 %v2692
        %2722 = vmatprep.subr.mxu0 0.0
        %2723 = vmatpush1.xpose.msra.mxu0 %v2690
        %2724 = vmatprep.subr.mxu0 0.0
        %2725 = vmatpush1.xpose.msra.mxu0 %v2688
        %2726 = vmatprep.subr.mxu0 0.0
        %2727 = vmatpush2.xpose.msra.mxu0 0.0
        %2728 = vmatprep.subr.mxu0 0.0
        %2729 = vmatpush2.xpose.msra.mxu0 0.0
        %2730 = vmatprep.subr.mxu0 0.0
        %2731 = vmatpush2.xpose.msra.mxu0 0.0
        %2732 = vmatprep.subr.mxu0 0.0
        %2733 = vmatpush2.xpose.msra.mxu0 0.0
        %2734 = vmatprep.subr.mxu0 0.0
        %2735 = vmatpush2.xpose.msra.mxu0 0.0
        %2736 = vmatprep.subr.mxu0 0.0
        %2737 = vmatpush2.xpose.msra.mxu0 0.0
        %2738 = vmatprep.subr.mxu0 0.0
        %2739 = vmatpush2.xpose.msra.mxu0 0.0
        %2740 = vmatprep.subr.mxu0 0.0
        %2741 = vmatpush2.xpose.msra.mxu0 0.0
        %2742 = vmatprep.subr.mxu0 0.0
        %2743 = vmatpush2.xpose.msra.mxu0 0.0
        %2744 = vmatprep.subr.mxu0 0.0
        %2745 = vmatpush2.xpose.msra.mxu0 0.0
        %2746 = vmatprep.subr.mxu0 0.0
        %2747 = vmatpush2.xpose.msra.mxu0 0.0
        %2748 = vmatprep.subr.mxu0 0.0
        %2749 = vmatpush2.xpose.msra.mxu0 0.0
        %2750 = vmatprep.subr.mxu0 0.0
        %2751 = vmatpush2.xpose.msra.mxu0 0.0
        %2752 = vmatprep.subr.mxu0 0.0
        %2753 = vmatpush2.xpose.msra.mxu0 0.0
        %2754 = vmatprep.subr.mxu0 0.0
        %2755 = vmatpush2.xpose.msra.mxu0 0.0
        %2756 = vmatprep.subr.mxu0 0.0
        %2757 = vmatpush2.xpose.msra.mxu0 0.0
        %2758 = vmatprep.mubr.f32.mxu0 0.0
        %2759 = vmatmul.mubr.f32.gmra.mxu0 %v2682
        %v2760 = vpop.f32.mrf.mxu0
        %v2761 = vadd.f32 0.0, %v2760
        %v2762 = vpop.f32.mrf.mxu0
        %2763 = vmatprep.mubr.f32.mxu0 0.0
        %2764 = vmatmul.mubr.f32.gmra.mxu0 %v2684
        %v2765 = vpop.f32.mrf.mxu0
        %v2766 = vadd.f32 0.0, %v2765
        %v2767 = vpop.f32.mrf.mxu0
        %2768 = vmatprep.mubr.f32.mxu0 0.0
        %2769 = vmatmul.mubr.f32.gmra.mxu0 %v2686
        %v2770 = vpop.f32.mrf.mxu0
        %v2771 = vadd.f32 0.0, %v2770
        %v2772 = vpop.f32.mrf.mxu0
        %2773 = vdwg.mxu0
        %2774 = vrot.lane.b32.xlu0 %v2641, 96
        %v2775 = vpop.permute.xlu0 %2774
        %2776 = vrot.lane.b32.xlu0 %v2643, 96
        %v2777 = vpop.permute.xlu0 %2776
        %2778 = vrot.lane.b32.xlu0 %v2645, 96
        %v2779 = vpop.permute.xlu0 %2778
        %v2780 = vsel %vm1003, %v2620, 0
        %v2782 = vsel %vm1003, %v2622, 0
        %v2784 = vsel %vm1003, %v2624, 0
        %v2786 = vsel %vm1003, %v2775, 0
        %v2788 = vsel %vm1003, %v2777, 0
        %v2790 = vsel %vm1003, %v2779, 0
        %2792 = vmatprep.subr.mxu0 0.0
        %2793 = vmatpush1.xpose.msra.mxu0 0.0
        %2794 = vmatprep.subr.mxu0 0.0
        %2795 = vmatpush1.xpose.msra.mxu0 0.0
        %2796 = vmatprep.subr.mxu0 0.0
        %2797 = vmatpush1.xpose.msra.mxu0 0.0
        %2798 = vmatprep.subr.mxu0 0.0
        %2799 = vmatpush1.xpose.msra.mxu0 0.0
        %2800 = vmatprep.subr.mxu0 0.0
        %2801 = vmatpush1.xpose.msra.mxu0 0.0
        %2802 = vmatprep.subr.mxu0 0.0
        %2803 = vmatpush1.xpose.msra.mxu0 0.0
        %2804 = vmatprep.subr.mxu0 0.0
        %2805 = vmatpush1.xpose.msra.mxu0 0.0
        %2806 = vmatprep.subr.mxu0 0.0
        %2807 = vmatpush1.xpose.msra.mxu0 0.0
        %2808 = vmatprep.subr.mxu0 0.0
        %2809 = vmatpush1.xpose.msra.mxu0 0.0
        %2810 = vmatprep.subr.mxu0 0.0
        %2811 = vmatpush1.xpose.msra.mxu0 0.0
        %2812 = vmatprep.subr.mxu0 0.0
        %2813 = vmatpush1.xpose.msra.mxu0 0.0
        %2814 = vmatprep.subr.mxu0 0.0
        %2815 = vmatpush1.xpose.msra.mxu0 0.0
        %2816 = vmatprep.subr.mxu0 0.0
        %2817 = vmatpush1.xpose.msra.mxu0 0.0
        %2818 = vmatprep.subr.mxu0 0.0
        %2819 = vmatpush1.xpose.msra.mxu0 %v2790
        %2820 = vmatprep.subr.mxu0 0.0
        %2821 = vmatpush1.xpose.msra.mxu0 %v2788
        %2822 = vmatprep.subr.mxu0 0.0
        %2823 = vmatpush1.xpose.msra.mxu0 %v2786
        %2824 = vmatprep.subr.mxu0 0.0
        %2825 = vmatpush2.xpose.msra.mxu0 0.0
        %2826 = vmatprep.subr.mxu0 0.0
        %2827 = vmatpush2.xpose.msra.mxu0 0.0
        %2828 = vmatprep.subr.mxu0 0.0
        %2829 = vmatpush2.xpose.msra.mxu0 0.0
        %2830 = vmatprep.subr.mxu0 0.0
        %2831 = vmatpush2.xpose.msra.mxu0 0.0
        %2832 = vmatprep.subr.mxu0 0.0
        %2833 = vmatpush2.xpose.msra.mxu0 0.0
        %2834 = vmatprep.subr.mxu0 0.0
        %2835 = vmatpush2.xpose.msra.mxu0 0.0
        %2836 = vmatprep.subr.mxu0 0.0
        %2837 = vmatpush2.xpose.msra.mxu0 0.0
        %2838 = vmatprep.subr.mxu0 0.0
        %2839 = vmatpush2.xpose.msra.mxu0 0.0
        %2840 = vmatprep.subr.mxu0 0.0
        %2841 = vmatpush2.xpose.msra.mxu0 0.0
        %2842 = vmatprep.subr.mxu0 0.0
        %2843 = vmatpush2.xpose.msra.mxu0 0.0
        %2844 = vmatprep.subr.mxu0 0.0
        %2845 = vmatpush2.xpose.msra.mxu0 0.0
        %2846 = vmatprep.subr.mxu0 0.0
        %2847 = vmatpush2.xpose.msra.mxu0 0.0
        %2848 = vmatprep.subr.mxu0 0.0
        %2849 = vmatpush2.xpose.msra.mxu0 0.0
        %2850 = vmatprep.subr.mxu0 0.0
        %2851 = vmatpush2.xpose.msra.mxu0 0.0
        %2852 = vmatprep.subr.mxu0 0.0
        %2853 = vmatpush2.xpose.msra.mxu0 0.0
        %2854 = vmatprep.subr.mxu0 0.0
        %2855 = vmatpush2.xpose.msra.mxu0 0.0
        %2856 = vmatprep.mubr.f32.mxu0 0.0
        %2857 = vmatmul.mubr.f32.gmra.mxu0 %v2780
        %v2858 = vpop.f32.mrf.mxu0
        %v2859 = vadd.f32 0.0, %v2858
        %v2860 = vpop.f32.mrf.mxu0
        %2861 = vmatprep.mubr.f32.mxu0 0.0
        %2862 = vmatmul.mubr.f32.gmra.mxu0 %v2782
        %v2863 = vpop.f32.mrf.mxu0
        %v2864 = vadd.f32 0.0, %v2863
        %v2865 = vpop.f32.mrf.mxu0
        %2866 = vmatprep.mubr.f32.mxu0 0.0
        %2867 = vmatmul.mubr.f32.gmra.mxu0 %v2784
        %v2868 = vpop.f32.mrf.mxu0
        %v2869 = vadd.f32 0.0, %v2868
        %v2870 = vpop.f32.mrf.mxu0
        %2871 = vdwg.mxu0
        %2872 = vrot.lane.b32.xlu0 %v2647, 96
        %v2873 = vpop.permute.xlu0 %2872
        %2874 = vrot.lane.b32.xlu0 %v2649, 96
        %v2875 = vpop.permute.xlu0 %2874
        %2876 = vrot.lane.b32.xlu0 %v2651, 96
        %v2877 = vpop.permute.xlu0 %2876
        %v2878 = vsel %vm1003, %v2626, 0
        %v2880 = vsel %vm1003, %v2628, 0
        %v2882 = vsel %vm1003, %v2630, 0
        %v2884 = vsel %vm1003, %v2873, 0
        %v2886 = vsel %vm1003, %v2875, 0
        %v2888 = vsel %vm1003, %v2877, 0
        %2890 = vmatprep.subr.mxu0 0.0
        %2891 = vmatpush1.xpose.msra.mxu0 0.0
        %2892 = vmatprep.subr.mxu0 0.0
        %2893 = vmatpush1.xpose.msra.mxu0 0.0
        %2894 = vmatprep.subr.mxu0 0.0
        %2895 = vmatpush1.xpose.msra.mxu0 0.0
        %2896 = vmatprep.subr.mxu0 0.0
        %2897 = vmatpush1.xpose.msra.mxu0 0.0
        %2898 = vmatprep.subr.mxu0 0.0
        %2899 = vmatpush1.xpose.msra.mxu0 0.0
        %2900 = vmatprep.subr.mxu0 0.0
        %2901 = vmatpush1.xpose.msra.mxu0 0.0
        %2902 = vmatprep.subr.mxu0 0.0
        %2903 = vmatpush1.xpose.msra.mxu0 0.0
        %2904 = vmatprep.subr.mxu0 0.0
        %2905 = vmatpush1.xpose.msra.mxu0 0.0
        %2906 = vmatprep.subr.mxu0 0.0
        %2907 = vmatpush1.xpose.msra.mxu0 0.0
        %2908 = vmatprep.subr.mxu0 0.0
        %2909 = vmatpush1.xpose.msra.mxu0 0.0
        %2910 = vmatprep.subr.mxu0 0.0
        %2911 = vmatpush1.xpose.msra.mxu0 0.0
        %2912 = vmatprep.subr.mxu0 0.0
        %2913 = vmatpush1.xpose.msra.mxu0 0.0
        %2914 = vmatprep.subr.mxu0 0.0
        %2915 = vmatpush1.xpose.msra.mxu0 0.0
        %2916 = vmatprep.subr.mxu0 0.0
        %2917 = vmatpush1.xpose.msra.mxu0 %v2888
        %2918 = vmatprep.subr.mxu0 0.0
        %2919 = vmatpush1.xpose.msra.mxu0 %v2886
        %2920 = vmatprep.subr.mxu0 0.0
        %2921 = vmatpush1.xpose.msra.mxu0 %v2884
        %2922 = vmatprep.subr.mxu0 0.0
        %2923 = vmatpush2.xpose.msra.mxu0 0.0
        %2924 = vmatprep.subr.mxu0 0.0
        %2925 = vmatpush2.xpose.msra.mxu0 0.0
        %2926 = vmatprep.subr.mxu0 0.0
        %2927 = vmatpush2.xpose.msra.mxu0 0.0
        %2928 = vmatprep.subr.mxu0 0.0
        %2929 = vmatpush2.xpose.msra.mxu0 0.0
        %2930 = vmatprep.subr.mxu0 0.0
        %2931 = vmatpush2.xpose.msra.mxu0 0.0
        %2932 = vmatprep.subr.mxu0 0.0
        %2933 = vmatpush2.xpose.msra.mxu0 0.0
        %2934 = vmatprep.subr.mxu0 0.0
        %2935 = vmatpush2.xpose.msra.mxu0 0.0
        %2936 = vmatprep.subr.mxu0 0.0
        %2937 = vmatpush2.xpose.msra.mxu0 0.0
        %2938 = vmatprep.subr.mxu0 0.0
        %2939 = vmatpush2.xpose.msra.mxu0 0.0
        %2940 = vmatprep.subr.mxu0 0.0
        %2941 = vmatpush2.xpose.msra.mxu0 0.0
        %2942 = vmatprep.subr.mxu0 0.0
        %2943 = vmatpush2.xpose.msra.mxu0 0.0
        %2944 = vmatprep.subr.mxu0 0.0
        %2945 = vmatpush2.xpose.msra.mxu0 0.0
        %2946 = vmatprep.subr.mxu0 0.0
        %2947 = vmatpush2.xpose.msra.mxu0 0.0
        %2948 = vmatprep.subr.mxu0 0.0
        %2949 = vmatpush2.xpose.msra.mxu0 0.0
        %2950 = vmatprep.subr.mxu0 0.0
        %2951 = vmatpush2.xpose.msra.mxu0 0.0
        %2952 = vmatprep.subr.mxu0 0.0
        %2953 = vmatpush2.xpose.msra.mxu0 0.0
        %2954 = vmatprep.mubr.f32.mxu0 0.0
        %2955 = vmatmul.mubr.f32.gmra.mxu0 %v2878
        %v2956 = vpop.f32.mrf.mxu0
        %v2957 = vadd.f32 0.0, %v2956
        %v2958 = vpop.f32.mrf.mxu0
        %2959 = vmatprep.mubr.f32.mxu0 0.0
        %2960 = vmatmul.mubr.f32.gmra.mxu0 %v2880
        %v2961 = vpop.f32.mrf.mxu0
        %v2962 = vadd.f32 0.0, %v2961
        %v2963 = vpop.f32.mrf.mxu0
        %2964 = vmatprep.mubr.f32.mxu0 0.0
        %2965 = vmatmul.mubr.f32.gmra.mxu0 %v2882
        %v2966 = vpop.f32.mrf.mxu0
        %v2967 = vadd.f32 0.0, %v2966
        %v2968 = vpop.f32.mrf.mxu0
        %2969 = vdwg.mxu0
        %2970 = vrot.lane.b32.xlu0 %v2653, 96
        %v2971 = vpop.permute.xlu0 %2970
        %2972 = vrot.lane.b32.xlu0 %v2655, 96
        %v2973 = vpop.permute.xlu0 %2972
        %2974 = vrot.lane.b32.xlu0 %v2657, 96
        %v2975 = vpop.permute.xlu0 %2974
        %v2976 = vsel %vm1003, %v2632, 0
        %v2978 = vsel %vm1003, %v2634, 0
        %v2980 = vsel %vm1003, %v2636, 0
        %v2982 = vsel %vm1003, %v2971, 0
        %v2984 = vsel %vm1003, %v2973, 0
        %v2986 = vsel %vm1003, %v2975, 0
        %2988 = vmatprep.subr.mxu0 0.0
        %2989 = vmatpush1.xpose.msra.mxu0 0.0
        %2990 = vmatprep.subr.mxu0 0.0
        %2991 = vmatpush1.xpose.msra.mxu0 0.0
        %2992 = vmatprep.subr.mxu0 0.0
        %2993 = vmatpush1.xpose.msra.mxu0 0.0
        %2994 = vmatprep.subr.mxu0 0.0
        %2995 = vmatpush1.xpose.msra.mxu0 0.0
        %2996 = vmatprep.subr.mxu0 0.0
        %2997 = vmatpush1.xpose.msra.mxu0 0.0
        %2998 = vmatprep.subr.mxu0 0.0
        %2999 = vmatpush1.xpose.msra.mxu0 0.0
        %3000 = vmatprep.subr.mxu0 0.0
        %3001 = vmatpush1.xpose.msra.mxu0 0.0
        %3002 = vmatprep.subr.mxu0 0.0
        %3003 = vmatpush1.xpose.msra.mxu0 0.0
        %3004 = vmatprep.subr.mxu0 0.0
        %3005 = vmatpush1.xpose.msra.mxu0 0.0
        %3006 = vmatprep.subr.mxu0 0.0
        %3007 = vmatpush1.xpose.msra.mxu0 0.0
        %3008 = vmatprep.subr.mxu0 0.0
        %3009 = vmatpush1.xpose.msra.mxu0 0.0
        %3010 = vmatprep.subr.mxu0 0.0
        %3011 = vmatpush1.xpose.msra.mxu0 0.0
        %3012 = vmatprep.subr.mxu0 0.0
        %3013 = vmatpush1.xpose.msra.mxu0 0.0
        %3014 = vmatprep.subr.mxu0 0.0
        %3015 = vmatpush1.xpose.msra.mxu0 %v2986
        %3016 = vmatprep.subr.mxu0 0.0
        %3017 = vmatpush1.xpose.msra.mxu0 %v2984
        %3018 = vmatprep.subr.mxu0 0.0
        %3019 = vmatpush1.xpose.msra.mxu0 %v2982
        %3020 = vmatprep.subr.mxu0 0.0
        %3021 = vmatpush2.xpose.msra.mxu0 0.0
        %3022 = vmatprep.subr.mxu0 0.0
        %3023 = vmatpush2.xpose.msra.mxu0 0.0
        %3024 = vmatprep.subr.mxu0 0.0
        %3025 = vmatpush2.xpose.msra.mxu0 0.0
        %3026 = vmatprep.subr.mxu0 0.0
        %3027 = vmatpush2.xpose.msra.mxu0 0.0
        %3028 = vmatprep.subr.mxu0 0.0
        %3029 = vmatpush2.xpose.msra.mxu0 0.0
        %3030 = vmatprep.subr.mxu0 0.0
        %3031 = vmatpush2.xpose.msra.mxu0 0.0
        %3032 = vmatprep.subr.mxu0 0.0
        %3033 = vmatpush2.xpose.msra.mxu0 0.0
        %3034 = vmatprep.subr.mxu0 0.0
        %3035 = vmatpush2.xpose.msra.mxu0 0.0
        %3036 = vmatprep.subr.mxu0 0.0
        %3037 = vmatpush2.xpose.msra.mxu0 0.0
        %3038 = vmatprep.subr.mxu0 0.0
        %3039 = vmatpush2.xpose.msra.mxu0 0.0
        %3040 = vmatprep.subr.mxu0 0.0
        %3041 = vmatpush2.xpose.msra.mxu0 0.0
        %3042 = vmatprep.subr.mxu0 0.0
        %3043 = vmatpush2.xpose.msra.mxu0 0.0
        %3044 = vmatprep.subr.mxu0 0.0
        %3045 = vmatpush2.xpose.msra.mxu0 0.0
        %3046 = vmatprep.subr.mxu0 0.0
        %3047 = vmatpush2.xpose.msra.mxu0 0.0
        %3048 = vmatprep.subr.mxu0 0.0
        %3049 = vmatpush2.xpose.msra.mxu0 0.0
        %3050 = vmatprep.subr.mxu0 0.0
        %3051 = vmatpush2.xpose.msra.mxu0 0.0
        %3052 = vmatprep.mubr.f32.mxu0 0.0
        %3053 = vmatmul.mubr.f32.gmra.mxu0 %v2976
        %v3054 = vpop.f32.mrf.mxu0
        %v3055 = vadd.f32 0.0, %v3054
        %v3056 = vpop.f32.mrf.mxu0
        %3057 = vmatprep.mubr.f32.mxu0 0.0
        %3058 = vmatmul.mubr.f32.gmra.mxu0 %v2978
        %v3059 = vpop.f32.mrf.mxu0
        %v3060 = vadd.f32 0.0, %v3059
        %v3061 = vpop.f32.mrf.mxu0
        %3062 = vmatprep.mubr.f32.mxu0 0.0
        %3063 = vmatmul.mubr.f32.gmra.mxu0 %v2980
        %v3064 = vpop.f32.mrf.mxu0
        %v3065 = vadd.f32 0.0, %v3064
        %v3066 = vpop.f32.mrf.mxu0
        %3067 = vdwg.mxu0
        %v3068 = vsel %vm1390, %v2761, -inf
        %3069 = vmax.xlane.f32.xlu0 %v3068
        %v3070 = vpop.xlane.xlu0 %3069
        %v3071 = vsel %vm1390, %v2766, -inf
        %3072 = vmax.xlane.f32.xlu0 %v3071
        %v3073 = vpop.xlane.xlu0 %3072
        %v3074 = vsel %vm1397, %v2771, -inf
        %3075 = vmax.xlane.f32.xlu0 %v3074
        %v3076 = vpop.xlane.xlu0 %3075
        %v3077 = vsel %vm1390, %v2859, -inf
        %3078 = vmax.xlane.f32.xlu0 %v3077
        %v3079 = vpop.xlane.xlu0 %3078
        %v3080 = vsel %vm1390, %v2864, -inf
        %3081 = vmax.xlane.f32.xlu0 %v3080
        %v3082 = vpop.xlane.xlu0 %3081
        %v3083 = vsel %vm1397, %v2869, -inf
        %3084 = vmax.xlane.f32.xlu0 %v3083
        %v3085 = vpop.xlane.xlu0 %3084
        %v3086 = vsel %vm1390, %v2957, -inf
        %3087 = vmax.xlane.f32.xlu0 %v3086
        %v3088 = vpop.xlane.xlu0 %3087
        %v3089 = vsel %vm1390, %v2962, -inf
        %3090 = vmax.xlane.f32.xlu0 %v3089
        %v3091 = vpop.xlane.xlu0 %3090
        %v3092 = vsel %vm1397, %v2967, -inf
        %3093 = vmax.xlane.f32.xlu0 %v3092
        %v3094 = vpop.xlane.xlu0 %3093
        %v3095 = vsel %vm1390, %v3055, -inf
        %3096 = vmax.xlane.f32.xlu0 %v3095
        %v3097 = vpop.xlane.xlu0 %3096
        %v3098 = vsel %vm1390, %v3060, -inf
        %3099 = vmax.xlane.f32.xlu0 %v3098
        %v3100 = vpop.xlane.xlu0 %3099
        %v3101 = vsel %vm1397, %v3065, -inf
        %3102 = vmax.xlane.f32.xlu0 %v3101
        %v3103 = vpop.xlane.xlu0 %3102
        %v3104 = vsub.f32 %v2761, %v3070
        %v3105 = vsub.f32 %v2766, %v3073
        %v3106 = vsub.f32 %v2771, %v3076
        %v3107 = vsub.f32 %v2859, %v3079
        %v3108 = vsub.f32 %v2864, %v3082
        %v3109 = vsub.f32 %v2869, %v3085
        %v3110 = vsub.f32 %v2957, %v3088
        %v3111 = vsub.f32 %v2962, %v3091
        %v3112 = vsub.f32 %v2967, %v3094
        %v3113 = vsub.f32 %v3055, %v3097
        %v3114 = vsub.f32 %v3060, %v3100
        %v3115 = vsub.f32 %v3065, %v3103
        %v3116 = vmul.f32 %v3104, 1.442695
        %v3117 = vpow.pop %v3116
        %v3118 = vmul.f32 %v3105, 1.442695
        %v3119 = vpow.pop %v3118
        %v3120 = vmul.f32 %v3106, 1.442695
        %v3121 = vpow.pop %v3120
        %v3122 = vmul.f32 %v3107, 1.442695
        %v3123 = vpow.pop %v3122
        %v3124 = vmul.f32 %v3108, 1.442695
        %v3125 = vpow.pop %v3124
        %v3126 = vmul.f32 %v3109, 1.442695
        %v3127 = vpow.pop %v3126
        %v3128 = vmul.f32 %v3110, 1.442695
        %v3129 = vpow.pop %v3128
        %v3130 = vmul.f32 %v3111, 1.442695
        %v3131 = vpow.pop %v3130
        %v3132 = vmul.f32 %v3112, 1.442695
        %v3133 = vpow.pop %v3132
        %v3134 = vmul.f32 %v3113, 1.442695
        %v3135 = vpow.pop %v3134
        %v3136 = vmul.f32 %v3114, 1.442695
        %v3137 = vpow.pop %v3136
        %v3138 = vmul.f32 %v3115, 1.442695
        %v3139 = vpow.pop %v3138
        %v3140 = vsel %vm1390, %v3117, 0.0
        %3141 = vadd.xlane.f32.xlu0 %v3140
        %v3142 = vpop.xlane.xlu0 %3141
        %v3143 = vsel %vm1390, %v3119, 0.0
        %3144 = vadd.xlane.f32.xlu0 %v3143
        %v3145 = vpop.xlane.xlu0 %3144
        %v3146 = vsel %vm1397, %v3121, 0.0
        %3147 = vadd.xlane.f32.xlu0 %v3146
        %v3148 = vpop.xlane.xlu0 %3147
        %v3149 = vsel %vm1390, %v3123, 0.0
        %3150 = vadd.xlane.f32.xlu0 %v3149
        %v3151 = vpop.xlane.xlu0 %3150
        %v3152 = vsel %vm1390, %v3125, 0.0
        %3153 = vadd.xlane.f32.xlu0 %v3152
        %v3154 = vpop.xlane.xlu0 %3153
        %v3155 = vsel %vm1397, %v3127, 0.0
        %3156 = vadd.xlane.f32.xlu0 %v3155
        %v3157 = vpop.xlane.xlu0 %3156
        %v3158 = vsel %vm1390, %v3129, 0.0
        %3159 = vadd.xlane.f32.xlu0 %v3158
        %v3160 = vpop.xlane.xlu0 %3159
        %v3161 = vsel %vm1390, %v3131, 0.0
        %3162 = vadd.xlane.f32.xlu0 %v3161
        %v3163 = vpop.xlane.xlu0 %3162
        %v3164 = vsel %vm1397, %v3133, 0.0
        %3165 = vadd.xlane.f32.xlu0 %v3164
        %v3166 = vpop.xlane.xlu0 %3165
        %v3167 = vsel %vm1390, %v3135, 0.0
        %3168 = vadd.xlane.f32.xlu0 %v3167
        %v3169 = vpop.xlane.xlu0 %3168
        %v3170 = vsel %vm1390, %v3137, 0.0
        %3171 = vadd.xlane.f32.xlu0 %v3170
        %v3172 = vpop.xlane.xlu0 %3171
        %v3173 = vsel %vm1397, %v3139, 0.0
        %3174 = vadd.xlane.f32.xlu0 %v3173
        %v3175 = vpop.xlane.xlu0 %3174
        %v3176 = vrcp.pop %v3142
        %v3177 = vrcp.pop %v3145
        %v3178 = vrcp.pop %v3148
        %v3179 = vrcp.pop %v3151
        %v3180 = vrcp.pop %v3154
        %v3181 = vrcp.pop %v3157
        %v3182 = vrcp.pop %v3160
        %v3183 = vrcp.pop %v3163
        %v3184 = vrcp.pop %v3166
        %v3185 = vrcp.pop %v3169
        %v3186 = vrcp.pop %v3172
        %v3187 = vrcp.pop %v3175
        %v3188 = vmul.f32 %v3117, %v3176
        %v3189 = vmul.f32 %v3119, %v3177
        %v3190 = vmul.f32 %v3121, %v3178
        %v3191 = vmul.f32 %v3123, %v3179
        %v3192 = vmul.f32 %v3125, %v3180
        %v3193 = vmul.f32 %v3127, %v3181
        %v3194 = vmul.f32 %v3129, %v3182
        %v3195 = vmul.f32 %v3131, %v3183
        %v3196 = vmul.f32 %v3133, %v3184
        %v3197 = vmul.f32 %v3135, %v3185
        %v3198 = vmul.f32 %v3137, %v3186
        %v3199 = vmul.f32 %v3139, %v3187
        %3200 = vrot.lane.b32.xlu0 %v2477, 64
        %v3201 = vpop.permute.xlu0 %3200
        %3202 = vrot.lane.b32.xlu0 %v2482, 64
        %v3203 = vpop.permute.xlu0 %3202
        %3204 = vrot.lane.b32.xlu0 %v2487, 64
        %v3205 = vpop.permute.xlu0 %3204
        %v3209 = vsel %vm1390, %v3188, 0
        %v3212 = vsel %vm1390, %v3189, 0
        %v3215 = vsel %vm1390, %v3190, 0
        %v3217 = vsel %vm1541, %v3205, 0
        %3219 = vmatprep.subr.mxu0 0.0
        %3220 = vmatpush1.msra.mxu0 0.0
        %3221 = vmatprep.subr.mxu0 0.0
        %3222 = vmatpush1.msra.mxu0 0.0
        %3223 = vmatprep.subr.mxu0 0.0
        %3224 = vmatpush1.msra.mxu0 0.0
        %3225 = vmatprep.subr.mxu0 0.0
        %3226 = vmatpush1.msra.mxu0 0.0
        %3227 = vmatprep.subr.mxu0 0.0
        %3228 = vmatpush1.msra.mxu0 0.0
        %3229 = vmatprep.subr.mxu0 0.0
        %3230 = vmatpush1.msra.mxu0 0.0
        %3231 = vmatprep.subr.mxu0 0.0
        %3232 = vmatpush1.msra.mxu0 0.0
        %3233 = vmatprep.subr.mxu0 0.0
        %3234 = vmatpush1.msra.mxu0 0.0
        %3235 = vmatprep.subr.mxu0 0.0
        %3236 = vmatpush1.msra.mxu0 0.0
        %3237 = vmatprep.subr.mxu0 0.0
        %3238 = vmatpush1.msra.mxu0 0.0
        %3239 = vmatprep.subr.mxu0 0.0
        %3240 = vmatpush1.msra.mxu0 0.0
        %3241 = vmatprep.subr.mxu0 0.0
        %3242 = vmatpush1.msra.mxu0 0.0
        %3243 = vmatprep.subr.mxu0 0.0
        %3244 = vmatpush1.msra.mxu0 0.0
        %3245 = vmatprep.subr.mxu0 0.0
        %3246 = vmatpush1.msra.mxu0 %v3217
        %3247 = vmatprep.subr.mxu0 0.0
        %3248 = vmatpush1.msra.mxu0 %v3203
        %3249 = vmatprep.subr.mxu0 0.0
        %3250 = vmatpush1.msra.mxu0 %v3201
        %3251 = vmatprep.subr.mxu0 0.0
        %3252 = vmatpush2.msra.mxu0 0.0
        %3253 = vmatprep.subr.mxu0 0.0
        %3254 = vmatpush2.msra.mxu0 0.0
        %3255 = vmatprep.subr.mxu0 0.0
        %3256 = vmatpush2.msra.mxu0 0.0
        %3257 = vmatprep.subr.mxu0 0.0
        %3258 = vmatpush2.msra.mxu0 0.0
        %3259 = vmatprep.subr.mxu0 0.0
        %3260 = vmatpush2.msra.mxu0 0.0
        %3261 = vmatprep.subr.mxu0 0.0
        %3262 = vmatpush2.msra.mxu0 0.0
        %3263 = vmatprep.subr.mxu0 0.0
        %3264 = vmatpush2.msra.mxu0 0.0
        %3265 = vmatprep.subr.mxu0 0.0
        %3266 = vmatpush2.msra.mxu0 0.0
        %3267 = vmatprep.subr.mxu0 0.0
        %3268 = vmatpush2.msra.mxu0 0.0
        %3269 = vmatprep.subr.mxu0 0.0
        %3270 = vmatpush2.msra.mxu0 0.0
        %3271 = vmatprep.subr.mxu0 0.0
        %3272 = vmatpush2.msra.mxu0 0.0
        %3273 = vmatprep.subr.mxu0 0.0
        %3274 = vmatpush2.msra.mxu0 0.0
        %3275 = vmatprep.subr.mxu0 0.0
        %3276 = vmatpush2.msra.mxu0 0.0
        %3277 = vmatprep.subr.mxu0 0.0
        %3278 = vmatpush2.msra.mxu0 0.0
        %3279 = vmatprep.subr.mxu0 0.0
        %3280 = vmatpush2.msra.mxu0 0.0
        %3281 = vmatprep.subr.mxu0 0.0
        %3282 = vmatpush2.msra.mxu0 0.0
        %3283 = vmatprep.mubr.f32.mxu0 0.0
        %3284 = vmatmul.mubr.f32.gmra.mxu0 %v3209
        %v3285 = vpop.f32.mrf.mxu0
        %v3286 = vadd.f32 0.0, %v3285
        %v3287 = vpop.f32.mrf.mxu0
        %3288 = vmatprep.mubr.f32.mxu0 0.0
        %3289 = vmatmul.mubr.f32.gmra.mxu0 %v3212
        %v3290 = vpop.f32.mrf.mxu0
        %v3291 = vadd.f32 0.0, %v3290
        %v3292 = vpop.f32.mrf.mxu0
        %3293 = vmatprep.mubr.f32.mxu0 0.0
        %3294 = vmatmul.mubr.f32.gmra.mxu0 %v3215
        %v3295 = vpop.f32.mrf.mxu0
        %v3296 = vadd.f32 0.0, %v3295
        %v3297 = vpop.f32.mrf.mxu0
        %3298 = vdwg.mxu0
        %3299 = vrot.lane.b32.xlu0 %v2659, 64
        %v3300 = vpop.permute.xlu0 %3299
        %3301 = vrot.lane.b32.xlu0 %v2661, 64
        %v3302 = vpop.permute.xlu0 %3301
        %3303 = vrot.lane.b32.xlu0 %v2663, 64
        %v3304 = vpop.permute.xlu0 %3303
        %v3308 = vsel %vm1390, %v3191, 0
        %v3311 = vsel %vm1390, %v3192, 0
        %v3314 = vsel %vm1390, %v3193, 0
        %v3316 = vsel %vm1541, %v3304, 0
        %3318 = vmatprep.subr.mxu0 0.0
        %3319 = vmatpush1.msra.mxu0 0.0
        %3320 = vmatprep.subr.mxu0 0.0
        %3321 = vmatpush1.msra.mxu0 0.0
        %3322 = vmatprep.subr.mxu0 0.0
        %3323 = vmatpush1.msra.mxu0 0.0
        %3324 = vmatprep.subr.mxu0 0.0
        %3325 = vmatpush1.msra.mxu0 0.0
        %3326 = vmatprep.subr.mxu0 0.0
        %3327 = vmatpush1.msra.mxu0 0.0
        %3328 = vmatprep.subr.mxu0 0.0
        %3329 = vmatpush1.msra.mxu0 0.0
        %3330 = vmatprep.subr.mxu0 0.0
        %3331 = vmatpush1.msra.mxu0 0.0
        %3332 = vmatprep.subr.mxu0 0.0
        %3333 = vmatpush1.msra.mxu0 0.0
        %3334 = vmatprep.subr.mxu0 0.0
        %3335 = vmatpush1.msra.mxu0 0.0
        %3336 = vmatprep.subr.mxu0 0.0
        %3337 = vmatpush1.msra.mxu0 0.0
        %3338 = vmatprep.subr.mxu0 0.0
        %3339 = vmatpush1.msra.mxu0 0.0
        %3340 = vmatprep.subr.mxu0 0.0
        %3341 = vmatpush1.msra.mxu0 0.0
        %3342 = vmatprep.subr.mxu0 0.0
        %3343 = vmatpush1.msra.mxu0 0.0
        %3344 = vmatprep.subr.mxu0 0.0
        %3345 = vmatpush1.msra.mxu0 %v3316
        %3346 = vmatprep.subr.mxu0 0.0
        %3347 = vmatpush1.msra.mxu0 %v3302
        %3348 = vmatprep.subr.mxu0 0.0
        %3349 = vmatpush1.msra.mxu0 %v3300
        %3350 = vmatprep.subr.mxu0 0.0
        %3351 = vmatpush2.msra.mxu0 0.0
        %3352 = vmatprep.subr.mxu0 0.0
        %3353 = vmatpush2.msra.mxu0 0.0
        %3354 = vmatprep.subr.mxu0 0.0
        %3355 = vmatpush2.msra.mxu0 0.0
        %3356 = vmatprep.subr.mxu0 0.0
        %3357 = vmatpush2.msra.mxu0 0.0
        %3358 = vmatprep.subr.mxu0 0.0
        %3359 = vmatpush2.msra.mxu0 0.0
        %3360 = vmatprep.subr.mxu0 0.0
        %3361 = vmatpush2.msra.mxu0 0.0
        %3362 = vmatprep.subr.mxu0 0.0
        %3363 = vmatpush2.msra.mxu0 0.0
        %3364 = vmatprep.subr.mxu0 0.0
        %3365 = vmatpush2.msra.mxu0 0.0
        %3366 = vmatprep.subr.mxu0 0.0
        %3367 = vmatpush2.msra.mxu0 0.0
        %3368 = vmatprep.subr.mxu0 0.0
        %3369 = vmatpush2.msra.mxu0 0.0
        %3370 = vmatprep.subr.mxu0 0.0
        %3371 = vmatpush2.msra.mxu0 0.0
        %3372 = vmatprep.subr.mxu0 0.0
        %3373 = vmatpush2.msra.mxu0 0.0
        %3374 = vmatprep.subr.mxu0 0.0
        %3375 = vmatpush2.msra.mxu0 0.0
        %3376 = vmatprep.subr.mxu0 0.0
        %3377 = vmatpush2.msra.mxu0 0.0
        %3378 = vmatprep.subr.mxu0 0.0
        %3379 = vmatpush2.msra.mxu0 0.0
        %3380 = vmatprep.subr.mxu0 0.0
        %3381 = vmatpush2.msra.mxu0 0.0
        %3382 = vmatprep.mubr.f32.mxu0 0.0
        %3383 = vmatmul.mubr.f32.gmra.mxu0 %v3308
        %v3384 = vpop.f32.mrf.mxu0
        %v3385 = vadd.f32 0.0, %v3384
        %v3386 = vpop.f32.mrf.mxu0
        %3387 = vmatprep.mubr.f32.mxu0 0.0
        %3388 = vmatmul.mubr.f32.gmra.mxu0 %v3311
        %v3389 = vpop.f32.mrf.mxu0
        %v3390 = vadd.f32 0.0, %v3389
        %v3391 = vpop.f32.mrf.mxu0
        %3392 = vmatprep.mubr.f32.mxu0 0.0
        %3393 = vmatmul.mubr.f32.gmra.mxu0 %v3314
        %v3394 = vpop.f32.mrf.mxu0
        %v3395 = vadd.f32 0.0, %v3394
        %v3396 = vpop.f32.mrf.mxu0
        %3397 = vdwg.mxu0
        %3398 = vrot.lane.b32.xlu0 %v2665, 64
        %v3399 = vpop.permute.xlu0 %3398
        %3400 = vrot.lane.b32.xlu0 %v2667, 64
        %v3401 = vpop.permute.xlu0 %3400
        %3402 = vrot.lane.b32.xlu0 %v2669, 64
        %v3403 = vpop.permute.xlu0 %3402
        %v3407 = vsel %vm1390, %v3194, 0
        %v3410 = vsel %vm1390, %v3195, 0
        %v3413 = vsel %vm1390, %v3196, 0
        %v3415 = vsel %vm1541, %v3403, 0
        %3417 = vmatprep.subr.mxu0 0.0
        %3418 = vmatpush1.msra.mxu0 0.0
        %3419 = vmatprep.subr.mxu0 0.0
        %3420 = vmatpush1.msra.mxu0 0.0
        %3421 = vmatprep.subr.mxu0 0.0
        %3422 = vmatpush1.msra.mxu0 0.0
        %3423 = vmatprep.subr.mxu0 0.0
        %3424 = vmatpush1.msra.mxu0 0.0
        %3425 = vmatprep.subr.mxu0 0.0
        %3426 = vmatpush1.msra.mxu0 0.0
        %3427 = vmatprep.subr.mxu0 0.0
        %3428 = vmatpush1.msra.mxu0 0.0
        %3429 = vmatprep.subr.mxu0 0.0
        %3430 = vmatpush1.msra.mxu0 0.0
        %3431 = vmatprep.subr.mxu0 0.0
        %3432 = vmatpush1.msra.mxu0 0.0
        %3433 = vmatprep.subr.mxu0 0.0
        %3434 = vmatpush1.msra.mxu0 0.0
        %3435 = vmatprep.subr.mxu0 0.0
        %3436 = vmatpush1.msra.mxu0 0.0
        %3437 = vmatprep.subr.mxu0 0.0
        %3438 = vmatpush1.msra.mxu0 0.0
        %3439 = vmatprep.subr.mxu0 0.0
        %3440 = vmatpush1.msra.mxu0 0.0
        %3441 = vmatprep.subr.mxu0 0.0
        %3442 = vmatpush1.msra.mxu0 0.0
        %3443 = vmatprep.subr.mxu0 0.0
        %3444 = vmatpush1.msra.mxu0 %v3415
        %3445 = vmatprep.subr.mxu0 0.0
        %3446 = vmatpush1.msra.mxu0 %v3401
        %3447 = vmatprep.subr.mxu0 0.0
        %3448 = vmatpush1.msra.mxu0 %v3399
        %3449 = vmatprep.subr.mxu0 0.0
        %3450 = vmatpush2.msra.mxu0 0.0
        %3451 = vmatprep.subr.mxu0 0.0
        %3452 = vmatpush2.msra.mxu0 0.0
        %3453 = vmatprep.subr.mxu0 0.0
        %3454 = vmatpush2.msra.mxu0 0.0
        %3455 = vmatprep.subr.mxu0 0.0
        %3456 = vmatpush2.msra.mxu0 0.0
        %3457 = vmatprep.subr.mxu0 0.0
        %3458 = vmatpush2.msra.mxu0 0.0
        %3459 = vmatprep.subr.mxu0 0.0
        %3460 = vmatpush2.msra.mxu0 0.0
        %3461 = vmatprep.subr.mxu0 0.0
        %3462 = vmatpush2.msra.mxu0 0.0
        %3463 = vmatprep.subr.mxu0 0.0
        %3464 = vmatpush2.msra.mxu0 0.0
        %3465 = vmatprep.subr.mxu0 0.0
        %3466 = vmatpush2.msra.mxu0 0.0
        %3467 = vmatprep.subr.mxu0 0.0
        %3468 = vmatpush2.msra.mxu0 0.0
        %3469 = vmatprep.subr.mxu0 0.0
        %3470 = vmatpush2.msra.mxu0 0.0
        %3471 = vmatprep.subr.mxu0 0.0
        %3472 = vmatpush2.msra.mxu0 0.0
        %3473 = vmatprep.subr.mxu0 0.0
        %3474 = vmatpush2.msra.mxu0 0.0
        %3475 = vmatprep.subr.mxu0 0.0
        %3476 = vmatpush2.msra.mxu0 0.0
        %3477 = vmatprep.subr.mxu0 0.0
        %3478 = vmatpush2.msra.mxu0 0.0
        %3479 = vmatprep.subr.mxu0 0.0
        %3480 = vmatpush2.msra.mxu0 0.0
        %3481 = vmatprep.mubr.f32.mxu0 0.0
        %3482 = vmatmul.mubr.f32.gmra.mxu0 %v3407
        %v3483 = vpop.f32.mrf.mxu0
        %v3484 = vadd.f32 0.0, %v3483
        %v3485 = vpop.f32.mrf.mxu0
        %3486 = vmatprep.mubr.f32.mxu0 0.0
        %3487 = vmatmul.mubr.f32.gmra.mxu0 %v3410
        %v3488 = vpop.f32.mrf.mxu0
        %v3489 = vadd.f32 0.0, %v3488
        %v3490 = vpop.f32.mrf.mxu0
        %3491 = vmatprep.mubr.f32.mxu0 0.0
        %3492 = vmatmul.mubr.f32.gmra.mxu0 %v3413
        %v3493 = vpop.f32.mrf.mxu0
        %v3494 = vadd.f32 0.0, %v3493
        %v3495 = vpop.f32.mrf.mxu0
        %3496 = vdwg.mxu0
        %3497 = vrot.lane.b32.xlu0 %v2671, 64
        %v3498 = vpop.permute.xlu0 %3497
        %3499 = vrot.lane.b32.xlu0 %v2673, 64
        %v3500 = vpop.permute.xlu0 %3499
        %3501 = vrot.lane.b32.xlu0 %v2675, 64
        %v3502 = vpop.permute.xlu0 %3501
        %v3506 = vsel %vm1390, %v3197, 0
        %v3509 = vsel %vm1390, %v3198, 0
        %v3512 = vsel %vm1390, %v3199, 0
        %v3514 = vsel %vm1541, %v3502, 0
        %3516 = vmatprep.subr.mxu0 0.0
        %3517 = vmatpush1.msra.mxu0 0.0
        %3518 = vmatprep.subr.mxu0 0.0
        %3519 = vmatpush1.msra.mxu0 0.0
        %3520 = vmatprep.subr.mxu0 0.0
        %3521 = vmatpush1.msra.mxu0 0.0
        %3522 = vmatprep.subr.mxu0 0.0
        %3523 = vmatpush1.msra.mxu0 0.0
        %3524 = vmatprep.subr.mxu0 0.0
        %3525 = vmatpush1.msra.mxu0 0.0
        %3526 = vmatprep.subr.mxu0 0.0
        %3527 = vmatpush1.msra.mxu0 0.0
        %3528 = vmatprep.subr.mxu0 0.0
        %3529 = vmatpush1.msra.mxu0 0.0
        %3530 = vmatprep.subr.mxu0 0.0
        %3531 = vmatpush1.msra.mxu0 0.0
        %3532 = vmatprep.subr.mxu0 0.0
        %3533 = vmatpush1.msra.mxu0 0.0
        %3534 = vmatprep.subr.mxu0 0.0
        %3535 = vmatpush1.msra.mxu0 0.0
        %3536 = vmatprep.subr.mxu0 0.0
        %3537 = vmatpush1.msra.mxu0 0.0
        %3538 = vmatprep.subr.mxu0 0.0
        %3539 = vmatpush1.msra.mxu0 0.0
        %3540 = vmatprep.subr.mxu0 0.0
        %3541 = vmatpush1.msra.mxu0 0.0
        %3542 = vmatprep.subr.mxu0 0.0
        %3543 = vmatpush1.msra.mxu0 %v3514
        %3544 = vmatprep.subr.mxu0 0.0
        %3545 = vmatpush1.msra.mxu0 %v3500
        %3546 = vmatprep.subr.mxu0 0.0
        %3547 = vmatpush1.msra.mxu0 %v3498
        %3548 = vmatprep.subr.mxu0 0.0
        %3549 = vmatpush2.msra.mxu0 0.0
        %3550 = vmatprep.subr.mxu0 0.0
        %3551 = vmatpush2.msra.mxu0 0.0
        %3552 = vmatprep.subr.mxu0 0.0
        %3553 = vmatpush2.msra.mxu0 0.0
        %3554 = vmatprep.subr.mxu0 0.0
        %3555 = vmatpush2.msra.mxu0 0.0
        %3556 = vmatprep.subr.mxu0 0.0
        %3557 = vmatpush2.msra.mxu0 0.0
        %3558 = vmatprep.subr.mxu0 0.0
        %3559 = vmatpush2.msra.mxu0 0.0
        %3560 = vmatprep.subr.mxu0 0.0
        %3561 = vmatpush2.msra.mxu0 0.0
        %3562 = vmatprep.subr.mxu0 0.0
        %3563 = vmatpush2.msra.mxu0 0.0
        %3564 = vmatprep.subr.mxu0 0.0
        %3565 = vmatpush2.msra.mxu0 0.0
        %3566 = vmatprep.subr.mxu0 0.0
        %3567 = vmatpush2.msra.mxu0 0.0
        %3568 = vmatprep.subr.mxu0 0.0
        %3569 = vmatpush2.msra.mxu0 0.0
        %3570 = vmatprep.subr.mxu0 0.0
        %3571 = vmatpush2.msra.mxu0 0.0
        %3572 = vmatprep.subr.mxu0 0.0
        %3573 = vmatpush2.msra.mxu0 0.0
        %3574 = vmatprep.subr.mxu0 0.0
        %3575 = vmatpush2.msra.mxu0 0.0
        %3576 = vmatprep.subr.mxu0 0.0
        %3577 = vmatpush2.msra.mxu0 0.0
        %3578 = vmatprep.subr.mxu0 0.0
        %3579 = vmatpush2.msra.mxu0 0.0
        %3580 = vmatprep.mubr.f32.mxu0 0.0
        %3581 = vmatmul.mubr.f32.gmra.mxu0 %v3506
        %v3582 = vpop.f32.mrf.mxu0
        %v3583 = vadd.f32 0.0, %v3582
        %v3584 = vpop.f32.mrf.mxu0
        %3585 = vmatprep.mubr.f32.mxu0 0.0
        %3586 = vmatmul.mubr.f32.gmra.mxu0 %v3509
        %v3587 = vpop.f32.mrf.mxu0
        %v3588 = vadd.f32 0.0, %v3587
        %v3589 = vpop.f32.mrf.mxu0
        %3590 = vmatprep.mubr.f32.mxu0 0.0
        %3591 = vmatmul.mubr.f32.gmra.mxu0 %v3512
        %v3592 = vpop.f32.mrf.mxu0
        %v3593 = vadd.f32 0.0, %v3592
        %v3594 = vpop.f32.mrf.mxu0
        %3595 = vdwg.mxu0
        %3599 = vrot.lane.b32.xlu0 %v3385, 8
        %v3600 = vpop.permute.xlu0 %3599
        %3601 = vrot.lane.b32.xlu0 %v3390, 8
        %v3602 = vpop.permute.xlu0 %3601
        %3603 = vrot.lane.b32.xlu0 %v3395, 8
        %v3604 = vpop.permute.xlu0 %3603
        %3611 = vrot.lane.b32.xlu0 %v3484, 16
        %v3612 = vpop.permute.xlu0 %3611
        %3613 = vrot.lane.b32.xlu0 %v3489, 16
        %v3614 = vpop.permute.xlu0 %3613
        %3615 = vrot.lane.b32.xlu0 %v3494, 16
        %v3616 = vpop.permute.xlu0 %3615
        %3623 = vrot.lane.b32.xlu0 %v3583, 24
        %v3624 = vpop.permute.xlu0 %3623
        %3625 = vrot.lane.b32.xlu0 %v3588, 24
        %v3626 = vpop.permute.xlu0 %3625
        %3627 = vrot.lane.b32.xlu0 %v3593, 24
        %v3628 = vpop.permute.xlu0 %3627
        %v3632 = vsel %vm1003, %v3286, %v3600
        %v3633 = vsel %vm1003, %v3291, %v3602
        %v3634 = vsel %vm1003, %v3296, %v3604
        %v3635 = vsel %vm1960, %v3632, %v3612
        %v3636 = vsel %vm1960, %v3633, %v3614
        %v3637 = vsel %vm1960, %v3634, %v3616
        %v3638 = vsel %vm1964, %v3635, %v3624
        %v3639 = vsel %vm1964, %v3636, %v3626
        %v3640 = vsel %vm1964, %v3637, %v3628
        %s3641 = scalar_lea.vmem %s8, 32
        %v3642 = vld [vmem:[%s3641] sm:$0xff]
        %v3643 = vld [vmem:[%s3641 + $0x8] sm:$0xff]
        %v3644 = vld [vmem:[%s3641 + $0x10] sm:$0xff]
        %v3645 = vld [vmem:[%s3641 + $0x18] sm:$0xff]
        %v3647 = vsel %vm632, %v3638, 0
        %v3650 = vsel %vm632, %v3639, 0
        %v3653 = vsel %vm632, %v3640, 0
        %3655 = vmatprep.subr.mxu0 0.0
        %3656 = vmatpush1.msra.mxu0 0.0
        %3657 = vmatprep.subr.mxu0 0.0
        %3658 = vmatpush1.msra.mxu0 0.0
        %3659 = vmatprep.subr.mxu0 0.0
        %3660 = vmatpush1.msra.mxu0 0.0
        %3661 = vmatprep.subr.mxu0 0.0
        %3662 = vmatpush1.msra.mxu0 0.0
        %3663 = vmatprep.subr.mxu0 0.0
        %3664 = vmatpush1.msra.mxu0 0.0
        %3665 = vmatprep.subr.mxu0 0.0
        %3666 = vmatpush1.msra.mxu0 0.0
        %3667 = vmatprep.subr.mxu0 0.0
        %3668 = vmatpush1.msra.mxu0 0.0
        %3669 = vmatprep.subr.mxu0 0.0
        %3670 = vmatpush1.msra.mxu0 0.0
        %3671 = vmatprep.subr.mxu0 0.0
        %3672 = vmatpush1.msra.mxu0 0.0
        %3673 = vmatprep.subr.mxu0 0.0
        %3674 = vmatpush1.msra.mxu0 0.0
        %3675 = vmatprep.subr.mxu0 0.0
        %3676 = vmatpush1.msra.mxu0 0.0
        %3677 = vmatprep.subr.mxu0 0.0
        %3678 = vmatpush1.msra.mxu0 0.0
        %3679 = vmatprep.subr.mxu0 0.0
        %3680 = vmatpush1.msra.mxu0 %v3645
        %3681 = vmatprep.subr.mxu0 0.0
        %3682 = vmatpush1.msra.mxu0 %v3644
        %3683 = vmatprep.subr.mxu0 0.0
        %3684 = vmatpush1.msra.mxu0 %v3643
        %3685 = vmatprep.subr.mxu0 0.0
        %3686 = vmatpush1.msra.mxu0 %v3642
        %3687 = vmatprep.subr.mxu0 0.0
        %3688 = vmatpush2.msra.mxu0 0.0
        %3689 = vmatprep.subr.mxu0 0.0
        %3690 = vmatpush2.msra.mxu0 0.0
        %3691 = vmatprep.subr.mxu0 0.0
        %3692 = vmatpush2.msra.mxu0 0.0
        %3693 = vmatprep.subr.mxu0 0.0
        %3694 = vmatpush2.msra.mxu0 0.0
        %3695 = vmatprep.subr.mxu0 0.0
        %3696 = vmatpush2.msra.mxu0 0.0
        %3697 = vmatprep.subr.mxu0 0.0
        %3698 = vmatpush2.msra.mxu0 0.0
        %3699 = vmatprep.subr.mxu0 0.0
        %3700 = vmatpush2.msra.mxu0 0.0
        %3701 = vmatprep.subr.mxu0 0.0
        %3702 = vmatpush2.msra.mxu0 0.0
        %3703 = vmatprep.subr.mxu0 0.0
        %3704 = vmatpush2.msra.mxu0 0.0
        %3705 = vmatprep.subr.mxu0 0.0
        %3706 = vmatpush2.msra.mxu0 0.0
        %3707 = vmatprep.subr.mxu0 0.0
        %3708 = vmatpush2.msra.mxu0 0.0
        %3709 = vmatprep.subr.mxu0 0.0
        %3710 = vmatpush2.msra.mxu0 0.0
        %3711 = vmatprep.subr.mxu0 0.0
        %3712 = vmatpush2.msra.mxu0 0.0
        %3713 = vmatprep.subr.mxu0 0.0
        %3714 = vmatpush2.msra.mxu0 0.0
        %3715 = vmatprep.subr.mxu0 0.0
        %3716 = vmatpush2.msra.mxu0 0.0
        %3717 = vmatprep.subr.mxu0 0.0
        %3718 = vmatpush2.msra.mxu0 0.0
        %3719 = vmatprep.mubr.f32.mxu0 0.0
        %3720 = vmatmul.mubr.f32.gmra.mxu0 %v3647
        %v3721 = vpop.f32.mrf.mxu0
        %v3722 = vadd.f32 0.0, %v3721
        %v3723 = vpop.f32.mrf.mxu0
        %3724 = vmatprep.mubr.f32.mxu0 0.0
        %3725 = vmatmul.mubr.f32.gmra.mxu0 %v3650
        %v3726 = vpop.f32.mrf.mxu0
        %v3727 = vadd.f32 0.0, %v3726
        %v3728 = vpop.f32.mrf.mxu0
        %3729 = vmatprep.mubr.f32.mxu0 0.0
        %3730 = vmatmul.mubr.f32.gmra.mxu0 %v3653
        %v3731 = vpop.f32.mrf.mxu0
        %v3732 = vadd.f32 0.0, %v3731
        %v3733 = vpop.f32.mrf.mxu0
        %3734 = vdwg.mxu0
        %v3735 = vadd.f32 %v2346, %v3722
        %v3736 = vadd.f32 %v2347, %v3727
        %v3737 = vadd.f32 %v2348, %v3732
        %s3738 = scalar_lea.vmem %s9, 1
        %v3739 = vld [vmem:[%s3738] sm:$0x1]
        %v3741 = vlaneseq
        %v3742 = vshrl.u32 %v3741, 7
        %v3743 = vsub.s32 0, %v3742
        %v3744 = vrot.slane %v3739, %v3743
        %v3746 = vadd.f32 %v3735, %v3744
        %v3747 = vadd.f32 %v3736, %v3744
        %v3748 = vadd.f32 %v3737, %v3744
        %v3749 = vsel %vm632, %v3746, 0.0
        %3750 = vadd.xlane.f32.xlu0 %v3749
        %v3751 = vpop.xlane.xlu0 %3750
        %v3752 = vsel %vm632, %v3747, 0.0
        %3753 = vadd.xlane.f32.xlu0 %v3752
        %v3754 = vpop.xlane.xlu0 %3753
        %v3755 = vsel %vm639, %v3748, 0.0
        %3756 = vadd.xlane.f32.xlu0 %v3755
        %v3757 = vpop.xlane.xlu0 %3756
        %v3758 = vmul.f32 %v3751, %v643
        %v3759 = vmul.f32 %v3754, %v643
        %v3760 = vmul.f32 %v3757, %v643
        %v3761 = vsub.f32 %v3746, %v3758
        %v3762 = vsub.f32 %v3747, %v3759
        %v3763 = vsub.f32 %v3748, %v3760
        %v3764 = vmul.f32 %v3761, %v3761
        %v3765 = vmul.f32 %v3762, %v3762
        %v3766 = vmul.f32 %v3763, %v3763
        %v3767 = vsel %vm632, %v3764, 0.0
        %3768 = vadd.xlane.f32.xlu0 %v3767
        %v3769 = vpop.xlane.xlu0 %3768
        %v3770 = vsel %vm632, %v3765, 0.0
        %3771 = vadd.xlane.f32.xlu0 %v3770
        %v3772 = vpop.xlane.xlu0 %3771
        %v3773 = vsel %vm639, %v3766, 0.0
        %3774 = vadd.xlane.f32.xlu0 %v3773
        %v3775 = vpop.xlane.xlu0 %3774
        %v3776 = vmul.f32 %v3769, %v643
        %v3777 = vmul.f32 %v3772, %v643
        %v3778 = vmul.f32 %v3775, %v643
        %v3779 = vadd.f32 %v3776, 1e-06
        %v3780 = vadd.f32 %v3777, 1e-06
        %v3781 = vadd.f32 %v3778, 1e-06
        %v3782 = vrsqrt.pop %v3779
        %v3783 = vrsqrt.pop %v3780
        %v3784 = vrsqrt.pop %v3781
        %v3785 = vmul.f32 %v3761, %v3782
        %v3786 = vmul.f32 %v3762, %v3783
        %v3787 = vmul.f32 %v3763, %v3784
        %s3788 = scalar_lea.vmem %s10, 32
        %v3789 = vld [vmem:[%s3788] sm:$0xff]
        %v3790 = vld [vmem:[%s3788 + $0x8] sm:$0xff]
        %v3791 = vld [vmem:[%s3788 + $0x10] sm:$0xff]
        %v3792 = vld [vmem:[%s3788 + $0x18] sm:$0xff]
        %s3793 = scalar_lea.vmem %s11, 1
        %v3794 = vld [vmem:[%s3793] sm:$0x1]
        %v3796 = vlaneseq
        %v3797 = vshrl.u32 %v3796, 7
        %v3798 = vsub.s32 0, %v3797
        %v3799 = vrot.slane %v3794, %v3798
        %v3802 = vsel %vm632, %v3785, 0
        %v3805 = vsel %vm632, %v3786, 0
        %v3808 = vsel %vm632, %v3787, 0
        %3810 = vmatprep.subr.mxu0 0.0
        %3811 = vmatpush1.msra.mxu0 0.0
        %3812 = vmatprep.subr.mxu0 0.0
        %3813 = vmatpush1.msra.mxu0 0.0
        %3814 = vmatprep.subr.mxu0 0.0
        %3815 = vmatpush1.msra.mxu0 0.0
        %3816 = vmatprep.subr.mxu0 0.0
        %3817 = vmatpush1.msra.mxu0 0.0
        %3818 = vmatprep.subr.mxu0 0.0
        %3819 = vmatpush1.msra.mxu0 0.0
        %3820 = vmatprep.subr.mxu0 0.0
        %3821 = vmatpush1.msra.mxu0 0.0
        %3822 = vmatprep.subr.mxu0 0.0
        %3823 = vmatpush1.msra.mxu0 0.0
        %3824 = vmatprep.subr.mxu0 0.0
        %3825 = vmatpush1.msra.mxu0 0.0
        %3826 = vmatprep.subr.mxu0 0.0
        %3827 = vmatpush1.msra.mxu0 0.0
        %3828 = vmatprep.subr.mxu0 0.0
        %3829 = vmatpush1.msra.mxu0 0.0
        %3830 = vmatprep.subr.mxu0 0.0
        %3831 = vmatpush1.msra.mxu0 0.0
        %3832 = vmatprep.subr.mxu0 0.0
        %3833 = vmatpush1.msra.mxu0 0.0
        %3834 = vmatprep.subr.mxu0 0.0
        %3835 = vmatpush1.msra.mxu0 %v3792
        %3836 = vmatprep.subr.mxu0 0.0
        %3837 = vmatpush1.msra.mxu0 %v3791
        %3838 = vmatprep.subr.mxu0 0.0
        %3839 = vmatpush1.msra.mxu0 %v3790
        %3840 = vmatprep.subr.mxu0 0.0
        %3841 = vmatpush1.msra.mxu0 %v3789
        %3842 = vmatprep.subr.mxu0 0.0
        %3843 = vmatpush2.msra.mxu0 0.0
        %3844 = vmatprep.subr.mxu0 0.0
        %3845 = vmatpush2.msra.mxu0 0.0
        %3846 = vmatprep.subr.mxu0 0.0
        %3847 = vmatpush2.msra.mxu0 0.0
        %3848 = vmatprep.subr.mxu0 0.0
        %3849 = vmatpush2.msra.mxu0 0.0
        %3850 = vmatprep.subr.mxu0 0.0
        %3851 = vmatpush2.msra.mxu0 0.0
        %3852 = vmatprep.subr.mxu0 0.0
        %3853 = vmatpush2.msra.mxu0 0.0
        %3854 = vmatprep.subr.mxu0 0.0
        %3855 = vmatpush2.msra.mxu0 0.0
        %3856 = vmatprep.subr.mxu0 0.0
        %3857 = vmatpush2.msra.mxu0 0.0
        %3858 = vmatprep.subr.mxu0 0.0
        %3859 = vmatpush2.msra.mxu0 0.0
        %3860 = vmatprep.subr.mxu0 0.0
        %3861 = vmatpush2.msra.mxu0 0.0
        %3862 = vmatprep.subr.mxu0 0.0
        %3863 = vmatpush2.msra.mxu0 0.0
        %3864 = vmatprep.subr.mxu0 0.0
        %3865 = vmatpush2.msra.mxu0 0.0
        %3866 = vmatprep.subr.mxu0 0.0
        %3867 = vmatpush2.msra.mxu0 0.0
        %3868 = vmatprep.subr.mxu0 0.0
        %3869 = vmatpush2.msra.mxu0 0.0
        %3870 = vmatprep.subr.mxu0 0.0
        %3871 = vmatpush2.msra.mxu0 0.0
        %3872 = vmatprep.subr.mxu0 0.0
        %3873 = vmatpush2.msra.mxu0 0.0
        %3874 = vmatprep.mubr.f32.mxu0 0.0
        %3875 = vmatmul.mubr.f32.gmra.mxu0 %v3802
        %v3876 = vpop.f32.mrf.mxu0
        %v3877 = vadd.f32 %v3799, %v3876
        %v3878 = vpop.f32.mrf.mxu0
        %3879 = vmatprep.mubr.f32.mxu0 0.0
        %3880 = vmatmul.mubr.f32.gmra.mxu0 %v3805
        %v3881 = vpop.f32.mrf.mxu0
        %v3882 = vadd.f32 %v3799, %v3881
        %v3883 = vpop.f32.mrf.mxu0
        %3884 = vmatprep.mubr.f32.mxu0 0.0
        %3885 = vmatmul.mubr.f32.gmra.mxu0 %v3808
        %v3886 = vpop.f32.mrf.mxu0
        %v3887 = vadd.f32 %v3799, %v3886
        %v3888 = vpop.f32.mrf.mxu0
        %3889 = vdwg.mxu0
        %v3890 = vmul.f32 %v3877, 0.5
        %v3891 = vmul.f32 %v3882, 0.5
        %v3892 = vmul.f32 %v3887, 0.5
        %v3893 = vmul.f32 %v3877, 0.044715
        %v3894 = vmul.f32 %v3882, 0.044715
        %v3895 = vmul.f32 %v3887, 0.044715
        %v3896 = vmul.f32 %v3893, %v3877
        %v3897 = vmul.f32 %v3894, %v3882
        %v3898 = vmul.f32 %v3895, %v3887
        %v3899 = vmul.f32 %v3896, %v3877
        %v3900 = vmul.f32 %v3897, %v3882
        %v3901 = vmul.f32 %v3898, %v3887
        %v3902 = vadd.f32 %v3877, %v3899
        %v3903 = vadd.f32 %v3882, %v3900
        %v3904 = vadd.f32 %v3887, %v3901
        %v3905 = vmul.f32 %v3902, 0.7978846
        %v3906 = vmul.f32 %v3903, 0.7978846
        %v3907 = vmul.f32 %v3904, 0.7978846
        %v3908 = vtanh.pop %v3905
        %v3909 = vtanh.pop %v3906
        %v3910 = vtanh.pop %v3907
        %v3911 = vadd.f32 %v3908, 1.0
        %v3912 = vadd.f32 %v3909, 1.0
        %v3913 = vadd.f32 %v3910, 1.0
        %v3914 = vmul.f32 %v3890, %v3911
        %v3915 = vmul.f32 %v3891, %v3912
        %v3916 = vmul.f32 %v3892, %v3913
        %s3917 = scalar_lea.vmem %s12, 128
        %v3918 = vld [vmem:[%s3917] sm:$0xff]
        %v3919 = vld [vmem:[%s3917 + $0x8] sm:$0xff]
        %v3920 = vld [vmem:[%s3917 + $0x10] sm:$0xff]
        %v3921 = vld [vmem:[%s3917 + $0x18] sm:$0xff]
        %v3922 = vld [vmem:[%s3917 + $0x20] sm:$0xff]
        %v3923 = vld [vmem:[%s3917 + $0x28] sm:$0xff]
        %v3924 = vld [vmem:[%s3917 + $0x30] sm:$0xff]
        %v3925 = vld [vmem:[%s3917 + $0x38] sm:$0xff]
        %v3926 = vld [vmem:[%s3917 + $0x40] sm:$0xff]
        %v3927 = vld [vmem:[%s3917 + $0x48] sm:$0xff]
        %v3928 = vld [vmem:[%s3917 + $0x50] sm:$0xff]
        %v3929 = vld [vmem:[%s3917 + $0x58] sm:$0xff]
        %v3930 = vld [vmem:[%s3917 + $0x60] sm:$0xff]
        %v3931 = vld [vmem:[%s3917 + $0x68] sm:$0xff]
        %v3932 = vld [vmem:[%s3917 + $0x70] sm:$0xff]
        %v3933 = vld [vmem:[%s3917 + $0x78] sm:$0xff]
        %3934 = vmatprep.subr.mxu0 0.0
        %3935 = vmatpush1.msra.mxu0 %v3933
        %3936 = vmatprep.subr.mxu0 0.0
        %3937 = vmatpush1.msra.mxu0 %v3932
        %3938 = vmatprep.subr.mxu0 0.0
        %3939 = vmatpush1.msra.mxu0 %v3931
        %3940 = vmatprep.subr.mxu0 0.0
        %3941 = vmatpush1.msra.mxu0 %v3930
        %3942 = vmatprep.subr.mxu0 0.0
        %3943 = vmatpush1.msra.mxu0 %v3929
        %3944 = vmatprep.subr.mxu0 0.0
        %3945 = vmatpush1.msra.mxu0 %v3928
        %3946 = vmatprep.subr.mxu0 0.0
        %3947 = vmatpush1.msra.mxu0 %v3927
        %3948 = vmatprep.subr.mxu0 0.0
        %3949 = vmatpush1.msra.mxu0 %v3926
        %3950 = vmatprep.subr.mxu0 0.0
        %3951 = vmatpush1.msra.mxu0 %v3925
        %3952 = vmatprep.subr.mxu0 0.0
        %3953 = vmatpush1.msra.mxu0 %v3924
        %3954 = vmatprep.subr.mxu0 0.0
        %3955 = vmatpush1.msra.mxu0 %v3923
        %3956 = vmatprep.subr.mxu0 0.0
        %3957 = vmatpush1.msra.mxu0 %v3922
        %3958 = vmatprep.subr.mxu0 0.0
        %3959 = vmatpush1.msra.mxu0 %v3921
        %3960 = vmatprep.subr.mxu0 0.0
        %3961 = vmatpush1.msra.mxu0 %v3920
        %3962 = vmatprep.subr.mxu0 0.0
        %3963 = vmatpush1.msra.mxu0 %v3919
        %3964 = vmatprep.subr.mxu0 0.0
        %3965 = vmatpush1.msra.mxu0 %v3918
        %3966 = vmatprep.subr.mxu0 0.0
        %3967 = vmatpush2.msra.mxu0 0.0
        %3968 = vmatprep.subr.mxu0 0.0
        %3969 = vmatpush2.msra.mxu0 0.0
        %3970 = vmatprep.subr.mxu0 0.0
        %3971 = vmatpush2.msra.mxu0 0.0
        %3972 = vmatprep.subr.mxu0 0.0
        %3973 = vmatpush2.msra.mxu0 0.0
        %3974 = vmatprep.subr.mxu0 0.0
        %3975 = vmatpush2.msra.mxu0 0.0
        %3976 = vmatprep.subr.mxu0 0.0
        %3977 = vmatpush2.msra.mxu0 0.0
        %3978 = vmatprep.subr.mxu0 0.0
        %3979 = vmatpush2.msra.mxu0 0.0
        %3980 = vmatprep.subr.mxu0 0.0
        %3981 = vmatpush2.msra.mxu0 0.0
        %3982 = vmatprep.subr.mxu0 0.0
        %3983 = vmatpush2.msra.mxu0 0.0
        %3984 = vmatprep.subr.mxu0 0.0
        %3985 = vmatpush2.msra.mxu0 0.0
        %3986 = vmatprep.subr.mxu0 0.0
        %3987 = vmatpush2.msra.mxu0 0.0
        %3988 = vmatprep.subr.mxu0 0.0
        %3989 = vmatpush2.msra.mxu0 0.0
        %3990 = vmatprep.subr.mxu0 0.0
        %3991 = vmatpush2.msra.mxu0 0.0
        %3992 = vmatprep.subr.mxu0 0.0
        %3993 = vmatpush2.msra.mxu0 0.0
        %3994 = vmatprep.subr.mxu0 0.0
        %3995 = vmatpush2.msra.mxu0 0.0
        %3996 = vmatprep.subr.mxu0 0.0
        %3997 = vmatpush2.msra.mxu0 0.0
        %3998 = vmatprep.mubr.f32.mxu0 0.0
        %3999 = vmatmul.mubr.f32.gmra.mxu0 %v3914
        %v4000 = vpop.f32.mrf.mxu0
        %v4001 = vadd.f32 0.0, %v4000
        %v4002 = vpop.f32.mrf.mxu0
        %4003 = vmatprep.mubr.f32.mxu0 0.0
        %4004 = vmatmul.mubr.f32.gmra.mxu0 %v3915
        %v4005 = vpop.f32.mrf.mxu0
        %v4006 = vpop.f32.mrf.mxu0
        %4007 = vmatprep.mubr.f32.mxu0 0.0
        %4008 = vmatmul.mubr.f32.gmra.mxu0 %v3916
        %v4009 = vpop.f32.mrf.mxu0
        %v4010 = vpop.f32.mrf.mxu0
        %4011 = vdwg.mxu0
        %v4012 = vadd.f32 %v3746, %v4001
        %s4013 = scalar_lea.vmem %s13, 1
        %v4014 = vld [vmem:[%s4013] sm:$0x1]
        %v4016 = vlaneseq
        %v4017 = vshrl.u32 %v4016, 7
        %v4018 = vsub.s32 0, %v4017
        %v4019 = vrot.slane %v4014, %v4018
        %v4021 = vadd.f32 %v4012, %v4019
        %v4022 = vsel %vm639, %v4021, 0.0
        %4023 = vadd.xlane.f32.xlu0 %v4022
        %v4024 = vpop.xlane.xlu0 %4023
        %v4025 = vmul.f32 %v4024, %v643
        %v4026 = vsub.f32 %v4021, %v4025
        %v4027 = vmul.f32 %v4026, %v4026
        %v4028 = vsel %vm639, %v4027, 0.0
        %4029 = vadd.xlane.f32.xlu0 %v4028
        %v4030 = vpop.xlane.xlu0 %4029
        %v4031 = vmul.f32 %v4030, %v643
        %v4032 = vadd.f32 %v4031, 1e-06
        %v4033 = vrsqrt.pop %v4032
        %v4034 = vmul.f32 %v4026, %v4033
        %v4035 = vld [vmem:[%s14] sm:$0xff]
        %v4036 = vld [vmem:[%s14 + $0x8] sm:$0xff]
        %v4037 = vld [vmem:[%s14 + $0x10] sm:$0xff]
        %v4038 = vld [vmem:[%s14 + $0x18] sm:$0xff]
        %v4039 = vld [vmem:[%s15] sm:$0x1]
        %v4041 = vsel %vm632, %v4034, 0
        %4043 = vmatprep.subr.mxu0 0.0
        %4044 = vmatpush1.msra.mxu0 0.0
        %4045 = vmatprep.subr.mxu0 0.0
        %4046 = vmatpush1.msra.mxu0 0.0
        %4047 = vmatprep.subr.mxu0 0.0
        %4048 = vmatpush1.msra.mxu0 0.0
        %4049 = vmatprep.subr.mxu0 0.0
        %4050 = vmatpush1.msra.mxu0 0.0
        %4051 = vmatprep.subr.mxu0 0.0
        %4052 = vmatpush1.msra.mxu0 0.0
        %4053 = vmatprep.subr.mxu0 0.0
        %4054 = vmatpush1.msra.mxu0 0.0
        %4055 = vmatprep.subr.mxu0 0.0
        %4056 = vmatpush1.msra.mxu0 0.0
        %4057 = vmatprep.subr.mxu0 0.0
        %4058 = vmatpush1.msra.mxu0 0.0
        %4059 = vmatprep.subr.mxu0 0.0
        %4060 = vmatpush1.msra.mxu0 0.0
        %4061 = vmatprep.subr.mxu0 0.0
        %4062 = vmatpush1.msra.mxu0 0.0
        %4063 = vmatprep.subr.mxu0 0.0
        %4064 = vmatpush1.msra.mxu0 0.0
        %4065 = vmatprep.subr.mxu0 0.0
        %4066 = vmatpush1.msra.mxu0 0.0
        %4067 = vmatprep.subr.mxu0 0.0
        %4068 = vmatpush1.msra.mxu0 %v4038
        %4069 = vmatprep.subr.mxu0 0.0
        %4070 = vmatpush1.msra.mxu0 %v4037
        %4071 = vmatprep.subr.mxu0 0.0
        %4072 = vmatpush1.msra.mxu0 %v4036
        %4073 = vmatprep.subr.mxu0 0.0
        %4074 = vmatpush1.msra.mxu0 %v4035
        %4075 = vmatprep.subr.mxu0 0.0
        %4076 = vmatpush2.msra.mxu0 0.0
        %4077 = vmatprep.subr.mxu0 0.0
        %4078 = vmatpush2.msra.mxu0 0.0
        %4079 = vmatprep.subr.mxu0 0.0
        %4080 = vmatpush2.msra.mxu0 0.0
        %4081 = vmatprep.subr.mxu0 0.0
        %4082 = vmatpush2.msra.mxu0 0.0
        %4083 = vmatprep.subr.mxu0 0.0
        %4084 = vmatpush2.msra.mxu0 0.0
        %4085 = vmatprep.subr.mxu0 0.0
        %4086 = vmatpush2.msra.mxu0 0.0
        %4087 = vmatprep.subr.mxu0 0.0
        %4088 = vmatpush2.msra.mxu0 0.0
        %4089 = vmatprep.subr.mxu0 0.0
        %4090 = vmatpush2.msra.mxu0 0.0
        %4091 = vmatprep.subr.mxu0 0.0
        %4092 = vmatpush2.msra.mxu0 0.0
        %4093 = vmatprep.subr.mxu0 0.0
        %4094 = vmatpush2.msra.mxu0 0.0
        %4095 = vmatprep.subr.mxu0 0.0
        %4096 = vmatpush2.msra.mxu0 0.0
        %4097 = vmatprep.subr.mxu0 0.0
        %4098 = vmatpush2.msra.mxu0 0.0
        %4099 = vmatprep.subr.mxu0 0.0
        %4100 = vmatpush2.msra.mxu0 0.0
        %4101 = vmatprep.subr.mxu0 0.0
        %4102 = vmatpush2.msra.mxu0 0.0
        %4103 = vmatprep.subr.mxu0 0.0
        %4104 = vmatpush2.msra.mxu0 0.0
        %4105 = vmatprep.subr.mxu0 0.0
        %4106 = vmatpush2.msra.mxu0 0.0
        %4107 = vmatprep.mubr.f32.mxu0 0.0
        %4108 = vmatmul.mubr.f32.gmra.mxu0 %v4041
        %v4109 = vpop.f32.mrf.mxu0
        %v4110 = vadd.f32 %v4039, %v4109
        %v4111 = vpop.f32.mrf.mxu0
        %4112 = vdwg.mxu0
        %4113 = vst [vmem:[%s513] sm:$0x1] %v4110
        %s4114 = sand.u32 %s379, 1
        %s4115 = scalar_lea.sflag [#allocation3], %s4114
        %s4116 = sand.u32 %s379, 1
        %s4117 = scalar_lea.vmem [#allocation2], %s4116
        // Predicated region
        $region85: #{rope_vit_forward.1} parent=83 // pred_check
          %p4118 = pneg %p389
        $region86: #{rope_vit_forward.1} parent=83 // pred_check_branch
          %4120 = sbr.rel (%p4118) target = $region88
        $region87: #{rope_vit_forward.1} parent=83 // pred_region
          %s4122 = ssub.s32 16, 16
          %4123 = vsyncadd %s4115, %s4122
          %s4124 = smul.addr %s30, 16
          %s4125 = scalar_lea.hbm %s16, %s4124
          %s4127 = sshll.u32 %s4117, 4
          %s4128 = int_to_ptr.vmem [resolvable:$true] %s4127
          %4130 = dma.vmem_to_hbm [thread:$0]  %s4128, 16, %s4125, %s4115
        $region88: #{rope_vit_forward.1} parent=83 // pred_fallthru
          _
      $region84: #{rope_vit_forward.1} parent=5 // pred_fallthru
        _
      %p4131 = scmp.le.s32.totalorder 2, %s25
      // Predicated region
      $region89: #{rope_vit_forward.1} parent=5 // pred_check
        %p4132 = pneg %p4131
      $region90: #{rope_vit_forward.1} parent=5 // pred_check_branch
        %4134 = sbr.rel (%p4132) target = $region92
      $region91: #{rope_vit_forward.1} parent=5 // pred_region
        %s4135 = ssub.s32 %s25, 2
        // Predicated region
        $region93: #{rope_vit_forward.1} parent=91 // pred_check
          %p4136 = pneg %p395
        $region94: #{rope_vit_forward.1} parent=91 // pred_check_branch
          %4138 = sbr.rel (%p4136) target = $region96
        $region95: #{rope_vit_forward.1} parent=91 // pred_region
          %s4139 = sand.u32 %s380, 1
          %s4140 = scalar_lea.sflag [#allocation3], %s4139
          %s4141 = sand.u32 %s380, 1
          %s4142 = scalar_lea.vmem [#allocation2], %s4141
          %4143 = dma.done %s4140, 16
        $region96: #{rope_vit_forward.1} parent=91 // pred_fallthru
          _
      $region92: #{rope_vit_forward.1} parent=5 // pred_fallthru
        _
    $region6: #{rope_vit_forward.1} parent=1 // loop_footer
      %s29 = sadd.s32 1, %s25
    $region7: #{rope_vit_forward.1} parent=1 // loop_footer_branch
      %24 = sbr.rel target = $region3
    $region8: #{rope_vit_forward.1} parent=1 // loop_exit
      _
    %4144 = vsyncpa [#allocation3], 1
    %s4145 = scalar_lea.sflag [#allocation3], 1
    %4146 = vsyncpa %s4145, 1

</llo_original>
